<compile_context>
chip_gen: v7x
topology: tpu7x:2x2x1
jax: 0.10.0
libtpu: 0.0.40
codegen_flags: <defaults>
</compile_context>

<pallas_src>
import math

import jax
import jax.numpy as jnp
from jax import lax
from jax.experimental import pallas as pl
from jax.experimental.pallas import tpu as pltpu

# ---- synthetic tiny RoBERTa config ----
VOCAB = 128
MAX_POS = 16
PAD_IDX = 1
HIDDEN = 32
NUM_HEADS = 2
HEAD_DIM = HIDDEN // NUM_HEADS
FFN = 64
NUM_LAYERS = 2
EMBED_DIM = 48          # != HIDDEN -> projection branch is exercised
OUT_PAD = 128           # lane-dense padded projection width (sliced back to EMBED_DIM)
LN_EPS = 1e-5
BATCH = 2
SEQ = 8
BS = BATCH * SEQ


# ----------------------------- fused Pallas kernel -------------------------- #

def _layernorm(x, gamma, beta):
    mean = jnp.mean(x, axis=-1, keepdims=True)
    var = jnp.mean(jnp.square(x - mean), axis=-1, keepdims=True)
    return (x - mean) * lax.rsqrt(var + LN_EPS) * gamma + beta


def fused_embedder_kernel(
        ids_ref, pos_ref, mask_ref,
        wemb_ref, pemb_ref, temb_ref, embg_ref, embb_ref,
        wqkv_ref, bqkv_ref, wo_ref, bo_ref, ln1g_ref, ln1b_ref,
        w1_ref, b1_ref, w2_ref, b2_ref, ln2g_ref, ln2b_ref,
        wp_ref, bp_ref,
        out_ref):
    # ---- embedding lookup (one-hot matmul over VMEM-resident tables) + LN ----
    # TODO(synk): with a real vocab (50k x 768) the table cannot live in VMEM on any
    #             generation; switch to an HBM-resident table with a scalar-prefetch
    #             pl.Element row-gather BlockSpec before scaling up.
    ids = ids_ref[...]                                          # (BS, 1) int32
    pos = pos_ref[...]                                          # (BS, 1) int32
    wid_oh = (ids == lax.broadcasted_iota(jnp.int32, (BS, VOCAB), 1)
              ).astype(jnp.float32).astype(jnp.bfloat16)        # (BS, VOCAB)
    pos_oh = (pos == lax.broadcasted_iota(jnp.int32, (BS, MAX_POS), 1)
              ).astype(jnp.float32).astype(jnp.bfloat16)        # (BS, MAX_POS)
    emb = (jnp.dot(wid_oh, wemb_ref[...], preferred_element_type=jnp.float32)
           + jnp.dot(pos_oh, pemb_ref[...], preferred_element_type=jnp.float32)
           + temb_ref[...])
    x0 = _layernorm(emb, embg_ref[...], embb_ref[...])          # (BS, H) f32

    # ---- additive attention-mask bias built in-kernel from the raw (B, S) mask ----
    bias = ((1.0 - mask_ref[...]) * -1e9)[:, None, :]           # (B, 1, S)
    mask_bias = jnp.concatenate([bias] * NUM_HEADS, axis=0)     # (NH*B, 1, S)

    THD = 3 * HEAD_DIM

    def layer(l, x):
        xb = x.astype(jnp.bfloat16)
        # packed QKV projection; columns are head-major [h][q|k|v][d] and the
        # 1/sqrt(HEAD_DIM) scale is already folded into the q columns.
        qkv = (jnp.dot(xb, wqkv_ref[l], preferred_element_type=jnp.float32)
               + bqkv_ref[l])                                   # (BS, NH*3*HD)

        # fold heads onto the leading batch dim: (NH*B, S, 3*HD)
        qkv_f = jnp.concatenate(
            [qkv[:, h * THD:(h + 1) * THD].reshape(BATCH, SEQ, THD)
             for h in range(NUM_HEADS)], axis=0)
        q = qkv_f[..., :HEAD_DIM]
        k = qkv_f[..., HEAD_DIM:2 * HEAD_DIM]
        v = qkv_f[..., 2 * HEAD_DIM:]

        s = jnp.einsum('bqd,bkd->bqk', q, k,
                       preferred_element_type=jnp.float32) + mask_bias
        s = s - jnp.max(s, axis=-1, keepdims=True)
        p = jnp.exp(s)
        p = p * pl.reciprocal(jnp.sum(p, axis=-1, keepdims=True), approx=True)
        ctx = jnp.einsum('bqk,bkd->bqd', p, v,
                         preferred_element_type=jnp.float32)    # (NH*B, S, HD)

        # merge heads via per-head output-projection accumulate (no lane concat)
        wo = wo_ref[l]                                          # (H, H) bf16
        attn = bo_ref[l]                                        # (1, H) f32
        for h in range(NUM_HEADS):
            ctx_h = ctx[h * BATCH:(h + 1) * BATCH].reshape(BS, HEAD_DIM)
            attn = attn + jnp.dot(ctx_h.astype(jnp.bfloat16),
                                  wo[h * HEAD_DIM:(h + 1) * HEAD_DIM],
                                  preferred_element_type=jnp.float32)
        x1 = _layernorm(x + attn, ln1g_ref[l], ln1b_ref[l])

        # ---- feed-forward ----
        # TODO(synk): HF RoBERTa uses exact erf-GELU; tanh approximation used here.
        hmid = jax.nn.gelu(
            jnp.dot(x1.astype(jnp.bfloat16), w1_ref[l],
                    preferred_element_type=jnp.float32) + b1_ref[l],
            approximate=True)
        ffn = (jnp.dot(hmid.astype(jnp.bfloat16), w2_ref[l],
                       preferred_element_type=jnp.float32) + b2_ref[l])
        return _layernorm(x1 + ffn, ln2g_ref[l], ln2b_ref[l])

    x = lax.fori_loop(0, NUM_LAYERS, layer, x0, unroll=True)

    # ---- CLS pick + dropout(eval) + lane-dense padded projection ----
    # TODO(synk): dropout(p=0.1) training-mode mask not implemented; eval-mode
    #             (identity) semantics are used.
    cls = x.reshape(BATCH, SEQ, HIDDEN)[:, 0, :]                # (B, H)
    out_ref[...] = (jnp.dot(cls.astype(jnp.bfloat16), wp_ref[...],
                            preferred_element_type=jnp.float32)
                    + bp_ref[...])                              # (B, OUT_PAD) full vst


# ------------------------------- parameters -------------------------------- #

def init_params(key):
    # TODO(synk): RobertaModel.from_pretrained(model_name) weights cannot be loaded;
    #             deterministic synthetic weights of the right shapes are used.  When
    #             loading a real checkpoint, q/k/v must be re-packed into the
    #             head-major [h][q|k|v][d] column order assumed by the kernel.
    def nrm(k, shape):
        return 0.02 * jax.random.normal(k, shape, jnp.float32)

    ks = iter(jax.random.split(key, 16))
    L, H, F = NUM_LAYERS, HIDDEN, FFN
    bf16 = jnp.bfloat16

    # packed QKV with 1/sqrt(HEAD_DIM) folded into the q columns at init time
    wqkv = nrm(next(ks), (L, H, 3 * H))
    col = jnp.arange(3 * H)
    q_scale = jnp.where((col % (3 * HEAD_DIM)) < HEAD_DIM,
                        1.0 / math.sqrt(HEAD_DIM), 1.0).astype(jnp.float32)
    wqkv = wqkv * q_scale                                     # (bqkv is zero -> no fold needed)

    # projection zero-padded to a lane-dense 128-wide output
    proj_w = nrm(next(ks), (H, EMBED_DIM))
    proj_w = jnp.pad(proj_w, ((0, 0), (0, OUT_PAD - EMBED_DIM)))

    return {
        'word_emb': nrm(next(ks), (VOCAB, H)).astype(bf16),
        'pos_emb': nrm(next(ks), (MAX_POS, H)).astype(bf16),
        'type_emb': nrm(next(ks), (1, H)),
        'emb_ln_g': jnp.ones((1, H), jnp.float32),
        'emb_ln_b': jnp.zeros((1, H), jnp.float32),
        'proj_w': proj_w.astype(bf16),
        'proj_b': jnp.zeros((1, OUT_PAD), jnp.float32),
        # per-layer weights stacked along a leading layer axis (indexed in-kernel)
        'stacked': {
            'wqkv': wqkv.astype(bf16),
            'bqkv': jnp.zeros((L, 1, 3 * H), jnp.float32),
            'wo':   nrm(next(ks), (L, H, H)).astype(bf16),
            'bo':   jnp.zeros((L, 1, H), jnp.float32),
            'ln1_g': jnp.ones((L, 1, H), jnp.float32),
            'ln1_b': jnp.zeros((L, 1, H), jnp.float32),
            'w1':   nrm(next(ks), (L, H, F)).astype(bf16),
            'b1':   jnp.zeros((L, 1, F), jnp.float32),
            'w2':   nrm(next(ks), (L, F, H)).astype(bf16),
            'b2':   jnp.zeros((L, 1, H), jnp.float32),
            'ln2_g': jnp.ones((L, 1, H), jnp.float32),
            'ln2_b': jnp.zeros((L, 1, H), jnp.float32),
        },
    }


# --------------------------------- forward --------------------------------- #

def rocq_statement_embedder(params, input_ids, attention_mask):
    B, S = input_ids.shape
    assert (B, S) == (BATCH, SEQ)

    # RoBERTa-style position ids: cumsum over non-pad tokens, offset by pad idx
    # (create_position_ids_from_input_ids).
    nonpad = (input_ids != PAD_IDX).astype(jnp.int32)
    position_ids = jnp.cumsum(nonpad, axis=1) * nonpad + PAD_IDX

    ids2 = input_ids.astype(jnp.int32).reshape(BS, 1)
    pos2 = position_ids.astype(jnp.int32).reshape(BS, 1)
    maskf = attention_mask.astype(jnp.float32)                  # (B, S)

    st = params['stacked']
    inputs = [
        ids2, pos2, maskf,
        params['word_emb'], params['pos_emb'], params['type_emb'],
        params['emb_ln_g'], params['emb_ln_b'],
        st['wqkv'], st['bqkv'], st['wo'], st['bo'], st['ln1_g'], st['ln1_b'],
        st['w1'], st['b1'], st['w2'], st['b2'], st['ln2_g'], st['ln2_b'],
        params['proj_w'], params['proj_b'],
    ]

    # Single grid step: every array is a whole-array VMEM block (everything here
    # totals well under 1 MiB, so it fits any generation's scoped VMEM default).
    # TODO(synk): when scaled to real RoBERTa-base, reinstate a layer/K-N tiling
    #             grid with bf16 weight streaming and set
    #             pltpu.CompilerParams(vmem_limit_bytes=...) for v7x's 64 MiB VMEM.
    vmem = pl.BlockSpec(memory_space=pltpu.MemorySpace.VMEM)
    out = pl.pallas_call(
        fused_embedder_kernel,
        out_shape=jax.ShapeDtypeStruct((BATCH, OUT_PAD), jnp.float32),
        in_specs=[vmem] * len(inputs),
        out_specs=vmem,
    )(*inputs)
    return out[:, :EMBED_DIM]


if __name__ == "__main__":
    key = jax.random.PRNGKey(0)
    pkey, ikey = jax.random.split(key)
    params = init_params(pkey)

    input_ids = jax.random.randint(ikey, (BATCH, SEQ), 2, VOCAB, dtype=jnp.int32)
    attention_mask = jnp.ones((BATCH, SEQ), jnp.int32).at[1, 6:].set(0)
    input_ids = jnp.where(attention_mask == 1, input_ids, PAD_IDX)

    fwd = jax.jit(rocq_statement_embedder)
    out = fwd(params, input_ids, attention_mask)
    jax.block_until_ready(out)

    assert out.shape == (BATCH, EMBED_DIM)
    assert out.dtype == jnp.float32
    assert bool(jnp.all(jnp.isfinite(out)))
    print("KERNEL_OK")
</pallas_src>

<mosaic_0001>
module attributes {stable_mosaic.version = 11 : i64} {
  func.func @fused_embedder_kernel(%arg0: memref<16x1xi32, #tpu.memory_space<vmem>>, %arg1: memref<16x1xi32, #tpu.memory_space<vmem>>, %arg2: memref<2x8xf32, #tpu.memory_space<vmem>>, %arg3: memref<128x32xbf16, #tpu.memory_space<vmem>>, %arg4: memref<16x32xbf16, #tpu.memory_space<vmem>>, %arg5: memref<1x32xf32, #tpu.memory_space<vmem>>, %arg6: memref<1x32xf32, #tpu.memory_space<vmem>>, %arg7: memref<1x32xf32, #tpu.memory_space<vmem>>, %arg8: memref<2x32x96xbf16, #tpu.memory_space<vmem>>, %arg9: memref<2x1x96xf32, #tpu.memory_space<vmem>>, %arg10: memref<2x32x32xbf16, #tpu.memory_space<vmem>>, %arg11: memref<2x1x32xf32, #tpu.memory_space<vmem>>, %arg12: memref<2x1x32xf32, #tpu.memory_space<vmem>>, %arg13: memref<2x1x32xf32, #tpu.memory_space<vmem>>, %arg14: memref<2x32x64xbf16, #tpu.memory_space<vmem>>, %arg15: memref<2x1x64xf32, #tpu.memory_space<vmem>>, %arg16: memref<2x64x32xbf16, #tpu.memory_space<vmem>>, %arg17: memref<2x1x32xf32, #tpu.memory_space<vmem>>, %arg18: memref<2x1x32xf32, #tpu.memory_space<vmem>>, %arg19: memref<2x1x32xf32, #tpu.memory_space<vmem>>, %arg20: memref<32x128xbf16, #tpu.memory_space<vmem>>, %arg21: memref<1x128xf32, #tpu.memory_space<vmem>>, %arg22: memref<2x128xf32, #tpu.memory_space<vmem>>) attributes {dimension_semantics = [], scalar_prefetch = 0 : i64, scratch_operands = 0 : i64, tpu.core_type = #tpu.core_type<tc>} {
    %c0 = arith.constant 0 : index
    %c0_0 = arith.constant 0 : index
    %0 = vector.load %arg0[%c0, %c0_0] : memref<16x1xi32, #tpu.memory_space<vmem>>, vector<16x1xi32>
    %c0_1 = arith.constant 0 : index
    %c0_2 = arith.constant 0 : index
    %1 = vector.load %arg1[%c0_1, %c0_2] : memref<16x1xi32, #tpu.memory_space<vmem>>, vector<16x1xi32>
    %2 = tpu.iota {dimensions = array<i32: 1>} : vector<16x128xi32>
    %3 = vector.broadcast %0 : vector<16x1xi32> to vector<16x128xi32>
    %4 = arith.cmpi eq, %3, %2 : vector<16x128xi32>
    %5 = arith.extui %4 : vector<16x128xi1> to vector<16x128xi32>
    %6 = arith.sitofp %5 : vector<16x128xi32> to vector<16x128xf32>
    %7 = arith.truncf %6 : vector<16x128xf32> to vector<16x128xbf16>
    %8 = tpu.iota {dimensions = array<i32: 1>} : vector<16x16xi32>
    %9 = vector.broadcast %1 : vector<16x1xi32> to vector<16x16xi32>
    %10 = arith.cmpi eq, %9, %8 : vector<16x16xi32>
    %11 = arith.extui %10 : vector<16x16xi1> to vector<16x16xi32>
    %12 = arith.sitofp %11 : vector<16x16xi32> to vector<16x16xf32>
    %13 = arith.truncf %12 : vector<16x16xf32> to vector<16x16xbf16>
    %c0_3 = arith.constant 0 : index
    %c0_4 = arith.constant 0 : index
    %14 = vector.load %arg3[%c0_3, %c0_4] : memref<128x32xbf16, #tpu.memory_space<vmem>>, vector<128x32xbf16>
    %cst = arith.constant dense<0.000000e+00> : vector<16x32xf32>
    %15 = tpu.matmul %7, %14, %cst {dimension_numbers = #tpu.dot_dimension_numbers<[1], [0], [0], [1], [0, 0, 1, 1], [], []>} : vector<16x128xbf16>, vector<128x32xbf16>, vector<16x32xf32> -> vector<16x32xf32>
    %c0_5 = arith.constant 0 : index
    %c0_6 = arith.constant 0 : index
    %16 = vector.load %arg4[%c0_5, %c0_6] : memref<16x32xbf16, #tpu.memory_space<vmem>>, vector<16x32xbf16>
    %cst_7 = arith.constant dense<0.000000e+00> : vector<16x32xf32>
    %17 = tpu.matmul %13, %16, %cst_7 {dimension_numbers = #tpu.dot_dimension_numbers<[1], [0], [0], [1], [0, 0, 1, 1], [], []>} : vector<16x16xbf16>, vector<16x32xbf16>, vector<16x32xf32> -> vector<16x32xf32>
    %18 = arith.addf %15, %17 : vector<16x32xf32>
    %c0_8 = arith.constant 0 : index
    %c0_9 = arith.constant 0 : index
    %19 = vector.load %arg5[%c0_8, %c0_9] : memref<1x32xf32, #tpu.memory_space<vmem>>, vector<1x32xf32>
    %20 = vector.broadcast %19 : vector<1x32xf32> to vector<16x32xf32>
    %21 = arith.addf %18, %20 : vector<16x32xf32>
    %c0_10 = arith.constant 0 : index
    %c0_11 = arith.constant 0 : index
    %22 = vector.load %arg6[%c0_10, %c0_11] : memref<1x32xf32, #tpu.memory_space<vmem>>, vector<1x32xf32>
    %c0_12 = arith.constant 0 : index
    %c0_13 = arith.constant 0 : index
    %23 = vector.load %arg7[%c0_12, %c0_13] : memref<1x32xf32, #tpu.memory_space<vmem>>, vector<1x32xf32>
    %cst_14 = arith.constant dense<0.000000e+00> : vector<16xf32>
    %24 = vector.multi_reduction <add>, %21, %cst_14 [1] : vector<16x32xf32> to vector<16xf32>
    %25 = vector.shape_cast %24 : vector<16xf32> to vector<16x1xf32>
    %cst_15 = arith.constant 3.200000e+01 : f32
    %26 = vector.broadcast %cst_15 : f32 to vector<16x1xf32>
    %27 = arith.divf %25, %26 : vector<16x1xf32>
    %28 = vector.broadcast %27 : vector<16x1xf32> to vector<16x32xf32>
    %29 = arith.subf %21, %28 : vector<16x32xf32>
    %30 = arith.mulf %29, %29 : vector<16x32xf32>
    %cst_16 = arith.constant dense<0.000000e+00> : vector<16xf32>
    %31 = vector.multi_reduction <add>, %30, %cst_16 [1] : vector<16x32xf32> to vector<16xf32>
    %32 = vector.shape_cast %31 : vector<16xf32> to vector<16x1xf32>
    %cst_17 = arith.constant 3.200000e+01 : f32
    %33 = vector.broadcast %cst_17 : f32 to vector<16x1xf32>
    %34 = arith.divf %32, %33 : vector<16x1xf32>
    %35 = vector.broadcast %27 : vector<16x1xf32> to vector<16x32xf32>
    %36 = arith.subf %21, %35 : vector<16x32xf32>
    %cst_18 = arith.constant 9.99999974E-6 : f32
    %37 = vector.broadcast %cst_18 : f32 to vector<16x1xf32>
    %38 = arith.addf %34, %37 : vector<16x1xf32>
    %39 = math.rsqrt %38 : vector<16x1xf32>
    %40 = vector.broadcast %39 : vector<16x1xf32> to vector<16x32xf32>
    %41 = arith.mulf %36, %40 : vector<16x32xf32>
    %42 = vector.broadcast %22 : vector<1x32xf32> to vector<16x32xf32>
    %43 = arith.mulf %41, %42 : vector<16x32xf32>
    %44 = vector.broadcast %23 : vector<1x32xf32> to vector<16x32xf32>
    %45 = arith.addf %43, %44 : vector<16x32xf32>
    %c0_19 = arith.constant 0 : index
    %c0_20 = arith.constant 0 : index
    %46 = vector.load %arg2[%c0_19, %c0_20] : memref<2x8xf32, #tpu.memory_space<vmem>>, vector<2x8xf32>
    %cst_21 = arith.constant 1.000000e+00 : f32
    %47 = vector.broadcast %cst_21 : f32 to vector<2x8xf32>
    %48 = arith.subf %47, %46 : vector<2x8xf32>
    %cst_22 = arith.constant -1.000000e+09 : f32
    %49 = vector.broadcast %cst_22 : f32 to vector<2x8xf32>
    %50 = arith.mulf %48, %49 : vector<2x8xf32>
    %51 = vector.shape_cast %50 : vector<2x8xf32> to vector<2x1x8xf32>
    %52 = tpu.concatenate %51, %51 in 0 : vector<2x1x8xf32>, vector<2x1x8xf32> -> vector<4x1x8xf32>
    %c0_i32 = arith.constant 0 : i32
    %53 = arith.truncf %45 : vector<16x32xf32> to vector<16x32xbf16>
    %54 = arith.index_cast %c0_i32 : i32 to index
    %c0_23 = arith.constant 0 : index
    %c0_24 = arith.constant 0 : index
    %55 = vector.load %arg8[%54, %c0_23, %c0_24] : memref<2x32x96xbf16, #tpu.memory_space<vmem>>, vector<1x32x96xbf16>
    %56 = vector.shape_cast %55 : vector<1x32x96xbf16> to vector<32x96xbf16>
    %cst_25 = arith.constant dense<0.000000e+00> : vector<16x96xf32>
    %57 = tpu.matmul %53, %56, %cst_25 {dimension_numbers = #tpu.dot_dimension_numbers<[1], [0], [0], [1], [0, 0, 1, 1], [], []>} : vector<16x32xbf16>, vector<32x96xbf16>, vector<16x96xf32> -> vector<16x96xf32>
    %58 = arith.index_cast %c0_i32 : i32 to index
    %c0_26 = arith.constant 0 : index
    %c0_27 = arith.constant 0 : index
    %59 = vector.load %arg9[%58, %c0_26, %c0_27] : memref<2x1x96xf32, #tpu.memory_space<vmem>>, vector<1x1x96xf32>
    %60 = vector.shape_cast %59 : vector<1x1x96xf32> to vector<1x96xf32>
    %61 = vector.broadcast %60 : vector<1x96xf32> to vector<16x96xf32>
    %62 = arith.addf %57, %61 : vector<16x96xf32>
    %63 = vector.extract_strided_slice %62 {offsets = [0, 0], sizes = [16, 48], strides = [1, 1]} : vector<16x96xf32> to vector<16x48xf32>
    %64 = vector.shape_cast %63 : vector<16x48xf32> to vector<2x8x48xf32>
    %65 = vector.extract_strided_slice %62 {offsets = [0, 48], sizes = [16, 48], strides = [1, 1]} : vector<16x96xf32> to vector<16x48xf32>
    %66 = vector.shape_cast %65 : vector<16x48xf32> to vector<2x8x48xf32>
    %67 = tpu.concatenate %64, %66 in 0 : vector<2x8x48xf32>, vector<2x8x48xf32> -> vector<4x8x48xf32>
    %68 = vector.extract_strided_slice %67 {offsets = [0, 0, 0], sizes = [4, 8, 16], strides = [1, 1, 1]} : vector<4x8x48xf32> to vector<4x8x16xf32>
    %69 = vector.extract_strided_slice %67 {offsets = [0, 0, 16], sizes = [4, 8, 16], strides = [1, 1, 1]} : vector<4x8x48xf32> to vector<4x8x16xf32>
    %70 = vector.extract_strided_slice %67 {offsets = [0, 0, 32], sizes = [4, 8, 16], strides = [1, 1, 1]} : vector<4x8x48xf32> to vector<4x8x16xf32>
    "tpu.trace_start"() <{level = 10 : i32, message = "bqd,bkd->bqk"}> : () -> ()
    %cst_28 = arith.constant dense<0.000000e+00> : vector<4x8x8xf32>
    %71 = tpu.matmul %68, %69, %cst_28 {dimension_numbers = #tpu.dot_dimension_numbers<[2], [2], [1], [1], [0, 0, 0, 1, 1, 1], [0], [0]>} : vector<4x8x16xf32>, vector<4x8x16xf32>, vector<4x8x8xf32> -> vector<4x8x8xf32>
    "tpu.trace_stop"() : () -> ()
    %72 = vector.broadcast %52 : vector<4x1x8xf32> to vector<4x8x8xf32>
    %73 = arith.addf %71, %72 : vector<4x8x8xf32>
    %cst_29 = arith.constant dense<0xFF800000> : vector<4x8xf32>
    %74 = vector.multi_reduction <maximumf>, %73, %cst_29 [2] : vector<4x8x8xf32> to vector<4x8xf32>
    %75 = vector.shape_cast %74 : vector<4x8xf32> to vector<4x8x1xf32>
    %76 = vector.broadcast %75 : vector<4x8x1xf32> to vector<4x8x8xf32>
    %77 = arith.subf %73, %76 : vector<4x8x8xf32>
    %78 = math.exp %77 : vector<4x8x8xf32>
    %cst_30 = arith.constant dense<0.000000e+00> : vector<4x8xf32>
    %79 = vector.multi_reduction <add>, %78, %cst_30 [2] : vector<4x8x8xf32> to vector<4x8xf32>
    %80 = vector.shape_cast %79 : vector<4x8xf32> to vector<4x8x1xf32>
    %81 = tpu.reciprocal %80 {approx = true} : vector<4x8x1xf32> -> vector<4x8x1xf32>
    %82 = vector.broadcast %81 : vector<4x8x1xf32> to vector<4x8x8xf32>
    %83 = arith.mulf %78, %82 : vector<4x8x8xf32>
    "tpu.trace_start"() <{level = 10 : i32, message = "bqk,bkd->bqd"}> : () -> ()
    %cst_31 = arith.constant dense<0.000000e+00> : vector<4x8x16xf32>
    %84 = tpu.matmul %83, %70, %cst_31 {dimension_numbers = #tpu.dot_dimension_numbers<[2], [1], [1], [2], [0, 0, 0, 1, 1, 2], [0], [0]>} : vector<4x8x8xf32>, vector<4x8x16xf32>, vector<4x8x16xf32> -> vector<4x8x16xf32>
    "tpu.trace_stop"() : () -> ()
    %85 = arith.index_cast %c0_i32 : i32 to index
    %c0_32 = arith.constant 0 : index
    %c0_33 = arith.constant 0 : index
    %86 = vector.load %arg10[%85, %c0_32, %c0_33] : memref<2x32x32xbf16, #tpu.memory_space<vmem>>, vector<1x32x32xbf16>
    %87 = vector.shape_cast %86 : vector<1x32x32xbf16> to vector<32x32xbf16>
    %88 = arith.index_cast %c0_i32 : i32 to index
    %c0_34 = arith.constant 0 : index
    %c0_35 = arith.constant 0 : index
    %89 = vector.load %arg11[%88, %c0_34, %c0_35] : memref<2x1x32xf32, #tpu.memory_space<vmem>>, vector<1x1x32xf32>
    %90 = vector.shape_cast %89 : vector<1x1x32xf32> to vector<1x32xf32>
    %91 = vector.extract_strided_slice %84 {offsets = [0, 0, 0], sizes = [2, 8, 16], strides = [1, 1, 1]} : vector<4x8x16xf32> to vector<2x8x16xf32>
    %92 = vector.shape_cast %91 : vector<2x8x16xf32> to vector<16x16xf32>
    %93 = arith.truncf %92 : vector<16x16xf32> to vector<16x16xbf16>
    %94 = vector.extract_strided_slice %87 {offsets = [0, 0], sizes = [16, 32], strides = [1, 1]} : vector<32x32xbf16> to vector<16x32xbf16>
    %cst_36 = arith.constant dense<0.000000e+00> : vector<16x32xf32>
    %95 = tpu.matmul %93, %94, %cst_36 {dimension_numbers = #tpu.dot_dimension_numbers<[1], [0], [0], [1], [0, 0, 1, 1], [], []>} : vector<16x16xbf16>, vector<16x32xbf16>, vector<16x32xf32> -> vector<16x32xf32>
    %96 = vector.broadcast %90 : vector<1x32xf32> to vector<16x32xf32>
    %97 = arith.addf %96, %95 : vector<16x32xf32>
    %98 = vector.extract_strided_slice %84 {offsets = [2, 0, 0], sizes = [2, 8, 16], strides = [1, 1, 1]} : vector<4x8x16xf32> to vector<2x8x16xf32>
    %99 = vector.shape_cast %98 : vector<2x8x16xf32> to vector<16x16xf32>
    %100 = arith.truncf %99 : vector<16x16xf32> to vector<16x16xbf16>
    %101 = vector.extract_strided_slice %87 {offsets = [16, 0], sizes = [16, 32], strides = [1, 1]} : vector<32x32xbf16> to vector<16x32xbf16>
    %cst_37 = arith.constant dense<0.000000e+00> : vector<16x32xf32>
    %102 = tpu.matmul %100, %101, %cst_37 {dimension_numbers = #tpu.dot_dimension_numbers<[1], [0], [0], [1], [0, 0, 1, 1], [], []>} : vector<16x16xbf16>, vector<16x32xbf16>, vector<16x32xf32> -> vector<16x32xf32>
    %103 = arith.addf %97, %102 : vector<16x32xf32>
    %104 = arith.addf %45, %103 : vector<16x32xf32>
    %105 = arith.index_cast %c0_i32 : i32 to index
    %c0_38 = arith.constant 0 : index
    %c0_39 = arith.constant 0 : index
    %106 = vector.load %arg12[%105, %c0_38, %c0_39] : memref<2x1x32xf32, #tpu.memory_space<vmem>>, vector<1x1x32xf32>
    %107 = vector.shape_cast %106 : vector<1x1x32xf32> to vector<1x32xf32>
    %108 = arith.index_cast %c0_i32 : i32 to index
    %c0_40 = arith.constant 0 : index
    %c0_41 = arith.constant 0 : index
    %109 = vector.load %arg13[%108, %c0_40, %c0_41] : memref<2x1x32xf32, #tpu.memory_space<vmem>>, vector<1x1x32xf32>
    %110 = vector.shape_cast %109 : vector<1x1x32xf32> to vector<1x32xf32>
    %cst_42 = arith.constant dense<0.000000e+00> : vector<16xf32>
    %111 = vector.multi_reduction <add>, %104, %cst_42 [1] : vector<16x32xf32> to vector<16xf32>
    %112 = vector.shape_cast %111 : vector<16xf32> to vector<16x1xf32>
    %cst_43 = arith.constant 3.200000e+01 : f32
    %113 = vector.broadcast %cst_43 : f32 to vector<16x1xf32>
    %114 = arith.divf %112, %113 : vector<16x1xf32>
    %115 = vector.broadcast %114 : vector<16x1xf32> to vector<16x32xf32>
    %116 = arith.subf %104, %115 : vector<16x32xf32>
    %117 = arith.mulf %116, %116 : vector<16x32xf32>
    %cst_44 = arith.constant dense<0.000000e+00> : vector<16xf32>
    %118 = vector.multi_reduction <add>, %117, %cst_44 [1] : vector<16x32xf32> to vector<16xf32>
    %119 = vector.shape_cast %118 : vector<16xf32> to vector<16x1xf32>
    %cst_45 = arith.constant 3.200000e+01 : f32
    %120 = vector.broadcast %cst_45 : f32 to vector<16x1xf32>
    %121 = arith.divf %119, %120 : vector<16x1xf32>
    %122 = vector.broadcast %114 : vector<16x1xf32> to vector<16x32xf32>
    %123 = arith.subf %104, %122 : vector<16x32xf32>
    %cst_46 = arith.constant 9.99999974E-6 : f32
    %124 = vector.broadcast %cst_46 : f32 to vector<16x1xf32>
    %125 = arith.addf %121, %124 : vector<16x1xf32>
    %126 = math.rsqrt %125 : vector<16x1xf32>
    %127 = vector.broadcast %126 : vector<16x1xf32> to vector<16x32xf32>
    %128 = arith.mulf %123, %127 : vector<16x32xf32>
    %129 = vector.broadcast %107 : vector<1x32xf32> to vector<16x32xf32>
    %130 = arith.mulf %128, %129 : vector<16x32xf32>
    %131 = vector.broadcast %110 : vector<1x32xf32> to vector<16x32xf32>
    %132 = arith.addf %130, %131 : vector<16x32xf32>
    %133 = arith.truncf %132 : vector<16x32xf32> to vector<16x32xbf16>
    %134 = arith.index_cast %c0_i32 : i32 to index
    %c0_47 = arith.constant 0 : index
    %c0_48 = arith.constant 0 : index
    %135 = vector.load %arg14[%134, %c0_47, %c0_48] : memref<2x32x64xbf16, #tpu.memory_space<vmem>>, vector<1x32x64xbf16>
    %136 = vector.shape_cast %135 : vector<1x32x64xbf16> to vector<32x64xbf16>
    %cst_49 = arith.constant dense<0.000000e+00> : vector<16x64xf32>
    %137 = tpu.matmul %133, %136, %cst_49 {dimension_numbers = #tpu.dot_dimension_numbers<[1], [0], [0], [1], [0, 0, 1, 1], [], []>} : vector<16x32xbf16>, vector<32x64xbf16>, vector<16x64xf32> -> vector<16x64xf32>
    %138 = arith.index_cast %c0_i32 : i32 to index
    %c0_50 = arith.constant 0 : index
    %c0_51 = arith.constant 0 : index
    %139 = vector.load %arg15[%138, %c0_50, %c0_51] : memref<2x1x64xf32, #tpu.memory_space<vmem>>, vector<1x1x64xf32>
    %140 = vector.shape_cast %139 : vector<1x1x64xf32> to vector<1x64xf32>
    %141 = vector.broadcast %140 : vector<1x64xf32> to vector<16x64xf32>
    %142 = arith.addf %137, %141 : vector<16x64xf32>
    %143 = arith.mulf %142, %142 : vector<16x64xf32>
    %144 = arith.mulf %142, %143 : vector<16x64xf32>
    %cst_52 = arith.constant 4.471500e-02 : f32
    %145 = vector.broadcast %cst_52 : f32 to vector<16x64xf32>
    %146 = arith.mulf %145, %144 : vector<16x64xf32>
    %147 = arith.addf %142, %146 : vector<16x64xf32>
    %cst_53 = arith.constant 0.797884583 : f32
    %148 = vector.broadcast %cst_53 : f32 to vector<16x64xf32>
    %149 = arith.mulf %148, %147 : vector<16x64xf32>
    %150 = math.tanh %149 : vector<16x64xf32>
    %cst_54 = arith.constant 1.000000e+00 : f32
    %151 = vector.broadcast %cst_54 : f32 to vector<16x64xf32>
    %152 = arith.addf %151, %150 : vector<16x64xf32>
    %cst_55 = arith.constant 5.000000e-01 : f32
    %153 = vector.broadcast %cst_55 : f32 to vector<16x64xf32>
    %154 = arith.mulf %153, %152 : vector<16x64xf32>
    %155 = arith.mulf %142, %154 : vector<16x64xf32>
    %156 = arith.truncf %155 : vector<16x64xf32> to vector<16x64xbf16>
    %157 = arith.index_cast %c0_i32 : i32 to index
    %c0_56 = arith.constant 0 : index
    %c0_57 = arith.constant 0 : index
    %158 = vector.load %arg16[%157, %c0_56, %c0_57] : memref<2x64x32xbf16, #tpu.memory_space<vmem>>, vector<1x64x32xbf16>
    %159 = vector.shape_cast %158 : vector<1x64x32xbf16> to vector<64x32xbf16>
    %cst_58 = arith.constant dense<0.000000e+00> : vector<16x32xf32>
    %160 = tpu.matmul %156, %159, %cst_58 {dimension_numbers = #tpu.dot_dimension_numbers<[1], [0], [0], [1], [0, 0, 1, 1], [], []>} : vector<16x64xbf16>, vector<64x32xbf16>, vector<16x32xf32> -> vector<16x32xf32>
    %161 = arith.index_cast %c0_i32 : i32 to index
    %c0_59 = arith.constant 0 : index
    %c0_60 = arith.constant 0 : index
    %162 = vector.load %arg17[%161, %c0_59, %c0_60] : memref<2x1x32xf32, #tpu.memory_space<vmem>>, vector<1x1x32xf32>
    %163 = vector.shape_cast %162 : vector<1x1x32xf32> to vector<1x32xf32>
    %164 = vector.broadcast %163 : vector<1x32xf32> to vector<16x32xf32>
    %165 = arith.addf %160, %164 : vector<16x32xf32>
    %166 = arith.addf %132, %165 : vector<16x32xf32>
    %167 = arith.index_cast %c0_i32 : i32 to index
    %c0_61 = arith.constant 0 : index
    %c0_62 = arith.constant 0 : index
    %168 = vector.load %arg18[%167, %c0_61, %c0_62] : memref<2x1x32xf32, #tpu.memory_space<vmem>>, vector<1x1x32xf32>
    %169 = vector.shape_cast %168 : vector<1x1x32xf32> to vector<1x32xf32>
    %170 = arith.index_cast %c0_i32 : i32 to index
    %c0_63 = arith.constant 0 : index
    %c0_64 = arith.constant 0 : index
    %171 = vector.load %arg19[%170, %c0_63, %c0_64] : memref<2x1x32xf32, #tpu.memory_space<vmem>>, vector<1x1x32xf32>
    %172 = vector.shape_cast %171 : vector<1x1x32xf32> to vector<1x32xf32>
    %cst_65 = arith.constant dense<0.000000e+00> : vector<16xf32>
    %173 = vector.multi_reduction <add>, %166, %cst_65 [1] : vector<16x32xf32> to vector<16xf32>
    %174 = vector.shape_cast %173 : vector<16xf32> to vector<16x1xf32>
    %cst_66 = arith.constant 3.200000e+01 : f32
    %175 = vector.broadcast %cst_66 : f32 to vector<16x1xf32>
    %176 = arith.divf %174, %175 : vector<16x1xf32>
    %177 = vector.broadcast %176 : vector<16x1xf32> to vector<16x32xf32>
    %178 = arith.subf %166, %177 : vector<16x32xf32>
    %179 = arith.mulf %178, %178 : vector<16x32xf32>
    %cst_67 = arith.constant dense<0.000000e+00> : vector<16xf32>
    %180 = vector.multi_reduction <add>, %179, %cst_67 [1] : vector<16x32xf32> to vector<16xf32>
    %181 = vector.shape_cast %180 : vector<16xf32> to vector<16x1xf32>
    %cst_68 = arith.constant 3.200000e+01 : f32
    %182 = vector.broadcast %cst_68 : f32 to vector<16x1xf32>
    %183 = arith.divf %181, %182 : vector<16x1xf32>
    %184 = vector.broadcast %176 : vector<16x1xf32> to vector<16x32xf32>
    %185 = arith.subf %166, %184 : vector<16x32xf32>
    %cst_69 = arith.constant 9.99999974E-6 : f32
    %186 = vector.broadcast %cst_69 : f32 to vector<16x1xf32>
    %187 = arith.addf %183, %186 : vector<16x1xf32>
    %188 = math.rsqrt %187 : vector<16x1xf32>
    %189 = vector.broadcast %188 : vector<16x1xf32> to vector<16x32xf32>
    %190 = arith.mulf %185, %189 : vector<16x32xf32>
    %191 = vector.broadcast %169 : vector<1x32xf32> to vector<16x32xf32>
    %192 = arith.mulf %190, %191 : vector<16x32xf32>
    %193 = vector.broadcast %172 : vector<1x32xf32> to vector<16x32xf32>
    %194 = arith.addf %192, %193 : vector<16x32xf32>
    %c1_i32 = arith.constant 1 : i32
    %195 = arith.truncf %194 : vector<16x32xf32> to vector<16x32xbf16>
    %196 = arith.index_cast %c1_i32 : i32 to index
    %c0_70 = arith.constant 0 : index
    %c0_71 = arith.constant 0 : index
    %197 = vector.load %arg8[%196, %c0_70, %c0_71] : memref<2x32x96xbf16, #tpu.memory_space<vmem>>, vector<1x32x96xbf16>
    %198 = vector.shape_cast %197 : vector<1x32x96xbf16> to vector<32x96xbf16>
    %cst_72 = arith.constant dense<0.000000e+00> : vector<16x96xf32>
    %199 = tpu.matmul %195, %198, %cst_72 {dimension_numbers = #tpu.dot_dimension_numbers<[1], [0], [0], [1], [0, 0, 1, 1], [], []>} : vector<16x32xbf16>, vector<32x96xbf16>, vector<16x96xf32> -> vector<16x96xf32>
    %200 = arith.index_cast %c1_i32 : i32 to index
    %c0_73 = arith.constant 0 : index
    %c0_74 = arith.constant 0 : index
    %201 = vector.load %arg9[%200, %c0_73, %c0_74] : memref<2x1x96xf32, #tpu.memory_space<vmem>>, vector<1x1x96xf32>
    %202 = vector.shape_cast %201 : vector<1x1x96xf32> to vector<1x96xf32>
    %203 = vector.broadcast %202 : vector<1x96xf32> to vector<16x96xf32>
    %204 = arith.addf %199, %203 : vector<16x96xf32>
    %205 = vector.extract_strided_slice %204 {offsets = [0, 0], sizes = [16, 48], strides = [1, 1]} : vector<16x96xf32> to vector<16x48xf32>
    %206 = vector.shape_cast %205 : vector<16x48xf32> to vector<2x8x48xf32>
    %207 = vector.extract_strided_slice %204 {offsets = [0, 48], sizes = [16, 48], strides = [1, 1]} : vector<16x96xf32> to vector<16x48xf32>
    %208 = vector.shape_cast %207 : vector<16x48xf32> to vector<2x8x48xf32>
    %209 = tpu.concatenate %206, %208 in 0 : vector<2x8x48xf32>, vector<2x8x48xf32> -> vector<4x8x48xf32>
    %210 = vector.extract_strided_slice %209 {offsets = [0, 0, 0], sizes = [4, 8, 16], strides = [1, 1, 1]} : vector<4x8x48xf32> to vector<4x8x16xf32>
    %211 = vector.extract_strided_slice %209 {offsets = [0, 0, 16], sizes = [4, 8, 16], strides = [1, 1, 1]} : vector<4x8x48xf32> to vector<4x8x16xf32>
    %212 = vector.extract_strided_slice %209 {offsets = [0, 0, 32], sizes = [4, 8, 16], strides = [1, 1, 1]} : vector<4x8x48xf32> to vector<4x8x16xf32>
    "tpu.trace_start"() <{level = 10 : i32, message = "bqd,bkd->bqk"}> : () -> ()
    %cst_75 = arith.constant dense<0.000000e+00> : vector<4x8x8xf32>
    %213 = tpu.matmul %210, %211, %cst_75 {dimension_numbers = #tpu.dot_dimension_numbers<[2], [2], [1], [1], [0, 0, 0, 1, 1, 1], [0], [0]>} : vector<4x8x16xf32>, vector<4x8x16xf32>, vector<4x8x8xf32> -> vector<4x8x8xf32>
    "tpu.trace_stop"() : () -> ()
    %214 = vector.broadcast %52 : vector<4x1x8xf32> to vector<4x8x8xf32>
    %215 = arith.addf %213, %214 : vector<4x8x8xf32>
    %cst_76 = arith.constant dense<0xFF800000> : vector<4x8xf32>
    %216 = vector.multi_reduction <maximumf>, %215, %cst_76 [2] : vector<4x8x8xf32> to vector<4x8xf32>
    %217 = vector.shape_cast %216 : vector<4x8xf32> to vector<4x8x1xf32>
    %218 = vector.broadcast %217 : vector<4x8x1xf32> to vector<4x8x8xf32>
    %219 = arith.subf %215, %218 : vector<4x8x8xf32>
    %220 = math.exp %219 : vector<4x8x8xf32>
    %cst_77 = arith.constant dense<0.000000e+00> : vector<4x8xf32>
    %221 = vector.multi_reduction <add>, %220, %cst_77 [2] : vector<4x8x8xf32> to vector<4x8xf32>
    %222 = vector.shape_cast %221 : vector<4x8xf32> to vector<4x8x1xf32>
    %223 = tpu.reciprocal %222 {approx = true} : vector<4x8x1xf32> -> vector<4x8x1xf32>
    %224 = vector.broadcast %223 : vector<4x8x1xf32> to vector<4x8x8xf32>
    %225 = arith.mulf %220, %224 : vector<4x8x8xf32>
    "tpu.trace_start"() <{level = 10 : i32, message = "bqk,bkd->bqd"}> : () -> ()
    %cst_78 = arith.constant dense<0.000000e+00> : vector<4x8x16xf32>
    %226 = tpu.matmul %225, %212, %cst_78 {dimension_numbers = #tpu.dot_dimension_numbers<[2], [1], [1], [2], [0, 0, 0, 1, 1, 2], [0], [0]>} : vector<4x8x8xf32>, vector<4x8x16xf32>, vector<4x8x16xf32> -> vector<4x8x16xf32>
    "tpu.trace_stop"() : () -> ()
    %227 = arith.index_cast %c1_i32 : i32 to index
    %c0_79 = arith.constant 0 : index
    %c0_80 = arith.constant 0 : index
    %228 = vector.load %arg10[%227, %c0_79, %c0_80] : memref<2x32x32xbf16, #tpu.memory_space<vmem>>, vector<1x32x32xbf16>
    %229 = vector.shape_cast %228 : vector<1x32x32xbf16> to vector<32x32xbf16>
    %230 = arith.index_cast %c1_i32 : i32 to index
    %c0_81 = arith.constant 0 : index
    %c0_82 = arith.constant 0 : index
    %231 = vector.load %arg11[%230, %c0_81, %c0_82] : memref<2x1x32xf32, #tpu.memory_space<vmem>>, vector<1x1x32xf32>
    %232 = vector.shape_cast %231 : vector<1x1x32xf32> to vector<1x32xf32>
    %233 = vector.extract_strided_slice %226 {offsets = [0, 0, 0], sizes = [2, 8, 16], strides = [1, 1, 1]} : vector<4x8x16xf32> to vector<2x8x16xf32>
    %234 = vector.shape_cast %233 : vector<2x8x16xf32> to vector<16x16xf32>
    %235 = arith.truncf %234 : vector<16x16xf32> to vector<16x16xbf16>
    %236 = vector.extract_strided_slice %229 {offsets = [0, 0], sizes = [16, 32], strides = [1, 1]} : vector<32x32xbf16> to vector<16x32xbf16>
    %cst_83 = arith.constant dense<0.000000e+00> : vector<16x32xf32>
    %237 = tpu.matmul %235, %236, %cst_83 {dimension_numbers = #tpu.dot_dimension_numbers<[1], [0], [0], [1], [0, 0, 1, 1], [], []>} : vector<16x16xbf16>, vector<16x32xbf16>, vector<16x32xf32> -> vector<16x32xf32>
    %238 = vector.broadcast %232 : vector<1x32xf32> to vector<16x32xf32>
    %239 = arith.addf %238, %237 : vector<16x32xf32>
    %240 = vector.extract_strided_slice %226 {offsets = [2, 0, 0], sizes = [2, 8, 16], strides = [1, 1, 1]} : vector<4x8x16xf32> to vector<2x8x16xf32>
    %241 = vector.shape_cast %240 : vector<2x8x16xf32> to vector<16x16xf32>
    %242 = arith.truncf %241 : vector<16x16xf32> to vector<16x16xbf16>
    %243 = vector.extract_strided_slice %229 {offsets = [16, 0], sizes = [16, 32], strides = [1, 1]} : vector<32x32xbf16> to vector<16x32xbf16>
    %cst_84 = arith.constant dense<0.000000e+00> : vector<16x32xf32>
    %244 = tpu.matmul %242, %243, %cst_84 {dimension_numbers = #tpu.dot_dimension_numbers<[1], [0], [0], [1], [0, 0, 1, 1], [], []>} : vector<16x16xbf16>, vector<16x32xbf16>, vector<16x32xf32> -> vector<16x32xf32>
    %245 = arith.addf %239, %244 : vector<16x32xf32>
    %246 = arith.addf %194, %245 : vector<16x32xf32>
    %247 = arith.index_cast %c1_i32 : i32 to index
    %c0_85 = arith.constant 0 : index
    %c0_86 = arith.constant 0 : index
    %248 = vector.load %arg12[%247, %c0_85, %c0_86] : memref<2x1x32xf32, #tpu.memory_space<vmem>>, vector<1x1x32xf32>
    %249 = vector.shape_cast %248 : vector<1x1x32xf32> to vector<1x32xf32>
    %250 = arith.index_cast %c1_i32 : i32 to index
    %c0_87 = arith.constant 0 : index
    %c0_88 = arith.constant 0 : index
    %251 = vector.load %arg13[%250, %c0_87, %c0_88] : memref<2x1x32xf32, #tpu.memory_space<vmem>>, vector<1x1x32xf32>
    %252 = vector.shape_cast %251 : vector<1x1x32xf32> to vector<1x32xf32>
    %cst_89 = arith.constant dense<0.000000e+00> : vector<16xf32>
    %253 = vector.multi_reduction <add>, %246, %cst_89 [1] : vector<16x32xf32> to vector<16xf32>
    %254 = vector.shape_cast %253 : vector<16xf32> to vector<16x1xf32>
    %cst_90 = arith.constant 3.200000e+01 : f32
    %255 = vector.broadcast %cst_90 : f32 to vector<16x1xf32>
    %256 = arith.divf %254, %255 : vector<16x1xf32>
    %257 = vector.broadcast %256 : vector<16x1xf32> to vector<16x32xf32>
    %258 = arith.subf %246, %257 : vector<16x32xf32>
    %259 = arith.mulf %258, %258 : vector<16x32xf32>
    %cst_91 = arith.constant dense<0.000000e+00> : vector<16xf32>
    %260 = vector.multi_reduction <add>, %259, %cst_91 [1] : vector<16x32xf32> to vector<16xf32>
    %261 = vector.shape_cast %260 : vector<16xf32> to vector<16x1xf32>
    %cst_92 = arith.constant 3.200000e+01 : f32
    %262 = vector.broadcast %cst_92 : f32 to vector<16x1xf32>
    %263 = arith.divf %261, %262 : vector<16x1xf32>
    %264 = vector.broadcast %256 : vector<16x1xf32> to vector<16x32xf32>
    %265 = arith.subf %246, %264 : vector<16x32xf32>
    %cst_93 = arith.constant 9.99999974E-6 : f32
    %266 = vector.broadcast %cst_93 : f32 to vector<16x1xf32>
    %267 = arith.addf %263, %266 : vector<16x1xf32>
    %268 = math.rsqrt %267 : vector<16x1xf32>
    %269 = vector.broadcast %268 : vector<16x1xf32> to vector<16x32xf32>
    %270 = arith.mulf %265, %269 : vector<16x32xf32>
    %271 = vector.broadcast %249 : vector<1x32xf32> to vector<16x32xf32>
    %272 = arith.mulf %270, %271 : vector<16x32xf32>
    %273 = vector.broadcast %252 : vector<1x32xf32> to vector<16x32xf32>
    %274 = arith.addf %272, %273 : vector<16x32xf32>
    %275 = arith.truncf %274 : vector<16x32xf32> to vector<16x32xbf16>
    %276 = arith.index_cast %c1_i32 : i32 to index
    %c0_94 = arith.constant 0 : index
    %c0_95 = arith.constant 0 : index
    %277 = vector.load %arg14[%276, %c0_94, %c0_95] : memref<2x32x64xbf16, #tpu.memory_space<vmem>>, vector<1x32x64xbf16>
    %278 = vector.shape_cast %277 : vector<1x32x64xbf16> to vector<32x64xbf16>
    %cst_96 = arith.constant dense<0.000000e+00> : vector<16x64xf32>
    %279 = tpu.matmul %275, %278, %cst_96 {dimension_numbers = #tpu.dot_dimension_numbers<[1], [0], [0], [1], [0, 0, 1, 1], [], []>} : vector<16x32xbf16>, vector<32x64xbf16>, vector<16x64xf32> -> vector<16x64xf32>
    %280 = arith.index_cast %c1_i32 : i32 to index
    %c0_97 = arith.constant 0 : index
    %c0_98 = arith.constant 0 : index
    %281 = vector.load %arg15[%280, %c0_97, %c0_98] : memref<2x1x64xf32, #tpu.memory_space<vmem>>, vector<1x1x64xf32>
    %282 = vector.shape_cast %281 : vector<1x1x64xf32> to vector<1x64xf32>
    %283 = vector.broadcast %282 : vector<1x64xf32> to vector<16x64xf32>
    %284 = arith.addf %279, %283 : vector<16x64xf32>
    %285 = arith.mulf %284, %284 : vector<16x64xf32>
    %286 = arith.mulf %284, %285 : vector<16x64xf32>
    %cst_99 = arith.constant 4.471500e-02 : f32
    %287 = vector.broadcast %cst_99 : f32 to vector<16x64xf32>
    %288 = arith.mulf %287, %286 : vector<16x64xf32>
    %289 = arith.addf %284, %288 : vector<16x64xf32>
    %cst_100 = arith.constant 0.797884583 : f32
    %290 = vector.broadcast %cst_100 : f32 to vector<16x64xf32>
    %291 = arith.mulf %290, %289 : vector<16x64xf32>
    %292 = math.tanh %291 : vector<16x64xf32>
    %cst_101 = arith.constant 1.000000e+00 : f32
    %293 = vector.broadcast %cst_101 : f32 to vector<16x64xf32>
    %294 = arith.addf %293, %292 : vector<16x64xf32>
    %cst_102 = arith.constant 5.000000e-01 : f32
    %295 = vector.broadcast %cst_102 : f32 to vector<16x64xf32>
    %296 = arith.mulf %295, %294 : vector<16x64xf32>
    %297 = arith.mulf %284, %296 : vector<16x64xf32>
    %298 = arith.truncf %297 : vector<16x64xf32> to vector<16x64xbf16>
    %299 = arith.index_cast %c1_i32 : i32 to index
    %c0_103 = arith.constant 0 : index
    %c0_104 = arith.constant 0 : index
    %300 = vector.load %arg16[%299, %c0_103, %c0_104] : memref<2x64x32xbf16, #tpu.memory_space<vmem>>, vector<1x64x32xbf16>
    %301 = vector.shape_cast %300 : vector<1x64x32xbf16> to vector<64x32xbf16>
    %cst_105 = arith.constant dense<0.000000e+00> : vector<16x32xf32>
    %302 = tpu.matmul %298, %301, %cst_105 {dimension_numbers = #tpu.dot_dimension_numbers<[1], [0], [0], [1], [0, 0, 1, 1], [], []>} : vector<16x64xbf16>, vector<64x32xbf16>, vector<16x32xf32> -> vector<16x32xf32>
    %303 = arith.index_cast %c1_i32 : i32 to index
    %c0_106 = arith.constant 0 : index
    %c0_107 = arith.constant 0 : index
    %304 = vector.load %arg17[%303, %c0_106, %c0_107] : memref<2x1x32xf32, #tpu.memory_space<vmem>>, vector<1x1x32xf32>
    %305 = vector.shape_cast %304 : vector<1x1x32xf32> to vector<1x32xf32>
    %306 = vector.broadcast %305 : vector<1x32xf32> to vector<16x32xf32>
    %307 = arith.addf %302, %306 : vector<16x32xf32>
    %308 = arith.addf %274, %307 : vector<16x32xf32>
    %309 = arith.index_cast %c1_i32 : i32 to index
    %c0_108 = arith.constant 0 : index
    %c0_109 = arith.constant 0 : index
    %310 = vector.load %arg18[%309, %c0_108, %c0_109] : memref<2x1x32xf32, #tpu.memory_space<vmem>>, vector<1x1x32xf32>
    %311 = vector.shape_cast %310 : vector<1x1x32xf32> to vector<1x32xf32>
    %312 = arith.index_cast %c1_i32 : i32 to index
    %c0_110 = arith.constant 0 : index
    %c0_111 = arith.constant 0 : index
    %313 = vector.load %arg19[%312, %c0_110, %c0_111] : memref<2x1x32xf32, #tpu.memory_space<vmem>>, vector<1x1x32xf32>
    %314 = vector.shape_cast %313 : vector<1x1x32xf32> to vector<1x32xf32>
    %cst_112 = arith.constant dense<0.000000e+00> : vector<16xf32>
    %315 = vector.multi_reduction <add>, %308, %cst_112 [1] : vector<16x32xf32> to vector<16xf32>
    %316 = vector.shape_cast %315 : vector<16xf32> to vector<16x1xf32>
    %cst_113 = arith.constant 3.200000e+01 : f32
    %317 = vector.broadcast %cst_113 : f32 to vector<16x1xf32>
    %318 = arith.divf %316, %317 : vector<16x1xf32>
    %319 = vector.broadcast %318 : vector<16x1xf32> to vector<16x32xf32>
    %320 = arith.subf %308, %319 : vector<16x32xf32>
    %321 = arith.mulf %320, %320 : vector<16x32xf32>
    %cst_114 = arith.constant dense<0.000000e+00> : vector<16xf32>
    %322 = vector.multi_reduction <add>, %321, %cst_114 [1] : vector<16x32xf32> to vector<16xf32>
    %323 = vector.shape_cast %322 : vector<16xf32> to vector<16x1xf32>
    %cst_115 = arith.constant 3.200000e+01 : f32
    %324 = vector.broadcast %cst_115 : f32 to vector<16x1xf32>
    %325 = arith.divf %323, %324 : vector<16x1xf32>
    %326 = vector.broadcast %318 : vector<16x1xf32> to vector<16x32xf32>
    %327 = arith.subf %308, %326 : vector<16x32xf32>
    %cst_116 = arith.constant 9.99999974E-6 : f32
    %328 = vector.broadcast %cst_116 : f32 to vector<16x1xf32>
    %329 = arith.addf %325, %328 : vector<16x1xf32>
    %330 = math.rsqrt %329 : vector<16x1xf32>
    %331 = vector.broadcast %330 : vector<16x1xf32> to vector<16x32xf32>
    %332 = arith.mulf %327, %331 : vector<16x32xf32>
    %333 = vector.broadcast %311 : vector<1x32xf32> to vector<16x32xf32>
    %334 = arith.mulf %332, %333 : vector<16x32xf32>
    %335 = vector.broadcast %314 : vector<1x32xf32> to vector<16x32xf32>
    %336 = arith.addf %334, %335 : vector<16x32xf32>
    %c2_i32 = arith.constant 2 : i32
    %337 = vector.shape_cast %336 : vector<16x32xf32> to vector<2x8x32xf32>
    %338 = vector.extract_strided_slice %337 {offsets = [0, 0, 0], sizes = [2, 1, 32], strides = [1, 1, 1]} : vector<2x8x32xf32> to vector<2x1x32xf32>
    %339 = vector.shape_cast %338 : vector<2x1x32xf32> to vector<2x32xf32>
    %340 = arith.truncf %339 : vector<2x32xf32> to vector<2x32xbf16>
    %c0_117 = arith.constant 0 : index
    %c0_118 = arith.constant 0 : index
    %341 = vector.load %arg20[%c0_117, %c0_118] : memref<32x128xbf16, #tpu.memory_space<vmem>>, vector<32x128xbf16>
    %cst_119 = arith.constant dense<0.000000e+00> : vector<2x128xf32>
    %342 = tpu.matmul %340, %341, %cst_119 {dimension_numbers = #tpu.dot_dimension_numbers<[1], [0], [0], [1], [0, 0, 1, 1], [], []>} : vector<2x32xbf16>, vector<32x128xbf16>, vector<2x128xf32> -> vector<2x128xf32>
    %c0_120 = arith.constant 0 : index
    %c0_121 = arith.constant 0 : index
    %343 = vector.load %arg21[%c0_120, %c0_121] : memref<1x128xf32, #tpu.memory_space<vmem>>, vector<1x128xf32>
    %344 = vector.broadcast %343 : vector<1x128xf32> to vector<2x128xf32>
    %345 = arith.addf %342, %344 : vector<2x128xf32>
    %c0_122 = arith.constant 0 : index
    %c0_123 = arith.constant 0 : index
    %346 = vector.load %arg22[%c0_122, %c0_123] : memref<2x128xf32, #tpu.memory_space<vmem>>, vector<2x128xf32>
    tpu.vector_store %arg22[%c0_122, %c0_123], %345 {strides = array<i32>} : memref<2x128xf32, #tpu.memory_space<vmem>>, vector<2x128xf32>,
    return
  }
}

</mosaic_0001>

<llo_original>
// kernel: rocq_statement_embedder.1
$region0: #{rocq_statement_embedder.1}
  #allocation0 [shape = 'u32[]', space=smem, size = 0x4, offset = 0x4, fixed_abs, tag = 'smem constant byte address 0x4 - core index']
  #allocation1 [shape = 'u32[144,128]{1,0:T(1,128)}', space=vmem, size = 0x12000, scoped, tag = 'internal scratch']
  %s0 = inlined_call_operand.vmem [shape: s32[16,1], index: 0, kind: input, shape index: {}]
  %s1 = inlined_call_operand.vmem [shape: s32[16,1], index: 1, kind: input, shape index: {}]
  %s2 = inlined_call_operand.vmem [shape: f32[2,8], index: 2, kind: input, shape index: {}]
  %s3 = inlined_call_operand.vmem [shape: bf16[128,32], index: 3, kind: input, shape index: {}]
  %s4 = inlined_call_operand.vmem [shape: bf16[16,32], index: 4, kind: input, shape index: {}]
  %s5 = inlined_call_operand.vmem [shape: f32[1,32], index: 5, kind: input, shape index: {}]
  %s6 = inlined_call_operand.vmem [shape: f32[1,32], index: 6, kind: input, shape index: {}]
  %s7 = inlined_call_operand.vmem [shape: f32[1,32], index: 7, kind: input, shape index: {}]
  %s8 = inlined_call_operand.vmem [shape: bf16[2,32,96], index: 8, kind: input, shape index: {}]
  %s9 = inlined_call_operand.vmem [shape: f32[2,1,96], index: 9, kind: input, shape index: {}]
  %s10 = inlined_call_operand.vmem [shape: bf16[2,32,32], index: 10, kind: input, shape index: {}]
  %s11 = inlined_call_operand.vmem [shape: f32[2,1,32], index: 11, kind: input, shape index: {}]
  %s12 = inlined_call_operand.vmem [shape: f32[2,1,32], index: 12, kind: input, shape index: {}]
  %s13 = inlined_call_operand.vmem [shape: f32[2,1,32], index: 13, kind: input, shape index: {}]
  %s14 = inlined_call_operand.vmem [shape: bf16[2,32,64], index: 14, kind: input, shape index: {}]
  %s15 = inlined_call_operand.vmem [shape: f32[2,1,64], index: 15, kind: input, shape index: {}]
  %s16 = inlined_call_operand.vmem [shape: bf16[2,64,32], index: 16, kind: input, shape index: {}]
  %s17 = inlined_call_operand.vmem [shape: f32[2,1,32], index: 17, kind: input, shape index: {}]
  %s18 = inlined_call_operand.vmem [shape: f32[2,1,32], index: 18, kind: input, shape index: {}]
  %s19 = inlined_call_operand.vmem [shape: f32[2,1,32], index: 19, kind: input, shape index: {}]
  %s20 = inlined_call_operand.vmem [shape: bf16[32,128], index: 20, kind: input, shape index: {}]
  %s21 = inlined_call_operand.vmem [shape: f32[1,128], index: 21, kind: input, shape index: {}]
  %s22 = inlined_call_operand.hbm [shape: f32[2,128], index: 22, kind: output, shape index: {}]
  %s23 = sld [smem:[#allocation0]]
  $region98: #{rocq_statement_embedder.1} parent=0
    _
  %s25 = ssub.s32 1, %s23
  %s26 = scalar_select 0, %s25, %s23
  $region1: #{rocq_statement_embedder.1} parent=0
    #allocation2 [shape = 'u8[1024]{0}', space=vmem, size = 0x400, scoped, tag = 'output window, operand 0, single buffered']
    #allocation3 [shape = 's32[1]{0}', space=sflag, size = 0x4, scoped, tag = 'scoped memory for rocq_statement_embedder.1']
    %27 = vsyncpa [#allocation3], 0
    // Predicated region
    $region2: #{rocq_statement_embedder.1} parent=1 // pred_check
      _
    $region3: #{rocq_statement_embedder.1} parent=1 // pred_check_branch
      %29 = sbr.rel (0) target = $region5
    $region4: #{rocq_statement_embedder.1} parent=1 // pred_region
      _
    $region5: #{rocq_statement_embedder.1} parent=1 // pred_fallthru
      _
    // Predicated region
    $region6: #{rocq_statement_embedder.1} parent=1 // pred_check
      _
    $region7: #{rocq_statement_embedder.1} parent=1 // pred_check_branch
      %31 = sbr.rel (0) target = $region9
    $region8: #{rocq_statement_embedder.1} parent=1 // pred_region
      _
    $region9: #{rocq_statement_embedder.1} parent=1 // pred_fallthru
      _
    // Predicated region
    $region10: #{rocq_statement_embedder.1} parent=1 // pred_check
      _
    $region11: #{rocq_statement_embedder.1} parent=1 // pred_check_branch
      %33 = sbr.rel (0) target = $region13
    $region12: #{rocq_statement_embedder.1} parent=1 // pred_region
      _
    $region13: #{rocq_statement_embedder.1} parent=1 // pred_fallthru
      _
    // Predicated region
    $region14: #{rocq_statement_embedder.1} parent=1 // pred_check
      _
    $region15: #{rocq_statement_embedder.1} parent=1 // pred_check_branch
      %35 = sbr.rel (0) target = $region17
    $region16: #{rocq_statement_embedder.1} parent=1 // pred_region
      _
    $region17: #{rocq_statement_embedder.1} parent=1 // pred_fallthru
      _
    // Predicated region
    $region18: #{rocq_statement_embedder.1} parent=1 // pred_check
      _
    $region19: #{rocq_statement_embedder.1} parent=1 // pred_check_branch
      %37 = sbr.rel (0) target = $region21
    $region20: #{rocq_statement_embedder.1} parent=1 // pred_region
      _
    $region21: #{rocq_statement_embedder.1} parent=1 // pred_fallthru
      _
    // Predicated region
    $region22: #{rocq_statement_embedder.1} parent=1 // pred_check
      _
    $region23: #{rocq_statement_embedder.1} parent=1 // pred_check_branch
      %39 = sbr.rel (0) target = $region25
    $region24: #{rocq_statement_embedder.1} parent=1 // pred_region
      _
    $region25: #{rocq_statement_embedder.1} parent=1 // pred_fallthru
      _
    // Predicated region
    $region26: #{rocq_statement_embedder.1} parent=1 // pred_check
      _
    $region27: #{rocq_statement_embedder.1} parent=1 // pred_check_branch
      %41 = sbr.rel (0) target = $region29
    $region28: #{rocq_statement_embedder.1} parent=1 // pred_region
      _
    $region29: #{rocq_statement_embedder.1} parent=1 // pred_fallthru
      _
    // Predicated region
    $region30: #{rocq_statement_embedder.1} parent=1 // pred_check
      _
    $region31: #{rocq_statement_embedder.1} parent=1 // pred_check_branch
      %43 = sbr.rel (0) target = $region33
    $region32: #{rocq_statement_embedder.1} parent=1 // pred_region
      _
    $region33: #{rocq_statement_embedder.1} parent=1 // pred_fallthru
      _
    // Predicated region
    $region34: #{rocq_statement_embedder.1} parent=1 // pred_check
      _
    $region35: #{rocq_statement_embedder.1} parent=1 // pred_check_branch
      %45 = sbr.rel (0) target = $region37
    $region36: #{rocq_statement_embedder.1} parent=1 // pred_region
      _
    $region37: #{rocq_statement_embedder.1} parent=1 // pred_fallthru
      _
    // Predicated region
    $region38: #{rocq_statement_embedder.1} parent=1 // pred_check
      _
    $region39: #{rocq_statement_embedder.1} parent=1 // pred_check_branch
      %47 = sbr.rel (0) target = $region41
    $region40: #{rocq_statement_embedder.1} parent=1 // pred_region
      _
    $region41: #{rocq_statement_embedder.1} parent=1 // pred_fallthru
      _
    // Predicated region
    $region42: #{rocq_statement_embedder.1} parent=1 // pred_check
      _
    $region43: #{rocq_statement_embedder.1} parent=1 // pred_check_branch
      %49 = sbr.rel (0) target = $region45
    $region44: #{rocq_statement_embedder.1} parent=1 // pred_region
      _
    $region45: #{rocq_statement_embedder.1} parent=1 // pred_fallthru
      _
    // Predicated region
    $region46: #{rocq_statement_embedder.1} parent=1 // pred_check
      _
    $region47: #{rocq_statement_embedder.1} parent=1 // pred_check_branch
      %51 = sbr.rel (0) target = $region49
    $region48: #{rocq_statement_embedder.1} parent=1 // pred_region
      _
    $region49: #{rocq_statement_embedder.1} parent=1 // pred_fallthru
      _
    // Predicated region
    $region50: #{rocq_statement_embedder.1} parent=1 // pred_check
      _
    $region51: #{rocq_statement_embedder.1} parent=1 // pred_check_branch
      %53 = sbr.rel (0) target = $region53
    $region52: #{rocq_statement_embedder.1} parent=1 // pred_region
      _
    $region53: #{rocq_statement_embedder.1} parent=1 // pred_fallthru
      _
    // Predicated region
    $region54: #{rocq_statement_embedder.1} parent=1 // pred_check
      _
    $region55: #{rocq_statement_embedder.1} parent=1 // pred_check_branch
      %55 = sbr.rel (0) target = $region57
    $region56: #{rocq_statement_embedder.1} parent=1 // pred_region
      _
    $region57: #{rocq_statement_embedder.1} parent=1 // pred_fallthru
      _
    // Predicated region
    $region58: #{rocq_statement_embedder.1} parent=1 // pred_check
      _
    $region59: #{rocq_statement_embedder.1} parent=1 // pred_check_branch
      %57 = sbr.rel (0) target = $region61
    $region60: #{rocq_statement_embedder.1} parent=1 // pred_region
      _
    $region61: #{rocq_statement_embedder.1} parent=1 // pred_fallthru
      _
    // Predicated region
    $region62: #{rocq_statement_embedder.1} parent=1 // pred_check
      _
    $region63: #{rocq_statement_embedder.1} parent=1 // pred_check_branch
      %59 = sbr.rel (0) target = $region65
    $region64: #{rocq_statement_embedder.1} parent=1 // pred_region
      _
    $region65: #{rocq_statement_embedder.1} parent=1 // pred_fallthru
      _
    // Predicated region
    $region66: #{rocq_statement_embedder.1} parent=1 // pred_check
      _
    $region67: #{rocq_statement_embedder.1} parent=1 // pred_check_branch
      %61 = sbr.rel (0) target = $region69
    $region68: #{rocq_statement_embedder.1} parent=1 // pred_region
      _
    $region69: #{rocq_statement_embedder.1} parent=1 // pred_fallthru
      _
    // Predicated region
    $region70: #{rocq_statement_embedder.1} parent=1 // pred_check
      _
    $region71: #{rocq_statement_embedder.1} parent=1 // pred_check_branch
      %63 = sbr.rel (0) target = $region73
    $region72: #{rocq_statement_embedder.1} parent=1 // pred_region
      _
    $region73: #{rocq_statement_embedder.1} parent=1 // pred_fallthru
      _
    // Predicated region
    $region74: #{rocq_statement_embedder.1} parent=1 // pred_check
      _
    $region75: #{rocq_statement_embedder.1} parent=1 // pred_check_branch
      %65 = sbr.rel (0) target = $region77
    $region76: #{rocq_statement_embedder.1} parent=1 // pred_region
      _
    $region77: #{rocq_statement_embedder.1} parent=1 // pred_fallthru
      _
    // Predicated region
    $region78: #{rocq_statement_embedder.1} parent=1 // pred_check
      _
    $region79: #{rocq_statement_embedder.1} parent=1 // pred_check_branch
      %67 = sbr.rel (0) target = $region81
    $region80: #{rocq_statement_embedder.1} parent=1 // pred_region
      _
    $region81: #{rocq_statement_embedder.1} parent=1 // pred_fallthru
      _
    // Predicated region
    $region82: #{rocq_statement_embedder.1} parent=1 // pred_check
      _
    $region83: #{rocq_statement_embedder.1} parent=1 // pred_check_branch
      %69 = sbr.rel (0) target = $region85
    $region84: #{rocq_statement_embedder.1} parent=1 // pred_region
      _
    $region85: #{rocq_statement_embedder.1} parent=1 // pred_fallthru
      _
    // Predicated region
    $region86: #{rocq_statement_embedder.1} parent=1 // pred_check
      _
    $region87: #{rocq_statement_embedder.1} parent=1 // pred_check_branch
      %71 = sbr.rel (0) target = $region89
    $region88: #{rocq_statement_embedder.1} parent=1 // pred_region
      _
    $region89: #{rocq_statement_embedder.1} parent=1 // pred_fallthru
      _
    %v73 = vld [vmem:[%s0] sm:$0xff]
    %v74 = vld [vmem:[%s0 + $0x8] sm:$0xff]
    %v75 = vld [vmem:[%s1] sm:$0xff]
    %v76 = vld [vmem:[%s1 + $0x8] sm:$0xff]
    %v77 = vlaneseq
    %v78 = vand.u32 %v77, 127
    %79 = vset.pattern.permute.xlu0 0
    %80 = vperm.xlu0 %79, %v73
    %v81 = vpop.permute.xlu0 %80
    %82 = vset.pattern.permute.xlu0 0
    %83 = vperm.xlu0 %82, %v74
    %v84 = vpop.permute.xlu0 %83
    %vm85 = vcmp.eq.s32.totalorder %v81, %v78
    %vm86 = vcmp.eq.s32.totalorder %v84, %v78
    %v87 = vsel %vm85, 1, 0
    %v88 = vsel %vm86, 1, 0
    %v89 = vcvt.s32.f32 %v87
    %v90 = vcvt.s32.f32 %v88
    %v91 = vpack.c.bf16 %v90, %v89
    %92 = vset.pattern.permute.xlu0 0
    %93 = vperm.xlu0 %92, %v75
    %v94 = vpop.permute.xlu0 %93
    %95 = vset.pattern.permute.xlu0 0
    %96 = vperm.xlu0 %95, %v76
    %v97 = vpop.permute.xlu0 %96
    %vm98 = vcmp.eq.s32.totalorder %v94, %v78
    %vm99 = vcmp.eq.s32.totalorder %v97, %v78
    %v100 = vsel %vm98, 1, 0
    %v101 = vsel %vm99, 1, 0
    %v102 = vcvt.s32.f32 %v100
    %v103 = vcvt.s32.f32 %v101
    %v104 = vpack.c.bf16 %v103, %v102
    %v105 = vld [vmem:[%s3] sm:$0xf]
    %v106 = vld [vmem:[%s3 + $0x4] sm:$0xf]
    %v107 = vld [vmem:[%s3 + $0x8] sm:$0xf]
    %v108 = vld [vmem:[%s3 + $0xc] sm:$0xf]
    %v109 = vld [vmem:[%s3 + $0x10] sm:$0xf]
    %v110 = vld [vmem:[%s3 + $0x14] sm:$0xf]
    %v111 = vld [vmem:[%s3 + $0x18] sm:$0xf]
    %v112 = vld [vmem:[%s3 + $0x1c] sm:$0xf]
    %v113 = vld [vmem:[%s3 + $0x20] sm:$0xf]
    %v114 = vld [vmem:[%s3 + $0x24] sm:$0xf]
    %v115 = vld [vmem:[%s3 + $0x28] sm:$0xf]
    %v116 = vld [vmem:[%s3 + $0x2c] sm:$0xf]
    %v117 = vld [vmem:[%s3 + $0x30] sm:$0xf]
    %v118 = vld [vmem:[%s3 + $0x34] sm:$0xf]
    %v119 = vld [vmem:[%s3 + $0x38] sm:$0xf]
    %v120 = vld [vmem:[%s3 + $0x3c] sm:$0xf]
    %v121 = vld [vmem:[%s4] sm:$0xf]
    %v122 = vld [vmem:[%s4 + $0x4] sm:$0xf]
    %v125 = vunpack.c.l.b16 %v121
    %v126 = vunpack.c.l.b16 %v122
    %v127 = vpack.c.b16 %v126, %v125
    %vm129 = vcmask 130048
    %v131 = vsel %vm129, %v104, 0
    %133 = vmatprep.subr.bf16.mxu0 0
    %134 = vmatpush1.bf16.msra.mxu0 %v127
    %135 = vmatprep.subr.bf16.mxu0 0
    %136 = vmatpush1.bf16.msra.mxu0 0
    %137 = vmatprep.subr.bf16.mxu0 0
    %138 = vmatpush1.bf16.msra.mxu0 0
    %139 = vmatprep.subr.bf16.mxu0 0
    %140 = vmatpush1.bf16.msra.mxu0 0
    %141 = vmatprep.subr.bf16.mxu0 0
    %142 = vmatpush1.bf16.msra.mxu0 0
    %143 = vmatprep.subr.bf16.mxu0 0
    %144 = vmatpush1.bf16.msra.mxu0 0
    %145 = vmatprep.subr.bf16.mxu0 0
    %146 = vmatpush1.bf16.msra.mxu0 0
    %147 = vmatprep.subr.bf16.mxu0 0
    %148 = vmatpush1.bf16.msra.mxu0 0
    %149 = vmatprep.subr.bf16.mxu0 0
    %150 = vmatpush1.bf16.msra.mxu0 0
    %151 = vmatprep.subr.bf16.mxu0 0
    %152 = vmatpush1.bf16.msra.mxu0 0
    %153 = vmatprep.subr.bf16.mxu0 0
    %154 = vmatpush1.bf16.msra.mxu0 0
    %155 = vmatprep.subr.bf16.mxu0 0
    %156 = vmatpush1.bf16.msra.mxu0 0
    %157 = vmatprep.subr.bf16.mxu0 0
    %158 = vmatpush1.bf16.msra.mxu0 0
    %159 = vmatprep.subr.bf16.mxu0 0
    %160 = vmatpush1.bf16.msra.mxu0 0
    %161 = vmatprep.subr.bf16.mxu0 0
    %162 = vmatpush1.bf16.msra.mxu0 0
    %163 = vmatprep.subr.bf16.mxu0 0
    %164 = vmatpush1.bf16.msra.mxu0 0
    %165 = vmatprep.mubr.bf16.mxu0 0
    %166 = vmatmul.mubr.bf16.gmra.mrb[0].mxu0 %v131
    %v167 = vpop.f32.mrb[0].mxu0
    %v168 = vadd.f32 0.0, %v167
    %v169 = vpop.f32.mrb[0].mxu0
    %v170 = vpop.f32.mrb[0].mxu0
    %v171 = vadd.f32 0.0, %v170
    %v172 = vpop.f32.mrb[0].mxu0
    %173 = vdwg.mxu0
    %v190 = vunpack.c.l.b16 %v105
    %v191 = vunpack.c.l.b16 %v106
    %v192 = vunpack.c.l.b16 %v107
    %v193 = vunpack.c.l.b16 %v108
    %v194 = vunpack.c.l.b16 %v109
    %v195 = vunpack.c.l.b16 %v110
    %v196 = vunpack.c.l.b16 %v111
    %v197 = vunpack.c.l.b16 %v112
    %v198 = vunpack.c.l.b16 %v113
    %v199 = vunpack.c.l.b16 %v114
    %v200 = vunpack.c.l.b16 %v115
    %v201 = vunpack.c.l.b16 %v116
    %v202 = vunpack.c.l.b16 %v117
    %v203 = vunpack.c.l.b16 %v118
    %v204 = vunpack.c.l.b16 %v119
    %v205 = vunpack.c.l.b16 %v120
    %v206 = vpack.c.b16 %v191, %v190
    %v207 = vpack.c.b16 %v193, %v192
    %v208 = vpack.c.b16 %v195, %v194
    %v209 = vpack.c.b16 %v197, %v196
    %v210 = vpack.c.b16 %v199, %v198
    %v211 = vpack.c.b16 %v201, %v200
    %v212 = vpack.c.b16 %v203, %v202
    %v213 = vpack.c.b16 %v205, %v204
    %222 = vmatprep.subr.bf16.mxu0 0
    %223 = vmatpush1.bf16.msra.mxu0 %v206
    %224 = vmatprep.subr.bf16.mxu0 0
    %225 = vmatpush1.bf16.msra.mxu0 %v207
    %226 = vmatprep.subr.bf16.mxu0 0
    %227 = vmatpush1.bf16.msra.mxu0 %v208
    %228 = vmatprep.subr.bf16.mxu0 0
    %229 = vmatpush1.bf16.msra.mxu0 %v209
    %230 = vmatprep.subr.bf16.mxu0 0
    %231 = vmatpush1.bf16.msra.mxu0 %v210
    %232 = vmatprep.subr.bf16.mxu0 0
    %233 = vmatpush1.bf16.msra.mxu0 %v211
    %234 = vmatprep.subr.bf16.mxu0 0
    %235 = vmatpush1.bf16.msra.mxu0 %v212
    %236 = vmatprep.subr.bf16.mxu0 0
    %237 = vmatpush1.bf16.msra.mxu0 %v213
    %238 = vmatprep.subr.bf16.mxu0 0
    %239 = vmatpush1.bf16.msra.mxu0 0
    %240 = vmatprep.subr.bf16.mxu0 0
    %241 = vmatpush1.bf16.msra.mxu0 0
    %242 = vmatprep.subr.bf16.mxu0 0
    %243 = vmatpush1.bf16.msra.mxu0 0
    %244 = vmatprep.subr.bf16.mxu0 0
    %245 = vmatpush1.bf16.msra.mxu0 0
    %246 = vmatprep.subr.bf16.mxu0 0
    %247 = vmatpush1.bf16.msra.mxu0 0
    %248 = vmatprep.subr.bf16.mxu0 0
    %249 = vmatpush1.bf16.msra.mxu0 0
    %250 = vmatprep.subr.bf16.mxu0 0
    %251 = vmatpush1.bf16.msra.mxu0 0
    %252 = vmatprep.subr.bf16.mxu0 0
    %253 = vmatpush1.bf16.msra.mxu0 0
    %254 = vmatprep.mubr.bf16.mxu0 0
    %255 = vmatmul.mubr.bf16.gmra.mrb[0].mxu0 %v91
    %v256 = vpop.f32.mrb[0].mxu0
    %v257 = vadd.f32 %v168, %v256
    %v258 = vpop.f32.mrb[0].mxu0
    %v259 = vpop.f32.mrb[0].mxu0
    %v260 = vadd.f32 %v171, %v259
    %v261 = vpop.f32.mrb[0].mxu0
    %262 = vdwg.mxu0
    %v263 = vld [vmem:[%s5] sm:$0x1]
    %v265 = vlaneseq
    %v266 = vshrl.u32 %v265, 7
    %v267 = vsub.s32 0, %v266
    %v268 = vrot.slane %v263, %v267
    %v270 = vadd.f32 %v257, %v268
    %v271 = vadd.f32 %v260, %v268
    %v272 = vld [vmem:[%s6] sm:$0x1]
    %v273 = vld [vmem:[%s7] sm:$0x1]
    %vm274 = vcmask 261120
    %v275 = vsel %vm274, %v270, 0.0
    %276 = vadd.xlane.f32.xlu0 %v275
    %v277 = vpop.xlane.xlu0 %276
    %v278 = vsel %vm274, %v271, 0.0
    %279 = vadd.xlane.f32.xlu0 %v278
    %v280 = vpop.xlane.xlu0 %279
    %v281 = vrcp.pop 32.0
    %v282 = vmul.f32 %v277, %v281
    %v283 = vmul.f32 %v280, %v281
    %v284 = vsub.f32 %v270, %v282
    %v285 = vsub.f32 %v271, %v283
    %v286 = vmul.f32 %v284, %v284
    %v287 = vmul.f32 %v285, %v285
    %v288 = vsel %vm274, %v286, 0.0
    %289 = vadd.xlane.f32.xlu0 %v288
    %v290 = vpop.xlane.xlu0 %289
    %v291 = vsel %vm274, %v287, 0.0
    %292 = vadd.xlane.f32.xlu0 %v291
    %v293 = vpop.xlane.xlu0 %292
    %v294 = vmul.f32 %v290, %v281
    %v295 = vmul.f32 %v293, %v281
    %v296 = vadd.f32 %v294, 1e-05
    %v297 = vadd.f32 %v295, 1e-05
    %v298 = vrsqrt.pop %v296
    %v299 = vrsqrt.pop %v297
    %v300 = vmul.f32 %v284, %v298
    %v301 = vmul.f32 %v285, %v299
    %v303 = vlaneseq
    %v304 = vshrl.u32 %v303, 7
    %v305 = vsub.s32 0, %v304
    %v306 = vrot.slane %v272, %v305
    %v308 = vmul.f32 %v300, %v306
    %v309 = vmul.f32 %v301, %v306
    %v311 = vlaneseq
    %v312 = vshrl.u32 %v311, 7
    %v313 = vsub.s32 0, %v312
    %v314 = vrot.slane %v273, %v313
    %v316 = vadd.f32 %v308, %v314
    %v317 = vadd.f32 %v309, %v314
    %v318 = vld [vmem:[%s2] sm:$0x3]
    %v319 = vsub.f32 1.0, %v318
    %v320 = vmul.f32 %v319, -1e+09
    %v323 = vunpack.c.l.s4 1966171168
    %v324 = vunpack.c.0.s8 %v323
    %v325 = vlaneseq
    %v326 = vshrl.u32 %v325, 7
    %v327 = vsub.s32 %v324, %v326
    %v328 = vrot.slane %v320, %v327
    %v329 = vcombine.high %v328, %v328
    %v331 = vunpack.c.l.s4 1966171168
    %v332 = vunpack.c.0.s8 %v331
    %v333 = vlaneseq
    %v334 = vshrl.u32 %v333, 7
    %v335 = vsub.s32 %v332, %v334
    %v336 = vrot.slane %v328, %v335
    %v338 = vunpack.c.l.s4 1966171168
    %v339 = vunpack.c.0.s8 %v338
    %v340 = vlaneseq
    %v341 = vshrl.u32 %v340, 7
    %v342 = vsub.s32 %v339, %v341
    %v343 = vrot.slane %v329, %v342
    %v344 = vpack.c.bf16 %v317, %v316
    %v345 = vld [vmem:[%s8] sm:$0xf]
    %v346 = vld [vmem:[%s8 + $0x4] sm:$0xf]
    %v347 = vld [vmem:[%s8 + $0x8] sm:$0xf]
    %v348 = vld [vmem:[%s8 + $0xc] sm:$0xf]
    %v349 = vld [vmem:[%s9] sm:$0x1]
    %v351 = vlaneseq
    %v352 = vshrl.u32 %v351, 7
    %v353 = vsub.s32 0, %v352
    %v354 = vrot.slane %v349, %v353
    %v360 = vunpack.c.l.b16 %v345
    %v361 = vunpack.c.l.b16 %v346
    %v362 = vunpack.c.l.b16 %v347
    %v363 = vunpack.c.l.b16 %v348
    %v364 = vpack.c.b16 %v361, %v360
    %v365 = vpack.c.b16 %v363, %v362
    %v369 = vsel %vm274, %v344, 0
    %371 = vmatprep.subr.bf16.mxu0 0
    %372 = vmatpush1.bf16.msra.mxu0 %v364
    %373 = vmatprep.subr.bf16.mxu0 0
    %374 = vmatpush1.bf16.msra.mxu0 %v365
    %375 = vmatprep.subr.bf16.mxu0 0
    %376 = vmatpush1.bf16.msra.mxu0 0
    %377 = vmatprep.subr.bf16.mxu0 0
    %378 = vmatpush1.bf16.msra.mxu0 0
    %379 = vmatprep.subr.bf16.mxu0 0
    %380 = vmatpush1.bf16.msra.mxu0 0
    %381 = vmatprep.subr.bf16.mxu0 0
    %382 = vmatpush1.bf16.msra.mxu0 0
    %383 = vmatprep.subr.bf16.mxu0 0
    %384 = vmatpush1.bf16.msra.mxu0 0
    %385 = vmatprep.subr.bf16.mxu0 0
    %386 = vmatpush1.bf16.msra.mxu0 0
    %387 = vmatprep.subr.bf16.mxu0 0
    %388 = vmatpush1.bf16.msra.mxu0 0
    %389 = vmatprep.subr.bf16.mxu0 0
    %390 = vmatpush1.bf16.msra.mxu0 0
    %391 = vmatprep.subr.bf16.mxu0 0
    %392 = vmatpush1.bf16.msra.mxu0 0
    %393 = vmatprep.subr.bf16.mxu0 0
    %394 = vmatpush1.bf16.msra.mxu0 0
    %395 = vmatprep.subr.bf16.mxu0 0
    %396 = vmatpush1.bf16.msra.mxu0 0
    %397 = vmatprep.subr.bf16.mxu0 0
    %398 = vmatpush1.bf16.msra.mxu0 0
    %399 = vmatprep.subr.bf16.mxu0 0
    %400 = vmatpush1.bf16.msra.mxu0 0
    %401 = vmatprep.subr.bf16.mxu0 0
    %402 = vmatpush1.bf16.msra.mxu0 0
    %403 = vmatprep.mubr.bf16.mxu0 0
    %404 = vmatmul.mubr.bf16.gmra.mrb[0].mxu0 %v369
    %v405 = vpop.f32.mrb[0].mxu0
    %v406 = vadd.f32 %v354, %v405
    %v407 = vpop.f32.mrb[0].mxu0
    %v408 = vpop.f32.mrb[0].mxu0
    %v409 = vadd.f32 %v354, %v408
    %v410 = vpop.f32.mrb[0].mxu0
    %411 = vdwg.mxu0
    %414 = vrot.lane.b32.xlu0 %v406, 80
    %v415 = vpop.permute.xlu0 %414
    %416 = vrot.lane.b32.xlu0 %v409, 80
    %v417 = vpop.permute.xlu0 %416
    %v418 = vlaneseq
    %v419 = vshrl.u32 %v418, 7
    %v420 = vsub.s32 0, %v419
    %v421 = vrot.slane %v336, %v420
    %v422 = vlaneseq
    %v423 = vshrl.u32 %v422, 7
    %v424 = vsub.s32 0, %v423
    %v425 = vrot.slane %v343, %v424
    %428 = vrot.lane.b32.xlu0 %v406, 112
    %v429 = vpop.permute.xlu0 %428
    %v430 = vsel %vm129, %v406, 0
    %v432 = vsel %vm129, %v429, 0
    %434 = vmatprep.subr.mxu0 0.0
    %435 = vmatpush1.xpose.msra.mxu0 %v432
    %436 = vmatprep.subr.mxu0 0.0
    %437 = vmatpush1.xpose.msra.mxu0 0.0
    %438 = vmatprep.subr.mxu0 0.0
    %439 = vmatpush1.xpose.msra.mxu0 0.0
    %440 = vmatprep.subr.mxu0 0.0
    %441 = vmatpush1.xpose.msra.mxu0 0.0
    %442 = vmatprep.subr.mxu0 0.0
    %443 = vmatpush1.xpose.msra.mxu0 0.0
    %444 = vmatprep.subr.mxu0 0.0
    %445 = vmatpush1.xpose.msra.mxu0 0.0
    %446 = vmatprep.subr.mxu0 0.0
    %447 = vmatpush1.xpose.msra.mxu0 0.0
    %448 = vmatprep.subr.mxu0 0.0
    %449 = vmatpush1.xpose.msra.mxu0 0.0
    %450 = vmatprep.subr.mxu0 0.0
    %451 = vmatpush1.xpose.msra.mxu0 0.0
    %452 = vmatprep.subr.mxu0 0.0
    %453 = vmatpush1.xpose.msra.mxu0 0.0
    %454 = vmatprep.subr.mxu0 0.0
    %455 = vmatpush1.xpose.msra.mxu0 0.0
    %456 = vmatprep.subr.mxu0 0.0
    %457 = vmatpush1.xpose.msra.mxu0 0.0
    %458 = vmatprep.subr.mxu0 0.0
    %459 = vmatpush1.xpose.msra.mxu0 0.0
    %460 = vmatprep.subr.mxu0 0.0
    %461 = vmatpush1.xpose.msra.mxu0 0.0
    %462 = vmatprep.subr.mxu0 0.0
    %463 = vmatpush1.xpose.msra.mxu0 0.0
    %464 = vmatprep.subr.mxu0 0.0
    %465 = vmatpush1.xpose.msra.mxu0 0.0
    %466 = vmatprep.subr.mxu0 0.0
    %467 = vmatpush1.xpose.msra.mxu0 0.0
    %468 = vmatprep.subr.mxu0 0.0
    %469 = vmatpush1.xpose.msra.mxu0 0.0
    %470 = vmatprep.subr.mxu0 0.0
    %471 = vmatpush1.xpose.msra.mxu0 0.0
    %472 = vmatprep.subr.mxu0 0.0
    %473 = vmatpush1.xpose.msra.mxu0 0.0
    %474 = vmatprep.subr.mxu0 0.0
    %475 = vmatpush1.xpose.msra.mxu0 0.0
    %476 = vmatprep.subr.mxu0 0.0
    %477 = vmatpush1.xpose.msra.mxu0 0.0
    %478 = vmatprep.subr.mxu0 0.0
    %479 = vmatpush1.xpose.msra.mxu0 0.0
    %480 = vmatprep.subr.mxu0 0.0
    %481 = vmatpush1.xpose.msra.mxu0 0.0
    %482 = vmatprep.subr.mxu0 0.0
    %483 = vmatpush1.xpose.msra.mxu0 0.0
    %484 = vmatprep.subr.mxu0 0.0
    %485 = vmatpush1.xpose.msra.mxu0 0.0
    %486 = vmatprep.subr.mxu0 0.0
    %487 = vmatpush1.xpose.msra.mxu0 0.0
    %488 = vmatprep.subr.mxu0 0.0
    %489 = vmatpush1.xpose.msra.mxu0 0.0
    %490 = vmatprep.subr.mxu0 0.0
    %491 = vmatpush1.xpose.msra.mxu0 0.0
    %492 = vmatprep.subr.mxu0 0.0
    %493 = vmatpush1.xpose.msra.mxu0 0.0
    %494 = vmatprep.subr.mxu0 0.0
    %495 = vmatpush1.xpose.msra.mxu0 0.0
    %496 = vmatprep.subr.mxu0 0.0
    %497 = vmatpush1.xpose.msra.mxu0 0.0
    %498 = vmatprep.mubr.f32.mxu0 0.0
    %499 = vmatmul.mubr.f32.gmra.mrb[0].mxu0 %v430
    %v500 = vpop.f32.mrb[0].mxu0
    %v501 = vadd.f32 %v421, %v500
    %v502 = vpop.f32.mrb[0].mxu0
    %503 = vdwg.mxu0
    %504 = vrot.lane.b32.xlu0 %v409, 112
    %v505 = vpop.permute.xlu0 %504
    %v506 = vsel %vm129, %v409, 0
    %v508 = vsel %vm129, %v505, 0
    %510 = vmatprep.subr.mxu0 0.0
    %511 = vmatpush1.xpose.msra.mxu0 %v508
    %512 = vmatprep.subr.mxu0 0.0
    %513 = vmatpush1.xpose.msra.mxu0 0.0
    %514 = vmatprep.subr.mxu0 0.0
    %515 = vmatpush1.xpose.msra.mxu0 0.0
    %516 = vmatprep.subr.mxu0 0.0
    %517 = vmatpush1.xpose.msra.mxu0 0.0
    %518 = vmatprep.subr.mxu0 0.0
    %519 = vmatpush1.xpose.msra.mxu0 0.0
    %520 = vmatprep.subr.mxu0 0.0
    %521 = vmatpush1.xpose.msra.mxu0 0.0
    %522 = vmatprep.subr.mxu0 0.0
    %523 = vmatpush1.xpose.msra.mxu0 0.0
    %524 = vmatprep.subr.mxu0 0.0
    %525 = vmatpush1.xpose.msra.mxu0 0.0
    %526 = vmatprep.subr.mxu0 0.0
    %527 = vmatpush1.xpose.msra.mxu0 0.0
    %528 = vmatprep.subr.mxu0 0.0
    %529 = vmatpush1.xpose.msra.mxu0 0.0
    %530 = vmatprep.subr.mxu0 0.0
    %531 = vmatpush1.xpose.msra.mxu0 0.0
    %532 = vmatprep.subr.mxu0 0.0
    %533 = vmatpush1.xpose.msra.mxu0 0.0
    %534 = vmatprep.subr.mxu0 0.0
    %535 = vmatpush1.xpose.msra.mxu0 0.0
    %536 = vmatprep.subr.mxu0 0.0
    %537 = vmatpush1.xpose.msra.mxu0 0.0
    %538 = vmatprep.subr.mxu0 0.0
    %539 = vmatpush1.xpose.msra.mxu0 0.0
    %540 = vmatprep.subr.mxu0 0.0
    %541 = vmatpush1.xpose.msra.mxu0 0.0
    %542 = vmatprep.subr.mxu0 0.0
    %543 = vmatpush1.xpose.msra.mxu0 0.0
    %544 = vmatprep.subr.mxu0 0.0
    %545 = vmatpush1.xpose.msra.mxu0 0.0
    %546 = vmatprep.subr.mxu0 0.0
    %547 = vmatpush1.xpose.msra.mxu0 0.0
    %548 = vmatprep.subr.mxu0 0.0
    %549 = vmatpush1.xpose.msra.mxu0 0.0
    %550 = vmatprep.subr.mxu0 0.0
    %551 = vmatpush1.xpose.msra.mxu0 0.0
    %552 = vmatprep.subr.mxu0 0.0
    %553 = vmatpush1.xpose.msra.mxu0 0.0
    %554 = vmatprep.subr.mxu0 0.0
    %555 = vmatpush1.xpose.msra.mxu0 0.0
    %556 = vmatprep.subr.mxu0 0.0
    %557 = vmatpush1.xpose.msra.mxu0 0.0
    %558 = vmatprep.subr.mxu0 0.0
    %559 = vmatpush1.xpose.msra.mxu0 0.0
    %560 = vmatprep.subr.mxu0 0.0
    %561 = vmatpush1.xpose.msra.mxu0 0.0
    %562 = vmatprep.subr.mxu0 0.0
    %563 = vmatpush1.xpose.msra.mxu0 0.0
    %564 = vmatprep.subr.mxu0 0.0
    %565 = vmatpush1.xpose.msra.mxu0 0.0
    %566 = vmatprep.subr.mxu0 0.0
    %567 = vmatpush1.xpose.msra.mxu0 0.0
    %568 = vmatprep.subr.mxu0 0.0
    %569 = vmatpush1.xpose.msra.mxu0 0.0
    %570 = vmatprep.subr.mxu0 0.0
    %571 = vmatpush1.xpose.msra.mxu0 0.0
    %572 = vmatprep.subr.mxu0 0.0
    %573 = vmatpush1.xpose.msra.mxu0 0.0
    %574 = vmatprep.mubr.f32.mxu0 0.0
    %575 = vmatmul.mubr.f32.gmra.mrb[0].mxu0 %v506
    %v576 = vpop.f32.mrb[0].mxu0
    %v577 = vadd.f32 %v425, %v576
    %v578 = vpop.f32.mrb[0].mxu0
    %579 = vdwg.mxu0
    %580 = vrot.lane.b32.xlu0 %v415, 112
    %v581 = vpop.permute.xlu0 %580
    %v582 = vsel %vm129, %v415, 0
    %v584 = vsel %vm129, %v581, 0
    %586 = vmatprep.subr.mxu0 0.0
    %587 = vmatpush1.xpose.msra.mxu0 %v584
    %588 = vmatprep.subr.mxu0 0.0
    %589 = vmatpush1.xpose.msra.mxu0 0.0
    %590 = vmatprep.subr.mxu0 0.0
    %591 = vmatpush1.xpose.msra.mxu0 0.0
    %592 = vmatprep.subr.mxu0 0.0
    %593 = vmatpush1.xpose.msra.mxu0 0.0
    %594 = vmatprep.subr.mxu0 0.0
    %595 = vmatpush1.xpose.msra.mxu0 0.0
    %596 = vmatprep.subr.mxu0 0.0
    %597 = vmatpush1.xpose.msra.mxu0 0.0
    %598 = vmatprep.subr.mxu0 0.0
    %599 = vmatpush1.xpose.msra.mxu0 0.0
    %600 = vmatprep.subr.mxu0 0.0
    %601 = vmatpush1.xpose.msra.mxu0 0.0
    %602 = vmatprep.subr.mxu0 0.0
    %603 = vmatpush1.xpose.msra.mxu0 0.0
    %604 = vmatprep.subr.mxu0 0.0
    %605 = vmatpush1.xpose.msra.mxu0 0.0
    %606 = vmatprep.subr.mxu0 0.0
    %607 = vmatpush1.xpose.msra.mxu0 0.0
    %608 = vmatprep.subr.mxu0 0.0
    %609 = vmatpush1.xpose.msra.mxu0 0.0
    %610 = vmatprep.subr.mxu0 0.0
    %611 = vmatpush1.xpose.msra.mxu0 0.0
    %612 = vmatprep.subr.mxu0 0.0
    %613 = vmatpush1.xpose.msra.mxu0 0.0
    %614 = vmatprep.subr.mxu0 0.0
    %615 = vmatpush1.xpose.msra.mxu0 0.0
    %616 = vmatprep.subr.mxu0 0.0
    %617 = vmatpush1.xpose.msra.mxu0 0.0
    %618 = vmatprep.subr.mxu0 0.0
    %619 = vmatpush1.xpose.msra.mxu0 0.0
    %620 = vmatprep.subr.mxu0 0.0
    %621 = vmatpush1.xpose.msra.mxu0 0.0
    %622 = vmatprep.subr.mxu0 0.0
    %623 = vmatpush1.xpose.msra.mxu0 0.0
    %624 = vmatprep.subr.mxu0 0.0
    %625 = vmatpush1.xpose.msra.mxu0 0.0
    %626 = vmatprep.subr.mxu0 0.0
    %627 = vmatpush1.xpose.msra.mxu0 0.0
    %628 = vmatprep.subr.mxu0 0.0
    %629 = vmatpush1.xpose.msra.mxu0 0.0
    %630 = vmatprep.subr.mxu0 0.0
    %631 = vmatpush1.xpose.msra.mxu0 0.0
    %632 = vmatprep.subr.mxu0 0.0
    %633 = vmatpush1.xpose.msra.mxu0 0.0
    %634 = vmatprep.subr.mxu0 0.0
    %635 = vmatpush1.xpose.msra.mxu0 0.0
    %636 = vmatprep.subr.mxu0 0.0
    %637 = vmatpush1.xpose.msra.mxu0 0.0
    %638 = vmatprep.subr.mxu0 0.0
    %639 = vmatpush1.xpose.msra.mxu0 0.0
    %640 = vmatprep.subr.mxu0 0.0
    %641 = vmatpush1.xpose.msra.mxu0 0.0
    %642 = vmatprep.subr.mxu0 0.0
    %643 = vmatpush1.xpose.msra.mxu0 0.0
    %644 = vmatprep.subr.mxu0 0.0
    %645 = vmatpush1.xpose.msra.mxu0 0.0
    %646 = vmatprep.subr.mxu0 0.0
    %647 = vmatpush1.xpose.msra.mxu0 0.0
    %648 = vmatprep.subr.mxu0 0.0
    %649 = vmatpush1.xpose.msra.mxu0 0.0
    %650 = vmatprep.mubr.f32.mxu0 0.0
    %651 = vmatmul.mubr.f32.gmra.mrb[0].mxu0 %v582
    %v652 = vpop.f32.mrb[0].mxu0
    %v653 = vadd.f32 %v421, %v652
    %v654 = vpop.f32.mrb[0].mxu0
    %655 = vdwg.mxu0
    %656 = vrot.lane.b32.xlu0 %v417, 112
    %v657 = vpop.permute.xlu0 %656
    %v658 = vsel %vm129, %v417, 0
    %v660 = vsel %vm129, %v657, 0
    %662 = vmatprep.subr.mxu0 0.0
    %663 = vmatpush1.xpose.msra.mxu0 %v660
    %664 = vmatprep.subr.mxu0 0.0
    %665 = vmatpush1.xpose.msra.mxu0 0.0
    %666 = vmatprep.subr.mxu0 0.0
    %667 = vmatpush1.xpose.msra.mxu0 0.0
    %668 = vmatprep.subr.mxu0 0.0
    %669 = vmatpush1.xpose.msra.mxu0 0.0
    %670 = vmatprep.subr.mxu0 0.0
    %671 = vmatpush1.xpose.msra.mxu0 0.0
    %672 = vmatprep.subr.mxu0 0.0
    %673 = vmatpush1.xpose.msra.mxu0 0.0
    %674 = vmatprep.subr.mxu0 0.0
    %675 = vmatpush1.xpose.msra.mxu0 0.0
    %676 = vmatprep.subr.mxu0 0.0
    %677 = vmatpush1.xpose.msra.mxu0 0.0
    %678 = vmatprep.subr.mxu0 0.0
    %679 = vmatpush1.xpose.msra.mxu0 0.0
    %680 = vmatprep.subr.mxu0 0.0
    %681 = vmatpush1.xpose.msra.mxu0 0.0
    %682 = vmatprep.subr.mxu0 0.0
    %683 = vmatpush1.xpose.msra.mxu0 0.0
    %684 = vmatprep.subr.mxu0 0.0
    %685 = vmatpush1.xpose.msra.mxu0 0.0
    %686 = vmatprep.subr.mxu0 0.0
    %687 = vmatpush1.xpose.msra.mxu0 0.0
    %688 = vmatprep.subr.mxu0 0.0
    %689 = vmatpush1.xpose.msra.mxu0 0.0
    %690 = vmatprep.subr.mxu0 0.0
    %691 = vmatpush1.xpose.msra.mxu0 0.0
    %692 = vmatprep.subr.mxu0 0.0
    %693 = vmatpush1.xpose.msra.mxu0 0.0
    %694 = vmatprep.subr.mxu0 0.0
    %695 = vmatpush1.xpose.msra.mxu0 0.0
    %696 = vmatprep.subr.mxu0 0.0
    %697 = vmatpush1.xpose.msra.mxu0 0.0
    %698 = vmatprep.subr.mxu0 0.0
    %699 = vmatpush1.xpose.msra.mxu0 0.0
    %700 = vmatprep.subr.mxu0 0.0
    %701 = vmatpush1.xpose.msra.mxu0 0.0
    %702 = vmatprep.subr.mxu0 0.0
    %703 = vmatpush1.xpose.msra.mxu0 0.0
    %704 = vmatprep.subr.mxu0 0.0
    %705 = vmatpush1.xpose.msra.mxu0 0.0
    %706 = vmatprep.subr.mxu0 0.0
    %707 = vmatpush1.xpose.msra.mxu0 0.0
    %708 = vmatprep.subr.mxu0 0.0
    %709 = vmatpush1.xpose.msra.mxu0 0.0
    %710 = vmatprep.subr.mxu0 0.0
    %711 = vmatpush1.xpose.msra.mxu0 0.0
    %712 = vmatprep.subr.mxu0 0.0
    %713 = vmatpush1.xpose.msra.mxu0 0.0
    %714 = vmatprep.subr.mxu0 0.0
    %715 = vmatpush1.xpose.msra.mxu0 0.0
    %716 = vmatprep.subr.mxu0 0.0
    %717 = vmatpush1.xpose.msra.mxu0 0.0
    %718 = vmatprep.subr.mxu0 0.0
    %719 = vmatpush1.xpose.msra.mxu0 0.0
    %720 = vmatprep.subr.mxu0 0.0
    %721 = vmatpush1.xpose.msra.mxu0 0.0
    %722 = vmatprep.subr.mxu0 0.0
    %723 = vmatpush1.xpose.msra.mxu0 0.0
    %724 = vmatprep.subr.mxu0 0.0
    %725 = vmatpush1.xpose.msra.mxu0 0.0
    %726 = vmatprep.mubr.f32.mxu0 0.0
    %727 = vmatmul.mubr.f32.gmra.mrb[0].mxu0 %v658
    %v728 = vpop.f32.mrb[0].mxu0
    %v729 = vadd.f32 %v425, %v728
    %v730 = vpop.f32.mrb[0].mxu0
    %731 = vdwg.mxu0
    %vm732 = vcmask 64512
    %v733 = vsel %vm732, %v501, -inf
    %734 = vmax.xlane.f32.xlu0 %v733
    %v735 = vpop.xlane.xlu0 %734
    %v736 = vsel %vm732, %v577, -inf
    %737 = vmax.xlane.f32.xlu0 %v736
    %v738 = vpop.xlane.xlu0 %737
    %v739 = vsel %vm732, %v653, -inf
    %740 = vmax.xlane.f32.xlu0 %v739
    %v741 = vpop.xlane.xlu0 %740
    %v742 = vsel %vm732, %v729, -inf
    %743 = vmax.xlane.f32.xlu0 %v742
    %v744 = vpop.xlane.xlu0 %743
    %v745 = vsub.f32 %v501, %v735
    %v746 = vsub.f32 %v577, %v738
    %v747 = vsub.f32 %v653, %v741
    %v748 = vsub.f32 %v729, %v744
    %v749 = vmul.f32 %v745, 1.442695
    %v750 = vpow.pop %v749
    %v751 = vmul.f32 %v746, 1.442695
    %v752 = vpow.pop %v751
    %v753 = vmul.f32 %v747, 1.442695
    %v754 = vpow.pop %v753
    %v755 = vmul.f32 %v748, 1.442695
    %v756 = vpow.pop %v755
    %v757 = vsel %vm732, %v750, 0.0
    %758 = vadd.xlane.f32.xlu0 %v757
    %v759 = vpop.xlane.xlu0 %758
    %v760 = vsel %vm732, %v752, 0.0
    %761 = vadd.xlane.f32.xlu0 %v760
    %v762 = vpop.xlane.xlu0 %761
    %v763 = vsel %vm732, %v754, 0.0
    %764 = vadd.xlane.f32.xlu0 %v763
    %v765 = vpop.xlane.xlu0 %764
    %v766 = vsel %vm732, %v756, 0.0
    %767 = vadd.xlane.f32.xlu0 %v766
    %v768 = vpop.xlane.xlu0 %767
    %v769 = vrcp.pop %v759
    %v770 = vrcp.pop %v762
    %v771 = vrcp.pop %v765
    %v772 = vrcp.pop %v768
    %v773 = vmul.f32 %v750, %v769
    %v774 = vmul.f32 %v752, %v770
    %v775 = vmul.f32 %v754, %v771
    %v776 = vmul.f32 %v756, %v772
    %777 = vrot.lane.b32.xlu0 %v406, 96
    %v778 = vpop.permute.xlu0 %777
    %v781 = vsel %vm732, %v773, 0
    %783 = vmatprep.subr.mxu0 0.0
    %784 = vmatpush1.msra.mxu0 %v778
    %785 = vmatprep.subr.mxu0 0.0
    %786 = vmatpush1.msra.mxu0 0.0
    %787 = vmatprep.subr.mxu0 0.0
    %788 = vmatpush1.msra.mxu0 0.0
    %789 = vmatprep.subr.mxu0 0.0
    %790 = vmatpush1.msra.mxu0 0.0
    %791 = vmatprep.subr.mxu0 0.0
    %792 = vmatpush1.msra.mxu0 0.0
    %793 = vmatprep.subr.mxu0 0.0
    %794 = vmatpush1.msra.mxu0 0.0
    %795 = vmatprep.subr.mxu0 0.0
    %796 = vmatpush1.msra.mxu0 0.0
    %797 = vmatprep.subr.mxu0 0.0
    %798 = vmatpush1.msra.mxu0 0.0
    %799 = vmatprep.subr.mxu0 0.0
    %800 = vmatpush1.msra.mxu0 0.0
    %801 = vmatprep.subr.mxu0 0.0
    %802 = vmatpush1.msra.mxu0 0.0
    %803 = vmatprep.subr.mxu0 0.0
    %804 = vmatpush1.msra.mxu0 0.0
    %805 = vmatprep.subr.mxu0 0.0
    %806 = vmatpush1.msra.mxu0 0.0
    %807 = vmatprep.subr.mxu0 0.0
    %808 = vmatpush1.msra.mxu0 0.0
    %809 = vmatprep.subr.mxu0 0.0
    %810 = vmatpush1.msra.mxu0 0.0
    %811 = vmatprep.subr.mxu0 0.0
    %812 = vmatpush1.msra.mxu0 0.0
    %813 = vmatprep.subr.mxu0 0.0
    %814 = vmatpush1.msra.mxu0 0.0
    %815 = vmatprep.subr.mxu0 0.0
    %816 = vmatpush1.msra.mxu0 0.0
    %817 = vmatprep.subr.mxu0 0.0
    %818 = vmatpush1.msra.mxu0 0.0
    %819 = vmatprep.subr.mxu0 0.0
    %820 = vmatpush1.msra.mxu0 0.0
    %821 = vmatprep.subr.mxu0 0.0
    %822 = vmatpush1.msra.mxu0 0.0
    %823 = vmatprep.subr.mxu0 0.0
    %824 = vmatpush1.msra.mxu0 0.0
    %825 = vmatprep.subr.mxu0 0.0
    %826 = vmatpush1.msra.mxu0 0.0
    %827 = vmatprep.subr.mxu0 0.0
    %828 = vmatpush1.msra.mxu0 0.0
    %829 = vmatprep.subr.mxu0 0.0
    %830 = vmatpush1.msra.mxu0 0.0
    %831 = vmatprep.subr.mxu0 0.0
    %832 = vmatpush1.msra.mxu0 0.0
    %833 = vmatprep.subr.mxu0 0.0
    %834 = vmatpush1.msra.mxu0 0.0
    %835 = vmatprep.subr.mxu0 0.0
    %836 = vmatpush1.msra.mxu0 0.0
    %837 = vmatprep.subr.mxu0 0.0
    %838 = vmatpush1.msra.mxu0 0.0
    %839 = vmatprep.subr.mxu0 0.0
    %840 = vmatpush1.msra.mxu0 0.0
    %841 = vmatprep.subr.mxu0 0.0
    %842 = vmatpush1.msra.mxu0 0.0
    %843 = vmatprep.subr.mxu0 0.0
    %844 = vmatpush1.msra.mxu0 0.0
    %845 = vmatprep.subr.mxu0 0.0
    %846 = vmatpush1.msra.mxu0 0.0
    %847 = vmatprep.mubr.f32.mxu0 0.0
    %848 = vmatmul.mubr.f32.gmra.mrb[0].mxu0 %v781
    %v849 = vpop.f32.mrb[0].mxu0
    %v850 = vadd.f32 0.0, %v849
    %v851 = vpop.f32.mrb[0].mxu0
    %852 = vdwg.mxu0
    %853 = vrot.lane.b32.xlu0 %v409, 96
    %v854 = vpop.permute.xlu0 %853
    %v857 = vsel %vm732, %v774, 0
    %859 = vmatprep.subr.mxu0 0.0
    %860 = vmatpush1.msra.mxu0 %v854
    %861 = vmatprep.subr.mxu0 0.0
    %862 = vmatpush1.msra.mxu0 0.0
    %863 = vmatprep.subr.mxu0 0.0
    %864 = vmatpush1.msra.mxu0 0.0
    %865 = vmatprep.subr.mxu0 0.0
    %866 = vmatpush1.msra.mxu0 0.0
    %867 = vmatprep.subr.mxu0 0.0
    %868 = vmatpush1.msra.mxu0 0.0
    %869 = vmatprep.subr.mxu0 0.0
    %870 = vmatpush1.msra.mxu0 0.0
    %871 = vmatprep.subr.mxu0 0.0
    %872 = vmatpush1.msra.mxu0 0.0
    %873 = vmatprep.subr.mxu0 0.0
    %874 = vmatpush1.msra.mxu0 0.0
    %875 = vmatprep.subr.mxu0 0.0
    %876 = vmatpush1.msra.mxu0 0.0
    %877 = vmatprep.subr.mxu0 0.0
    %878 = vmatpush1.msra.mxu0 0.0
    %879 = vmatprep.subr.mxu0 0.0
    %880 = vmatpush1.msra.mxu0 0.0
    %881 = vmatprep.subr.mxu0 0.0
    %882 = vmatpush1.msra.mxu0 0.0
    %883 = vmatprep.subr.mxu0 0.0
    %884 = vmatpush1.msra.mxu0 0.0
    %885 = vmatprep.subr.mxu0 0.0
    %886 = vmatpush1.msra.mxu0 0.0
    %887 = vmatprep.subr.mxu0 0.0
    %888 = vmatpush1.msra.mxu0 0.0
    %889 = vmatprep.subr.mxu0 0.0
    %890 = vmatpush1.msra.mxu0 0.0
    %891 = vmatprep.subr.mxu0 0.0
    %892 = vmatpush1.msra.mxu0 0.0
    %893 = vmatprep.subr.mxu0 0.0
    %894 = vmatpush1.msra.mxu0 0.0
    %895 = vmatprep.subr.mxu0 0.0
    %896 = vmatpush1.msra.mxu0 0.0
    %897 = vmatprep.subr.mxu0 0.0
    %898 = vmatpush1.msra.mxu0 0.0
    %899 = vmatprep.subr.mxu0 0.0
    %900 = vmatpush1.msra.mxu0 0.0
    %901 = vmatprep.subr.mxu0 0.0
    %902 = vmatpush1.msra.mxu0 0.0
    %903 = vmatprep.subr.mxu0 0.0
    %904 = vmatpush1.msra.mxu0 0.0
    %905 = vmatprep.subr.mxu0 0.0
    %906 = vmatpush1.msra.mxu0 0.0
    %907 = vmatprep.subr.mxu0 0.0
    %908 = vmatpush1.msra.mxu0 0.0
    %909 = vmatprep.subr.mxu0 0.0
    %910 = vmatpush1.msra.mxu0 0.0
    %911 = vmatprep.subr.mxu0 0.0
    %912 = vmatpush1.msra.mxu0 0.0
    %913 = vmatprep.subr.mxu0 0.0
    %914 = vmatpush1.msra.mxu0 0.0
    %915 = vmatprep.subr.mxu0 0.0
    %916 = vmatpush1.msra.mxu0 0.0
    %917 = vmatprep.subr.mxu0 0.0
    %918 = vmatpush1.msra.mxu0 0.0
    %919 = vmatprep.subr.mxu0 0.0
    %920 = vmatpush1.msra.mxu0 0.0
    %921 = vmatprep.subr.mxu0 0.0
    %922 = vmatpush1.msra.mxu0 0.0
    %923 = vmatprep.mubr.f32.mxu0 0.0
    %924 = vmatmul.mubr.f32.gmra.mrb[0].mxu0 %v857
    %v925 = vpop.f32.mrb[0].mxu0
    %v926 = vadd.f32 0.0, %v925
    %v927 = vpop.f32.mrb[0].mxu0
    %928 = vdwg.mxu0
    %929 = vrot.lane.b32.xlu0 %v415, 96
    %v930 = vpop.permute.xlu0 %929
    %v933 = vsel %vm732, %v775, 0
    %935 = vmatprep.subr.mxu0 0.0
    %936 = vmatpush1.msra.mxu0 %v930
    %937 = vmatprep.subr.mxu0 0.0
    %938 = vmatpush1.msra.mxu0 0.0
    %939 = vmatprep.subr.mxu0 0.0
    %940 = vmatpush1.msra.mxu0 0.0
    %941 = vmatprep.subr.mxu0 0.0
    %942 = vmatpush1.msra.mxu0 0.0
    %943 = vmatprep.subr.mxu0 0.0
    %944 = vmatpush1.msra.mxu0 0.0
    %945 = vmatprep.subr.mxu0 0.0
    %946 = vmatpush1.msra.mxu0 0.0
    %947 = vmatprep.subr.mxu0 0.0
    %948 = vmatpush1.msra.mxu0 0.0
    %949 = vmatprep.subr.mxu0 0.0
    %950 = vmatpush1.msra.mxu0 0.0
    %951 = vmatprep.subr.mxu0 0.0
    %952 = vmatpush1.msra.mxu0 0.0
    %953 = vmatprep.subr.mxu0 0.0
    %954 = vmatpush1.msra.mxu0 0.0
    %955 = vmatprep.subr.mxu0 0.0
    %956 = vmatpush1.msra.mxu0 0.0
    %957 = vmatprep.subr.mxu0 0.0
    %958 = vmatpush1.msra.mxu0 0.0
    %959 = vmatprep.subr.mxu0 0.0
    %960 = vmatpush1.msra.mxu0 0.0
    %961 = vmatprep.subr.mxu0 0.0
    %962 = vmatpush1.msra.mxu0 0.0
    %963 = vmatprep.subr.mxu0 0.0
    %964 = vmatpush1.msra.mxu0 0.0
    %965 = vmatprep.subr.mxu0 0.0
    %966 = vmatpush1.msra.mxu0 0.0
    %967 = vmatprep.subr.mxu0 0.0
    %968 = vmatpush1.msra.mxu0 0.0
    %969 = vmatprep.subr.mxu0 0.0
    %970 = vmatpush1.msra.mxu0 0.0
    %971 = vmatprep.subr.mxu0 0.0
    %972 = vmatpush1.msra.mxu0 0.0
    %973 = vmatprep.subr.mxu0 0.0
    %974 = vmatpush1.msra.mxu0 0.0
    %975 = vmatprep.subr.mxu0 0.0
    %976 = vmatpush1.msra.mxu0 0.0
    %977 = vmatprep.subr.mxu0 0.0
    %978 = vmatpush1.msra.mxu0 0.0
    %979 = vmatprep.subr.mxu0 0.0
    %980 = vmatpush1.msra.mxu0 0.0
    %981 = vmatprep.subr.mxu0 0.0
    %982 = vmatpush1.msra.mxu0 0.0
    %983 = vmatprep.subr.mxu0 0.0
    %984 = vmatpush1.msra.mxu0 0.0
    %985 = vmatprep.subr.mxu0 0.0
    %986 = vmatpush1.msra.mxu0 0.0
    %987 = vmatprep.subr.mxu0 0.0
    %988 = vmatpush1.msra.mxu0 0.0
    %989 = vmatprep.subr.mxu0 0.0
    %990 = vmatpush1.msra.mxu0 0.0
    %991 = vmatprep.subr.mxu0 0.0
    %992 = vmatpush1.msra.mxu0 0.0
    %993 = vmatprep.subr.mxu0 0.0
    %994 = vmatpush1.msra.mxu0 0.0
    %995 = vmatprep.subr.mxu0 0.0
    %996 = vmatpush1.msra.mxu0 0.0
    %997 = vmatprep.subr.mxu0 0.0
    %998 = vmatpush1.msra.mxu0 0.0
    %999 = vmatprep.mubr.f32.mxu0 0.0
    %1000 = vmatmul.mubr.f32.gmra.mrb[0].mxu0 %v933
    %v1001 = vpop.f32.mrb[0].mxu0
    %v1002 = vadd.f32 0.0, %v1001
    %v1003 = vpop.f32.mrb[0].mxu0
    %1004 = vdwg.mxu0
    %1005 = vrot.lane.b32.xlu0 %v417, 96
    %v1006 = vpop.permute.xlu0 %1005
    %v1009 = vsel %vm732, %v776, 0
    %1011 = vmatprep.subr.mxu0 0.0
    %1012 = vmatpush1.msra.mxu0 %v1006
    %1013 = vmatprep.subr.mxu0 0.0
    %1014 = vmatpush1.msra.mxu0 0.0
    %1015 = vmatprep.subr.mxu0 0.0
    %1016 = vmatpush1.msra.mxu0 0.0
    %1017 = vmatprep.subr.mxu0 0.0
    %1018 = vmatpush1.msra.mxu0 0.0
    %1019 = vmatprep.subr.mxu0 0.0
    %1020 = vmatpush1.msra.mxu0 0.0
    %1021 = vmatprep.subr.mxu0 0.0
    %1022 = vmatpush1.msra.mxu0 0.0
    %1023 = vmatprep.subr.mxu0 0.0
    %1024 = vmatpush1.msra.mxu0 0.0
    %1025 = vmatprep.subr.mxu0 0.0
    %1026 = vmatpush1.msra.mxu0 0.0
    %1027 = vmatprep.subr.mxu0 0.0
    %1028 = vmatpush1.msra.mxu0 0.0
    %1029 = vmatprep.subr.mxu0 0.0
    %1030 = vmatpush1.msra.mxu0 0.0
    %1031 = vmatprep.subr.mxu0 0.0
    %1032 = vmatpush1.msra.mxu0 0.0
    %1033 = vmatprep.subr.mxu0 0.0
    %1034 = vmatpush1.msra.mxu0 0.0
    %1035 = vmatprep.subr.mxu0 0.0
    %1036 = vmatpush1.msra.mxu0 0.0
    %1037 = vmatprep.subr.mxu0 0.0
    %1038 = vmatpush1.msra.mxu0 0.0
    %1039 = vmatprep.subr.mxu0 0.0
    %1040 = vmatpush1.msra.mxu0 0.0
    %1041 = vmatprep.subr.mxu0 0.0
    %1042 = vmatpush1.msra.mxu0 0.0
    %1043 = vmatprep.subr.mxu0 0.0
    %1044 = vmatpush1.msra.mxu0 0.0
    %1045 = vmatprep.subr.mxu0 0.0
    %1046 = vmatpush1.msra.mxu0 0.0
    %1047 = vmatprep.subr.mxu0 0.0
    %1048 = vmatpush1.msra.mxu0 0.0
    %1049 = vmatprep.subr.mxu0 0.0
    %1050 = vmatpush1.msra.mxu0 0.0
    %1051 = vmatprep.subr.mxu0 0.0
    %1052 = vmatpush1.msra.mxu0 0.0
    %1053 = vmatprep.subr.mxu0 0.0
    %1054 = vmatpush1.msra.mxu0 0.0
    %1055 = vmatprep.subr.mxu0 0.0
    %1056 = vmatpush1.msra.mxu0 0.0
    %1057 = vmatprep.subr.mxu0 0.0
    %1058 = vmatpush1.msra.mxu0 0.0
    %1059 = vmatprep.subr.mxu0 0.0
    %1060 = vmatpush1.msra.mxu0 0.0
    %1061 = vmatprep.subr.mxu0 0.0
    %1062 = vmatpush1.msra.mxu0 0.0
    %1063 = vmatprep.subr.mxu0 0.0
    %1064 = vmatpush1.msra.mxu0 0.0
    %1065 = vmatprep.subr.mxu0 0.0
    %1066 = vmatpush1.msra.mxu0 0.0
    %1067 = vmatprep.subr.mxu0 0.0
    %1068 = vmatpush1.msra.mxu0 0.0
    %1069 = vmatprep.subr.mxu0 0.0
    %1070 = vmatpush1.msra.mxu0 0.0
    %1071 = vmatprep.subr.mxu0 0.0
    %1072 = vmatpush1.msra.mxu0 0.0
    %1073 = vmatprep.subr.mxu0 0.0
    %1074 = vmatpush1.msra.mxu0 0.0
    %1075 = vmatprep.mubr.f32.mxu0 0.0
    %1076 = vmatmul.mubr.f32.gmra.mrb[0].mxu0 %v1009
    %v1077 = vpop.f32.mrb[0].mxu0
    %v1078 = vadd.f32 0.0, %v1077
    %v1079 = vpop.f32.mrb[0].mxu0
    %1080 = vdwg.mxu0
    %v1081 = vld [vmem:[%s10] sm:$0xf]
    %v1082 = vld [vmem:[%s10 + $0x4] sm:$0xf]
    %v1083 = vld [vmem:[%s10 + $0x8] sm:$0xf]
    %v1084 = vld [vmem:[%s10 + $0xc] sm:$0xf]
    %v1085 = vld [vmem:[%s11] sm:$0x1]
    %v1086 = vpack.c.bf16 %v926, %v850
    %v1089 = vunpack.c.l.b16 %v1081
    %v1090 = vunpack.c.l.b16 %v1082
    %v1091 = vpack.c.b16 %v1090, %v1089
    %v1094 = vsel %vm129, %v1086, 0
    %1096 = vmatprep.subr.bf16.mxu0 0
    %1097 = vmatpush1.bf16.msra.mxu0 %v1091
    %1098 = vmatprep.subr.bf16.mxu0 0
    %1099 = vmatpush1.bf16.msra.mxu0 0
    %1100 = vmatprep.subr.bf16.mxu0 0
    %1101 = vmatpush1.bf16.msra.mxu0 0
    %1102 = vmatprep.subr.bf16.mxu0 0
    %1103 = vmatpush1.bf16.msra.mxu0 0
    %1104 = vmatprep.subr.bf16.mxu0 0
    %1105 = vmatpush1.bf16.msra.mxu0 0
    %1106 = vmatprep.subr.bf16.mxu0 0
    %1107 = vmatpush1.bf16.msra.mxu0 0
    %1108 = vmatprep.subr.bf16.mxu0 0
    %1109 = vmatpush1.bf16.msra.mxu0 0
    %1110 = vmatprep.subr.bf16.mxu0 0
    %1111 = vmatpush1.bf16.msra.mxu0 0
    %1112 = vmatprep.subr.bf16.mxu0 0
    %1113 = vmatpush1.bf16.msra.mxu0 0
    %1114 = vmatprep.subr.bf16.mxu0 0
    %1115 = vmatpush1.bf16.msra.mxu0 0
    %1116 = vmatprep.subr.bf16.mxu0 0
    %1117 = vmatpush1.bf16.msra.mxu0 0
    %1118 = vmatprep.subr.bf16.mxu0 0
    %1119 = vmatpush1.bf16.msra.mxu0 0
    %1120 = vmatprep.subr.bf16.mxu0 0
    %1121 = vmatpush1.bf16.msra.mxu0 0
    %1122 = vmatprep.subr.bf16.mxu0 0
    %1123 = vmatpush1.bf16.msra.mxu0 0
    %1124 = vmatprep.subr.bf16.mxu0 0
    %1125 = vmatpush1.bf16.msra.mxu0 0
    %1126 = vmatprep.subr.bf16.mxu0 0
    %1127 = vmatpush1.bf16.msra.mxu0 0
    %1128 = vmatprep.mubr.bf16.mxu0 0
    %1129 = vmatmul.mubr.bf16.gmra.mrb[0].mxu0 %v1094
    %v1130 = vpop.f32.mrb[0].mxu0
    %v1131 = vadd.f32 0.0, %v1130
    %v1132 = vpop.f32.mrb[0].mxu0
    %v1133 = vpop.f32.mrb[0].mxu0
    %v1134 = vadd.f32 0.0, %v1133
    %v1135 = vpop.f32.mrb[0].mxu0
    %1136 = vdwg.mxu0
    %v1138 = vlaneseq
    %v1139 = vshrl.u32 %v1138, 7
    %v1140 = vsub.s32 0, %v1139
    %v1141 = vrot.slane %v1085, %v1140
    %v1143 = vadd.f32 %v1141, %v1131
    %v1144 = vadd.f32 %v1141, %v1134
    %v1145 = vpack.c.bf16 %v1078, %v1002
    %v1148 = vunpack.c.l.b16 %v1083
    %v1149 = vunpack.c.l.b16 %v1084
    %v1150 = vpack.c.b16 %v1149, %v1148
    %v1153 = vsel %vm129, %v1145, 0
    %1155 = vmatprep.subr.bf16.mxu0 0
    %1156 = vmatpush1.bf16.msra.mxu0 %v1150
    %1157 = vmatprep.subr.bf16.mxu0 0
    %1158 = vmatpush1.bf16.msra.mxu0 0
    %1159 = vmatprep.subr.bf16.mxu0 0
    %1160 = vmatpush1.bf16.msra.mxu0 0
    %1161 = vmatprep.subr.bf16.mxu0 0
    %1162 = vmatpush1.bf16.msra.mxu0 0
    %1163 = vmatprep.subr.bf16.mxu0 0
    %1164 = vmatpush1.bf16.msra.mxu0 0
    %1165 = vmatprep.subr.bf16.mxu0 0
    %1166 = vmatpush1.bf16.msra.mxu0 0
    %1167 = vmatprep.subr.bf16.mxu0 0
    %1168 = vmatpush1.bf16.msra.mxu0 0
    %1169 = vmatprep.subr.bf16.mxu0 0
    %1170 = vmatpush1.bf16.msra.mxu0 0
    %1171 = vmatprep.subr.bf16.mxu0 0
    %1172 = vmatpush1.bf16.msra.mxu0 0
    %1173 = vmatprep.subr.bf16.mxu0 0
    %1174 = vmatpush1.bf16.msra.mxu0 0
    %1175 = vmatprep.subr.bf16.mxu0 0
    %1176 = vmatpush1.bf16.msra.mxu0 0
    %1177 = vmatprep.subr.bf16.mxu0 0
    %1178 = vmatpush1.bf16.msra.mxu0 0
    %1179 = vmatprep.subr.bf16.mxu0 0
    %1180 = vmatpush1.bf16.msra.mxu0 0
    %1181 = vmatprep.subr.bf16.mxu0 0
    %1182 = vmatpush1.bf16.msra.mxu0 0
    %1183 = vmatprep.subr.bf16.mxu0 0
    %1184 = vmatpush1.bf16.msra.mxu0 0
    %1185 = vmatprep.subr.bf16.mxu0 0
    %1186 = vmatpush1.bf16.msra.mxu0 0
    %1187 = vmatprep.mubr.bf16.mxu0 0
    %1188 = vmatmul.mubr.bf16.gmra.mrb[0].mxu0 %v1153
    %v1189 = vpop.f32.mrb[0].mxu0
    %v1190 = vadd.f32 0.0, %v1189
    %v1191 = vpop.f32.mrb[0].mxu0
    %v1192 = vpop.f32.mrb[0].mxu0
    %v1193 = vadd.f32 0.0, %v1192
    %v1194 = vpop.f32.mrb[0].mxu0
    %1195 = vdwg.mxu0
    %v1196 = vadd.f32 %v1143, %v1190
    %v1197 = vadd.f32 %v1144, %v1193
    %v1198 = vadd.f32 %v316, %v1196
    %v1199 = vadd.f32 %v317, %v1197
    %v1200 = vld [vmem:[%s12] sm:$0x1]
    %v1201 = vld [vmem:[%s13] sm:$0x1]
    %v1202 = vsel %vm274, %v1198, 0.0
    %1203 = vadd.xlane.f32.xlu0 %v1202
    %v1204 = vpop.xlane.xlu0 %1203
    %v1205 = vsel %vm274, %v1199, 0.0
    %1206 = vadd.xlane.f32.xlu0 %v1205
    %v1207 = vpop.xlane.xlu0 %1206
    %v1208 = vmul.f32 %v1204, %v281
    %v1209 = vmul.f32 %v1207, %v281
    %v1210 = vsub.f32 %v1198, %v1208
    %v1211 = vsub.f32 %v1199, %v1209
    %v1212 = vmul.f32 %v1210, %v1210
    %v1213 = vmul.f32 %v1211, %v1211
    %v1214 = vsel %vm274, %v1212, 0.0
    %1215 = vadd.xlane.f32.xlu0 %v1214
    %v1216 = vpop.xlane.xlu0 %1215
    %v1217 = vsel %vm274, %v1213, 0.0
    %1218 = vadd.xlane.f32.xlu0 %v1217
    %v1219 = vpop.xlane.xlu0 %1218
    %v1220 = vmul.f32 %v1216, %v281
    %v1221 = vmul.f32 %v1219, %v281
    %v1222 = vadd.f32 %v1220, 1e-05
    %v1223 = vadd.f32 %v1221, 1e-05
    %v1224 = vrsqrt.pop %v1222
    %v1225 = vrsqrt.pop %v1223
    %v1226 = vmul.f32 %v1210, %v1224
    %v1227 = vmul.f32 %v1211, %v1225
    %v1229 = vlaneseq
    %v1230 = vshrl.u32 %v1229, 7
    %v1231 = vsub.s32 0, %v1230
    %v1232 = vrot.slane %v1200, %v1231
    %v1234 = vmul.f32 %v1226, %v1232
    %v1235 = vmul.f32 %v1227, %v1232
    %v1237 = vlaneseq
    %v1238 = vshrl.u32 %v1237, 7
    %v1239 = vsub.s32 0, %v1238
    %v1240 = vrot.slane %v1201, %v1239
    %v1242 = vadd.f32 %v1234, %v1240
    %v1243 = vadd.f32 %v1235, %v1240
    %v1244 = vpack.c.bf16 %v1243, %v1242
    %v1245 = vld [vmem:[%s14] sm:$0xf]
    %v1246 = vld [vmem:[%s14 + $0x4] sm:$0xf]
    %v1247 = vld [vmem:[%s14 + $0x8] sm:$0xf]
    %v1248 = vld [vmem:[%s14 + $0xc] sm:$0xf]
    %v1249 = vld [vmem:[%s15] sm:$0x1]
    %v1251 = vlaneseq
    %v1252 = vshrl.u32 %v1251, 7
    %v1253 = vsub.s32 0, %v1252
    %v1254 = vrot.slane %v1249, %v1253
    %v1260 = vunpack.c.l.b16 %v1245
    %v1261 = vunpack.c.l.b16 %v1246
    %v1262 = vunpack.c.l.b16 %v1247
    %v1263 = vunpack.c.l.b16 %v1248
    %v1264 = vpack.c.b16 %v1261, %v1260
    %v1265 = vpack.c.b16 %v1263, %v1262
    %v1269 = vsel %vm274, %v1244, 0
    %1271 = vmatprep.subr.bf16.mxu0 0
    %1272 = vmatpush1.bf16.msra.mxu0 %v1264
    %1273 = vmatprep.subr.bf16.mxu0 0
    %1274 = vmatpush1.bf16.msra.mxu0 %v1265
    %1275 = vmatprep.subr.bf16.mxu0 0
    %1276 = vmatpush1.bf16.msra.mxu0 0
    %1277 = vmatprep.subr.bf16.mxu0 0
    %1278 = vmatpush1.bf16.msra.mxu0 0
    %1279 = vmatprep.subr.bf16.mxu0 0
    %1280 = vmatpush1.bf16.msra.mxu0 0
    %1281 = vmatprep.subr.bf16.mxu0 0
    %1282 = vmatpush1.bf16.msra.mxu0 0
    %1283 = vmatprep.subr.bf16.mxu0 0
    %1284 = vmatpush1.bf16.msra.mxu0 0
    %1285 = vmatprep.subr.bf16.mxu0 0
    %1286 = vmatpush1.bf16.msra.mxu0 0
    %1287 = vmatprep.subr.bf16.mxu0 0
    %1288 = vmatpush1.bf16.msra.mxu0 0
    %1289 = vmatprep.subr.bf16.mxu0 0
    %1290 = vmatpush1.bf16.msra.mxu0 0
    %1291 = vmatprep.subr.bf16.mxu0 0
    %1292 = vmatpush1.bf16.msra.mxu0 0
    %1293 = vmatprep.subr.bf16.mxu0 0
    %1294 = vmatpush1.bf16.msra.mxu0 0
    %1295 = vmatprep.subr.bf16.mxu0 0
    %1296 = vmatpush1.bf16.msra.mxu0 0
    %1297 = vmatprep.subr.bf16.mxu0 0
    %1298 = vmatpush1.bf16.msra.mxu0 0
    %1299 = vmatprep.subr.bf16.mxu0 0
    %1300 = vmatpush1.bf16.msra.mxu0 0
    %1301 = vmatprep.subr.bf16.mxu0 0
    %1302 = vmatpush1.bf16.msra.mxu0 0
    %1303 = vmatprep.mubr.bf16.mxu0 0
    %1304 = vmatmul.mubr.bf16.gmra.mrb[0].mxu0 %v1269
    %v1305 = vpop.f32.mrb[0].mxu0
    %v1306 = vadd.f32 %v1254, %v1305
    %v1307 = vpop.f32.mrb[0].mxu0
    %v1308 = vpop.f32.mrb[0].mxu0
    %v1309 = vadd.f32 %v1254, %v1308
    %v1310 = vpop.f32.mrb[0].mxu0
    %1311 = vdwg.mxu0
    %v1312 = vmul.f32 %v1306, %v1306
    %v1313 = vmul.f32 %v1309, %v1309
    %v1314 = vmul.f32 %v1306, %v1312
    %v1315 = vmul.f32 %v1309, %v1313
    %v1316 = vmul.f32 %v1314, 0.044715
    %v1317 = vmul.f32 %v1315, 0.044715
    %v1318 = vadd.f32 %v1306, %v1316
    %v1319 = vadd.f32 %v1309, %v1317
    %v1320 = vmul.f32 %v1318, 0.7978846
    %v1321 = vmul.f32 %v1319, 0.7978846
    %v1322 = vtanh.pop %v1320
    %v1323 = vtanh.pop %v1321
    %v1324 = vadd.f32 %v1322, 1.0
    %v1325 = vadd.f32 %v1323, 1.0
    %v1326 = vmul.f32 %v1324, 0.5
    %v1327 = vmul.f32 %v1325, 0.5
    %v1328 = vmul.f32 %v1306, %v1326
    %v1329 = vmul.f32 %v1309, %v1327
    %v1330 = vpack.c.bf16 %v1329, %v1328
    %v1331 = vld [vmem:[%s16] sm:$0xf]
    %v1332 = vld [vmem:[%s16 + $0x4] sm:$0xf]
    %v1333 = vld [vmem:[%s16 + $0x8] sm:$0xf]
    %v1334 = vld [vmem:[%s16 + $0xc] sm:$0xf]
    %v1335 = vld [vmem:[%s16 + $0x10] sm:$0xf]
    %v1336 = vld [vmem:[%s16 + $0x14] sm:$0xf]
    %v1337 = vld [vmem:[%s16 + $0x18] sm:$0xf]
    %v1338 = vld [vmem:[%s16 + $0x1c] sm:$0xf]
    %v1339 = vld [vmem:[%s17] sm:$0x1]
    %v1341 = vlaneseq
    %v1342 = vshrl.u32 %v1341, 7
    %v1343 = vsub.s32 0, %v1342
    %v1344 = vrot.slane %v1339, %v1343
    %v1354 = vunpack.c.l.b16 %v1331
    %v1355 = vunpack.c.l.b16 %v1332
    %v1356 = vunpack.c.l.b16 %v1333
    %v1357 = vunpack.c.l.b16 %v1334
    %v1358 = vunpack.c.l.b16 %v1335
    %v1359 = vunpack.c.l.b16 %v1336
    %v1360 = vunpack.c.l.b16 %v1337
    %v1361 = vunpack.c.l.b16 %v1338
    %v1362 = vpack.c.b16 %v1355, %v1354
    %v1363 = vpack.c.b16 %v1357, %v1356
    %v1364 = vpack.c.b16 %v1359, %v1358
    %v1365 = vpack.c.b16 %v1361, %v1360
    %vm1370 = vcmask 523264
    %v1372 = vsel %vm1370, %v1330, 0
    %1374 = vmatprep.subr.bf16.mxu0 0
    %1375 = vmatpush1.bf16.msra.mxu0 %v1362
    %1376 = vmatprep.subr.bf16.mxu0 0
    %1377 = vmatpush1.bf16.msra.mxu0 %v1363
    %1378 = vmatprep.subr.bf16.mxu0 0
    %1379 = vmatpush1.bf16.msra.mxu0 %v1364
    %1380 = vmatprep.subr.bf16.mxu0 0
    %1381 = vmatpush1.bf16.msra.mxu0 %v1365
    %1382 = vmatprep.subr.bf16.mxu0 0
    %1383 = vmatpush1.bf16.msra.mxu0 0
    %1384 = vmatprep.subr.bf16.mxu0 0
    %1385 = vmatpush1.bf16.msra.mxu0 0
    %1386 = vmatprep.subr.bf16.mxu0 0
    %1387 = vmatpush1.bf16.msra.mxu0 0
    %1388 = vmatprep.subr.bf16.mxu0 0
    %1389 = vmatpush1.bf16.msra.mxu0 0
    %1390 = vmatprep.subr.bf16.mxu0 0
    %1391 = vmatpush1.bf16.msra.mxu0 0
    %1392 = vmatprep.subr.bf16.mxu0 0
    %1393 = vmatpush1.bf16.msra.mxu0 0
    %1394 = vmatprep.subr.bf16.mxu0 0
    %1395 = vmatpush1.bf16.msra.mxu0 0
    %1396 = vmatprep.subr.bf16.mxu0 0
    %1397 = vmatpush1.bf16.msra.mxu0 0
    %1398 = vmatprep.subr.bf16.mxu0 0
    %1399 = vmatpush1.bf16.msra.mxu0 0
    %1400 = vmatprep.subr.bf16.mxu0 0
    %1401 = vmatpush1.bf16.msra.mxu0 0
    %1402 = vmatprep.subr.bf16.mxu0 0
    %1403 = vmatpush1.bf16.msra.mxu0 0
    %1404 = vmatprep.subr.bf16.mxu0 0
    %1405 = vmatpush1.bf16.msra.mxu0 0
    %1406 = vmatprep.mubr.bf16.mxu0 0
    %1407 = vmatmul.mubr.bf16.gmra.mrb[0].mxu0 %v1372
    %v1408 = vpop.f32.mrb[0].mxu0
    %v1409 = vadd.f32 %v1344, %v1408
    %v1410 = vpop.f32.mrb[0].mxu0
    %v1411 = vpop.f32.mrb[0].mxu0
    %v1412 = vadd.f32 %v1344, %v1411
    %v1413 = vpop.f32.mrb[0].mxu0
    %1414 = vdwg.mxu0
    %v1415 = vadd.f32 %v1242, %v1409
    %v1416 = vadd.f32 %v1243, %v1412
    %v1417 = vld [vmem:[%s18] sm:$0x1]
    %v1418 = vld [vmem:[%s19] sm:$0x1]
    %v1419 = vsel %vm274, %v1415, 0.0
    %1420 = vadd.xlane.f32.xlu0 %v1419
    %v1421 = vpop.xlane.xlu0 %1420
    %v1422 = vsel %vm274, %v1416, 0.0
    %1423 = vadd.xlane.f32.xlu0 %v1422
    %v1424 = vpop.xlane.xlu0 %1423
    %v1425 = vmul.f32 %v1421, %v281
    %v1426 = vmul.f32 %v1424, %v281
    %v1427 = vsub.f32 %v1415, %v1425
    %v1428 = vsub.f32 %v1416, %v1426
    %v1429 = vmul.f32 %v1427, %v1427
    %v1430 = vmul.f32 %v1428, %v1428
    %v1431 = vsel %vm274, %v1429, 0.0
    %1432 = vadd.xlane.f32.xlu0 %v1431
    %v1433 = vpop.xlane.xlu0 %1432
    %v1434 = vsel %vm274, %v1430, 0.0
    %1435 = vadd.xlane.f32.xlu0 %v1434
    %v1436 = vpop.xlane.xlu0 %1435
    %v1437 = vmul.f32 %v1433, %v281
    %v1438 = vmul.f32 %v1436, %v281
    %v1439 = vadd.f32 %v1437, 1e-05
    %v1440 = vadd.f32 %v1438, 1e-05
    %v1441 = vrsqrt.pop %v1439
    %v1442 = vrsqrt.pop %v1440
    %v1443 = vmul.f32 %v1427, %v1441
    %v1444 = vmul.f32 %v1428, %v1442
    %v1446 = vlaneseq
    %v1447 = vshrl.u32 %v1446, 7
    %v1448 = vsub.s32 0, %v1447
    %v1449 = vrot.slane %v1417, %v1448
    %v1451 = vmul.f32 %v1443, %v1449
    %v1452 = vmul.f32 %v1444, %v1449
    %v1454 = vlaneseq
    %v1455 = vshrl.u32 %v1454, 7
    %v1456 = vsub.s32 0, %v1455
    %v1457 = vrot.slane %v1418, %v1456
    %v1459 = vadd.f32 %v1451, %v1457
    %v1460 = vadd.f32 %v1452, %v1457
    %v1461 = vpack.c.bf16 %v1460, %v1459
    %s1462 = scalar_lea.vmem %s8, 16
    %v1463 = vld [vmem:[%s1462] sm:$0xf]
    %v1464 = vld [vmem:[%s1462 + $0x4] sm:$0xf]
    %v1465 = vld [vmem:[%s1462 + $0x8] sm:$0xf]
    %v1466 = vld [vmem:[%s1462 + $0xc] sm:$0xf]
    %s1467 = scalar_lea.vmem %s9, 1
    %v1468 = vld [vmem:[%s1467] sm:$0x1]
    %v1470 = vlaneseq
    %v1471 = vshrl.u32 %v1470, 7
    %v1472 = vsub.s32 0, %v1471
    %v1473 = vrot.slane %v1468, %v1472
    %v1479 = vunpack.c.l.b16 %v1463
    %v1480 = vunpack.c.l.b16 %v1464
    %v1481 = vunpack.c.l.b16 %v1465
    %v1482 = vunpack.c.l.b16 %v1466
    %v1483 = vpack.c.b16 %v1480, %v1479
    %v1484 = vpack.c.b16 %v1482, %v1481
    %v1488 = vsel %vm274, %v1461, 0
    %1490 = vmatprep.subr.bf16.mxu0 0
    %1491 = vmatpush1.bf16.msra.mxu0 %v1483
    %1492 = vmatprep.subr.bf16.mxu0 0
    %1493 = vmatpush1.bf16.msra.mxu0 %v1484
    %1494 = vmatprep.subr.bf16.mxu0 0
    %1495 = vmatpush1.bf16.msra.mxu0 0
    %1496 = vmatprep.subr.bf16.mxu0 0
    %1497 = vmatpush1.bf16.msra.mxu0 0
    %1498 = vmatprep.subr.bf16.mxu0 0
    %1499 = vmatpush1.bf16.msra.mxu0 0
    %1500 = vmatprep.subr.bf16.mxu0 0
    %1501 = vmatpush1.bf16.msra.mxu0 0
    %1502 = vmatprep.subr.bf16.mxu0 0
    %1503 = vmatpush1.bf16.msra.mxu0 0
    %1504 = vmatprep.subr.bf16.mxu0 0
    %1505 = vmatpush1.bf16.msra.mxu0 0
    %1506 = vmatprep.subr.bf16.mxu0 0
    %1507 = vmatpush1.bf16.msra.mxu0 0
    %1508 = vmatprep.subr.bf16.mxu0 0
    %1509 = vmatpush1.bf16.msra.mxu0 0
    %1510 = vmatprep.subr.bf16.mxu0 0
    %1511 = vmatpush1.bf16.msra.mxu0 0
    %1512 = vmatprep.subr.bf16.mxu0 0
    %1513 = vmatpush1.bf16.msra.mxu0 0
    %1514 = vmatprep.subr.bf16.mxu0 0
    %1515 = vmatpush1.bf16.msra.mxu0 0
    %1516 = vmatprep.subr.bf16.mxu0 0
    %1517 = vmatpush1.bf16.msra.mxu0 0
    %1518 = vmatprep.subr.bf16.mxu0 0
    %1519 = vmatpush1.bf16.msra.mxu0 0
    %1520 = vmatprep.subr.bf16.mxu0 0
    %1521 = vmatpush1.bf16.msra.mxu0 0
    %1522 = vmatprep.mubr.bf16.mxu0 0
    %1523 = vmatmul.mubr.bf16.gmra.mrb[0].mxu0 %v1488
    %v1524 = vpop.f32.mrb[0].mxu0
    %v1525 = vadd.f32 %v1473, %v1524
    %v1526 = vpop.f32.mrb[0].mxu0
    %v1527 = vpop.f32.mrb[0].mxu0
    %v1528 = vadd.f32 %v1473, %v1527
    %v1529 = vpop.f32.mrb[0].mxu0
    %1530 = vdwg.mxu0
    %1533 = vrot.lane.b32.xlu0 %v1525, 80
    %v1534 = vpop.permute.xlu0 %1533
    %1535 = vrot.lane.b32.xlu0 %v1528, 80
    %v1536 = vpop.permute.xlu0 %1535
    %1537 = vrot.lane.b32.xlu0 %v1525, 112
    %v1538 = vpop.permute.xlu0 %1537
    %v1539 = vsel %vm129, %v1525, 0
    %v1541 = vsel %vm129, %v1538, 0
    %1543 = vmatprep.subr.mxu0 0.0
    %1544 = vmatpush1.xpose.msra.mxu0 %v1541
    %1545 = vmatprep.subr.mxu0 0.0
    %1546 = vmatpush1.xpose.msra.mxu0 0.0
    %1547 = vmatprep.subr.mxu0 0.0
    %1548 = vmatpush1.xpose.msra.mxu0 0.0
    %1549 = vmatprep.subr.mxu0 0.0
    %1550 = vmatpush1.xpose.msra.mxu0 0.0
    %1551 = vmatprep.subr.mxu0 0.0
    %1552 = vmatpush1.xpose.msra.mxu0 0.0
    %1553 = vmatprep.subr.mxu0 0.0
    %1554 = vmatpush1.xpose.msra.mxu0 0.0
    %1555 = vmatprep.subr.mxu0 0.0
    %1556 = vmatpush1.xpose.msra.mxu0 0.0
    %1557 = vmatprep.subr.mxu0 0.0
    %1558 = vmatpush1.xpose.msra.mxu0 0.0
    %1559 = vmatprep.subr.mxu0 0.0
    %1560 = vmatpush1.xpose.msra.mxu0 0.0
    %1561 = vmatprep.subr.mxu0 0.0
    %1562 = vmatpush1.xpose.msra.mxu0 0.0
    %1563 = vmatprep.subr.mxu0 0.0
    %1564 = vmatpush1.xpose.msra.mxu0 0.0
    %1565 = vmatprep.subr.mxu0 0.0
    %1566 = vmatpush1.xpose.msra.mxu0 0.0
    %1567 = vmatprep.subr.mxu0 0.0
    %1568 = vmatpush1.xpose.msra.mxu0 0.0
    %1569 = vmatprep.subr.mxu0 0.0
    %1570 = vmatpush1.xpose.msra.mxu0 0.0
    %1571 = vmatprep.subr.mxu0 0.0
    %1572 = vmatpush1.xpose.msra.mxu0 0.0
    %1573 = vmatprep.subr.mxu0 0.0
    %1574 = vmatpush1.xpose.msra.mxu0 0.0
    %1575 = vmatprep.subr.mxu0 0.0
    %1576 = vmatpush1.xpose.msra.mxu0 0.0
    %1577 = vmatprep.subr.mxu0 0.0
    %1578 = vmatpush1.xpose.msra.mxu0 0.0
    %1579 = vmatprep.subr.mxu0 0.0
    %1580 = vmatpush1.xpose.msra.mxu0 0.0
    %1581 = vmatprep.subr.mxu0 0.0
    %1582 = vmatpush1.xpose.msra.mxu0 0.0
    %1583 = vmatprep.subr.mxu0 0.0
    %1584 = vmatpush1.xpose.msra.mxu0 0.0
    %1585 = vmatprep.subr.mxu0 0.0
    %1586 = vmatpush1.xpose.msra.mxu0 0.0
    %1587 = vmatprep.subr.mxu0 0.0
    %1588 = vmatpush1.xpose.msra.mxu0 0.0
    %1589 = vmatprep.subr.mxu0 0.0
    %1590 = vmatpush1.xpose.msra.mxu0 0.0
    %1591 = vmatprep.subr.mxu0 0.0
    %1592 = vmatpush1.xpose.msra.mxu0 0.0
    %1593 = vmatprep.subr.mxu0 0.0
    %1594 = vmatpush1.xpose.msra.mxu0 0.0
    %1595 = vmatprep.subr.mxu0 0.0
    %1596 = vmatpush1.xpose.msra.mxu0 0.0
    %1597 = vmatprep.subr.mxu0 0.0
    %1598 = vmatpush1.xpose.msra.mxu0 0.0
    %1599 = vmatprep.subr.mxu0 0.0
    %1600 = vmatpush1.xpose.msra.mxu0 0.0
    %1601 = vmatprep.subr.mxu0 0.0
    %1602 = vmatpush1.xpose.msra.mxu0 0.0
    %1603 = vmatprep.subr.mxu0 0.0
    %1604 = vmatpush1.xpose.msra.mxu0 0.0
    %1605 = vmatprep.subr.mxu0 0.0
    %1606 = vmatpush1.xpose.msra.mxu0 0.0
    %1607 = vmatprep.mubr.f32.mxu0 0.0
    %1608 = vmatmul.mubr.f32.gmra.mrb[0].mxu0 %v1539
    %v1609 = vpop.f32.mrb[0].mxu0
    %v1610 = vadd.f32 %v421, %v1609
    %v1611 = vpop.f32.mrb[0].mxu0
    %1612 = vdwg.mxu0
    %1613 = vrot.lane.b32.xlu0 %v1528, 112
    %v1614 = vpop.permute.xlu0 %1613
    %v1615 = vsel %vm129, %v1528, 0
    %v1617 = vsel %vm129, %v1614, 0
    %1619 = vmatprep.subr.mxu0 0.0
    %1620 = vmatpush1.xpose.msra.mxu0 %v1617
    %1621 = vmatprep.subr.mxu0 0.0
    %1622 = vmatpush1.xpose.msra.mxu0 0.0
    %1623 = vmatprep.subr.mxu0 0.0
    %1624 = vmatpush1.xpose.msra.mxu0 0.0
    %1625 = vmatprep.subr.mxu0 0.0
    %1626 = vmatpush1.xpose.msra.mxu0 0.0
    %1627 = vmatprep.subr.mxu0 0.0
    %1628 = vmatpush1.xpose.msra.mxu0 0.0
    %1629 = vmatprep.subr.mxu0 0.0
    %1630 = vmatpush1.xpose.msra.mxu0 0.0
    %1631 = vmatprep.subr.mxu0 0.0
    %1632 = vmatpush1.xpose.msra.mxu0 0.0
    %1633 = vmatprep.subr.mxu0 0.0
    %1634 = vmatpush1.xpose.msra.mxu0 0.0
    %1635 = vmatprep.subr.mxu0 0.0
    %1636 = vmatpush1.xpose.msra.mxu0 0.0
    %1637 = vmatprep.subr.mxu0 0.0
    %1638 = vmatpush1.xpose.msra.mxu0 0.0
    %1639 = vmatprep.subr.mxu0 0.0
    %1640 = vmatpush1.xpose.msra.mxu0 0.0
    %1641 = vmatprep.subr.mxu0 0.0
    %1642 = vmatpush1.xpose.msra.mxu0 0.0
    %1643 = vmatprep.subr.mxu0 0.0
    %1644 = vmatpush1.xpose.msra.mxu0 0.0
    %1645 = vmatprep.subr.mxu0 0.0
    %1646 = vmatpush1.xpose.msra.mxu0 0.0
    %1647 = vmatprep.subr.mxu0 0.0
    %1648 = vmatpush1.xpose.msra.mxu0 0.0
    %1649 = vmatprep.subr.mxu0 0.0
    %1650 = vmatpush1.xpose.msra.mxu0 0.0
    %1651 = vmatprep.subr.mxu0 0.0
    %1652 = vmatpush1.xpose.msra.mxu0 0.0
    %1653 = vmatprep.subr.mxu0 0.0
    %1654 = vmatpush1.xpose.msra.mxu0 0.0
    %1655 = vmatprep.subr.mxu0 0.0
    %1656 = vmatpush1.xpose.msra.mxu0 0.0
    %1657 = vmatprep.subr.mxu0 0.0
    %1658 = vmatpush1.xpose.msra.mxu0 0.0
    %1659 = vmatprep.subr.mxu0 0.0
    %1660 = vmatpush1.xpose.msra.mxu0 0.0
    %1661 = vmatprep.subr.mxu0 0.0
    %1662 = vmatpush1.xpose.msra.mxu0 0.0
    %1663 = vmatprep.subr.mxu0 0.0
    %1664 = vmatpush1.xpose.msra.mxu0 0.0
    %1665 = vmatprep.subr.mxu0 0.0
    %1666 = vmatpush1.xpose.msra.mxu0 0.0
    %1667 = vmatprep.subr.mxu0 0.0
    %1668 = vmatpush1.xpose.msra.mxu0 0.0
    %1669 = vmatprep.subr.mxu0 0.0
    %1670 = vmatpush1.xpose.msra.mxu0 0.0
    %1671 = vmatprep.subr.mxu0 0.0
    %1672 = vmatpush1.xpose.msra.mxu0 0.0
    %1673 = vmatprep.subr.mxu0 0.0
    %1674 = vmatpush1.xpose.msra.mxu0 0.0
    %1675 = vmatprep.subr.mxu0 0.0
    %1676 = vmatpush1.xpose.msra.mxu0 0.0
    %1677 = vmatprep.subr.mxu0 0.0
    %1678 = vmatpush1.xpose.msra.mxu0 0.0
    %1679 = vmatprep.subr.mxu0 0.0
    %1680 = vmatpush1.xpose.msra.mxu0 0.0
    %1681 = vmatprep.subr.mxu0 0.0
    %1682 = vmatpush1.xpose.msra.mxu0 0.0
    %1683 = vmatprep.mubr.f32.mxu0 0.0
    %1684 = vmatmul.mubr.f32.gmra.mrb[0].mxu0 %v1615
    %v1685 = vpop.f32.mrb[0].mxu0
    %v1686 = vadd.f32 %v425, %v1685
    %v1687 = vpop.f32.mrb[0].mxu0
    %1688 = vdwg.mxu0
    %1689 = vrot.lane.b32.xlu0 %v1534, 112
    %v1690 = vpop.permute.xlu0 %1689
    %v1691 = vsel %vm129, %v1534, 0
    %v1693 = vsel %vm129, %v1690, 0
    %1695 = vmatprep.subr.mxu0 0.0
    %1696 = vmatpush1.xpose.msra.mxu0 %v1693
    %1697 = vmatprep.subr.mxu0 0.0
    %1698 = vmatpush1.xpose.msra.mxu0 0.0
    %1699 = vmatprep.subr.mxu0 0.0
    %1700 = vmatpush1.xpose.msra.mxu0 0.0
    %1701 = vmatprep.subr.mxu0 0.0
    %1702 = vmatpush1.xpose.msra.mxu0 0.0
    %1703 = vmatprep.subr.mxu0 0.0
    %1704 = vmatpush1.xpose.msra.mxu0 0.0
    %1705 = vmatprep.subr.mxu0 0.0
    %1706 = vmatpush1.xpose.msra.mxu0 0.0
    %1707 = vmatprep.subr.mxu0 0.0
    %1708 = vmatpush1.xpose.msra.mxu0 0.0
    %1709 = vmatprep.subr.mxu0 0.0
    %1710 = vmatpush1.xpose.msra.mxu0 0.0
    %1711 = vmatprep.subr.mxu0 0.0
    %1712 = vmatpush1.xpose.msra.mxu0 0.0
    %1713 = vmatprep.subr.mxu0 0.0
    %1714 = vmatpush1.xpose.msra.mxu0 0.0
    %1715 = vmatprep.subr.mxu0 0.0
    %1716 = vmatpush1.xpose.msra.mxu0 0.0
    %1717 = vmatprep.subr.mxu0 0.0
    %1718 = vmatpush1.xpose.msra.mxu0 0.0
    %1719 = vmatprep.subr.mxu0 0.0
    %1720 = vmatpush1.xpose.msra.mxu0 0.0
    %1721 = vmatprep.subr.mxu0 0.0
    %1722 = vmatpush1.xpose.msra.mxu0 0.0
    %1723 = vmatprep.subr.mxu0 0.0
    %1724 = vmatpush1.xpose.msra.mxu0 0.0
    %1725 = vmatprep.subr.mxu0 0.0
    %1726 = vmatpush1.xpose.msra.mxu0 0.0
    %1727 = vmatprep.subr.mxu0 0.0
    %1728 = vmatpush1.xpose.msra.mxu0 0.0
    %1729 = vmatprep.subr.mxu0 0.0
    %1730 = vmatpush1.xpose.msra.mxu0 0.0
    %1731 = vmatprep.subr.mxu0 0.0
    %1732 = vmatpush1.xpose.msra.mxu0 0.0
    %1733 = vmatprep.subr.mxu0 0.0
    %1734 = vmatpush1.xpose.msra.mxu0 0.0
    %1735 = vmatprep.subr.mxu0 0.0
    %1736 = vmatpush1.xpose.msra.mxu0 0.0
    %1737 = vmatprep.subr.mxu0 0.0
    %1738 = vmatpush1.xpose.msra.mxu0 0.0
    %1739 = vmatprep.subr.mxu0 0.0
    %1740 = vmatpush1.xpose.msra.mxu0 0.0
    %1741 = vmatprep.subr.mxu0 0.0
    %1742 = vmatpush1.xpose.msra.mxu0 0.0
    %1743 = vmatprep.subr.mxu0 0.0
    %1744 = vmatpush1.xpose.msra.mxu0 0.0
    %1745 = vmatprep.subr.mxu0 0.0
    %1746 = vmatpush1.xpose.msra.mxu0 0.0
    %1747 = vmatprep.subr.mxu0 0.0
    %1748 = vmatpush1.xpose.msra.mxu0 0.0
    %1749 = vmatprep.subr.mxu0 0.0
    %1750 = vmatpush1.xpose.msra.mxu0 0.0
    %1751 = vmatprep.subr.mxu0 0.0
    %1752 = vmatpush1.xpose.msra.mxu0 0.0
    %1753 = vmatprep.subr.mxu0 0.0
    %1754 = vmatpush1.xpose.msra.mxu0 0.0
    %1755 = vmatprep.subr.mxu0 0.0
    %1756 = vmatpush1.xpose.msra.mxu0 0.0
    %1757 = vmatprep.subr.mxu0 0.0
    %1758 = vmatpush1.xpose.msra.mxu0 0.0
    %1759 = vmatprep.mubr.f32.mxu0 0.0
    %1760 = vmatmul.mubr.f32.gmra.mrb[0].mxu0 %v1691
    %v1761 = vpop.f32.mrb[0].mxu0
    %v1762 = vadd.f32 %v421, %v1761
    %v1763 = vpop.f32.mrb[0].mxu0
    %1764 = vdwg.mxu0
    %1765 = vrot.lane.b32.xlu0 %v1536, 112
    %v1766 = vpop.permute.xlu0 %1765
    %v1767 = vsel %vm129, %v1536, 0
    %v1769 = vsel %vm129, %v1766, 0
    %1771 = vmatprep.subr.mxu0 0.0
    %1772 = vmatpush1.xpose.msra.mxu0 %v1769
    %1773 = vmatprep.subr.mxu0 0.0
    %1774 = vmatpush1.xpose.msra.mxu0 0.0
    %1775 = vmatprep.subr.mxu0 0.0
    %1776 = vmatpush1.xpose.msra.mxu0 0.0
    %1777 = vmatprep.subr.mxu0 0.0
    %1778 = vmatpush1.xpose.msra.mxu0 0.0
    %1779 = vmatprep.subr.mxu0 0.0
    %1780 = vmatpush1.xpose.msra.mxu0 0.0
    %1781 = vmatprep.subr.mxu0 0.0
    %1782 = vmatpush1.xpose.msra.mxu0 0.0
    %1783 = vmatprep.subr.mxu0 0.0
    %1784 = vmatpush1.xpose.msra.mxu0 0.0
    %1785 = vmatprep.subr.mxu0 0.0
    %1786 = vmatpush1.xpose.msra.mxu0 0.0
    %1787 = vmatprep.subr.mxu0 0.0
    %1788 = vmatpush1.xpose.msra.mxu0 0.0
    %1789 = vmatprep.subr.mxu0 0.0
    %1790 = vmatpush1.xpose.msra.mxu0 0.0
    %1791 = vmatprep.subr.mxu0 0.0
    %1792 = vmatpush1.xpose.msra.mxu0 0.0
    %1793 = vmatprep.subr.mxu0 0.0
    %1794 = vmatpush1.xpose.msra.mxu0 0.0
    %1795 = vmatprep.subr.mxu0 0.0
    %1796 = vmatpush1.xpose.msra.mxu0 0.0
    %1797 = vmatprep.subr.mxu0 0.0
    %1798 = vmatpush1.xpose.msra.mxu0 0.0
    %1799 = vmatprep.subr.mxu0 0.0
    %1800 = vmatpush1.xpose.msra.mxu0 0.0
    %1801 = vmatprep.subr.mxu0 0.0
    %1802 = vmatpush1.xpose.msra.mxu0 0.0
    %1803 = vmatprep.subr.mxu0 0.0
    %1804 = vmatpush1.xpose.msra.mxu0 0.0
    %1805 = vmatprep.subr.mxu0 0.0
    %1806 = vmatpush1.xpose.msra.mxu0 0.0
    %1807 = vmatprep.subr.mxu0 0.0
    %1808 = vmatpush1.xpose.msra.mxu0 0.0
    %1809 = vmatprep.subr.mxu0 0.0
    %1810 = vmatpush1.xpose.msra.mxu0 0.0
    %1811 = vmatprep.subr.mxu0 0.0
    %1812 = vmatpush1.xpose.msra.mxu0 0.0
    %1813 = vmatprep.subr.mxu0 0.0
    %1814 = vmatpush1.xpose.msra.mxu0 0.0
    %1815 = vmatprep.subr.mxu0 0.0
    %1816 = vmatpush1.xpose.msra.mxu0 0.0
    %1817 = vmatprep.subr.mxu0 0.0
    %1818 = vmatpush1.xpose.msra.mxu0 0.0
    %1819 = vmatprep.subr.mxu0 0.0
    %1820 = vmatpush1.xpose.msra.mxu0 0.0
    %1821 = vmatprep.subr.mxu0 0.0
    %1822 = vmatpush1.xpose.msra.mxu0 0.0
    %1823 = vmatprep.subr.mxu0 0.0
    %1824 = vmatpush1.xpose.msra.mxu0 0.0
    %1825 = vmatprep.subr.mxu0 0.0
    %1826 = vmatpush1.xpose.msra.mxu0 0.0
    %1827 = vmatprep.subr.mxu0 0.0
    %1828 = vmatpush1.xpose.msra.mxu0 0.0
    %1829 = vmatprep.subr.mxu0 0.0
    %1830 = vmatpush1.xpose.msra.mxu0 0.0
    %1831 = vmatprep.subr.mxu0 0.0
    %1832 = vmatpush1.xpose.msra.mxu0 0.0
    %1833 = vmatprep.subr.mxu0 0.0
    %1834 = vmatpush1.xpose.msra.mxu0 0.0
    %1835 = vmatprep.mubr.f32.mxu0 0.0
    %1836 = vmatmul.mubr.f32.gmra.mrb[0].mxu0 %v1767
    %v1837 = vpop.f32.mrb[0].mxu0
    %v1838 = vadd.f32 %v425, %v1837
    %v1839 = vpop.f32.mrb[0].mxu0
    %1840 = vdwg.mxu0
    %v1841 = vsel %vm732, %v1610, -inf
    %1842 = vmax.xlane.f32.xlu0 %v1841
    %v1843 = vpop.xlane.xlu0 %1842
    %v1844 = vsel %vm732, %v1686, -inf
    %1845 = vmax.xlane.f32.xlu0 %v1844
    %v1846 = vpop.xlane.xlu0 %1845
    %v1847 = vsel %vm732, %v1762, -inf
    %1848 = vmax.xlane.f32.xlu0 %v1847
    %v1849 = vpop.xlane.xlu0 %1848
    %v1850 = vsel %vm732, %v1838, -inf
    %1851 = vmax.xlane.f32.xlu0 %v1850
    %v1852 = vpop.xlane.xlu0 %1851
    %v1853 = vsub.f32 %v1610, %v1843
    %v1854 = vsub.f32 %v1686, %v1846
    %v1855 = vsub.f32 %v1762, %v1849
    %v1856 = vsub.f32 %v1838, %v1852
    %v1857 = vmul.f32 %v1853, 1.442695
    %v1858 = vpow.pop %v1857
    %v1859 = vmul.f32 %v1854, 1.442695
    %v1860 = vpow.pop %v1859
    %v1861 = vmul.f32 %v1855, 1.442695
    %v1862 = vpow.pop %v1861
    %v1863 = vmul.f32 %v1856, 1.442695
    %v1864 = vpow.pop %v1863
    %v1865 = vsel %vm732, %v1858, 0.0
    %1866 = vadd.xlane.f32.xlu0 %v1865
    %v1867 = vpop.xlane.xlu0 %1866
    %v1868 = vsel %vm732, %v1860, 0.0
    %1869 = vadd.xlane.f32.xlu0 %v1868
    %v1870 = vpop.xlane.xlu0 %1869
    %v1871 = vsel %vm732, %v1862, 0.0
    %1872 = vadd.xlane.f32.xlu0 %v1871
    %v1873 = vpop.xlane.xlu0 %1872
    %v1874 = vsel %vm732, %v1864, 0.0
    %1875 = vadd.xlane.f32.xlu0 %v1874
    %v1876 = vpop.xlane.xlu0 %1875
    %v1877 = vrcp.pop %v1867
    %v1878 = vrcp.pop %v1870
    %v1879 = vrcp.pop %v1873
    %v1880 = vrcp.pop %v1876
    %v1881 = vmul.f32 %v1858, %v1877
    %v1882 = vmul.f32 %v1860, %v1878
    %v1883 = vmul.f32 %v1862, %v1879
    %v1884 = vmul.f32 %v1864, %v1880
    %1885 = vrot.lane.b32.xlu0 %v1525, 96
    %v1886 = vpop.permute.xlu0 %1885
    %v1889 = vsel %vm732, %v1881, 0
    %1891 = vmatprep.subr.mxu0 0.0
    %1892 = vmatpush1.msra.mxu0 %v1886
    %1893 = vmatprep.subr.mxu0 0.0
    %1894 = vmatpush1.msra.mxu0 0.0
    %1895 = vmatprep.subr.mxu0 0.0
    %1896 = vmatpush1.msra.mxu0 0.0
    %1897 = vmatprep.subr.mxu0 0.0
    %1898 = vmatpush1.msra.mxu0 0.0
    %1899 = vmatprep.subr.mxu0 0.0
    %1900 = vmatpush1.msra.mxu0 0.0
    %1901 = vmatprep.subr.mxu0 0.0
    %1902 = vmatpush1.msra.mxu0 0.0
    %1903 = vmatprep.subr.mxu0 0.0
    %1904 = vmatpush1.msra.mxu0 0.0
    %1905 = vmatprep.subr.mxu0 0.0
    %1906 = vmatpush1.msra.mxu0 0.0
    %1907 = vmatprep.subr.mxu0 0.0
    %1908 = vmatpush1.msra.mxu0 0.0
    %1909 = vmatprep.subr.mxu0 0.0
    %1910 = vmatpush1.msra.mxu0 0.0
    %1911 = vmatprep.subr.mxu0 0.0
    %1912 = vmatpush1.msra.mxu0 0.0
    %1913 = vmatprep.subr.mxu0 0.0
    %1914 = vmatpush1.msra.mxu0 0.0
    %1915 = vmatprep.subr.mxu0 0.0
    %1916 = vmatpush1.msra.mxu0 0.0
    %1917 = vmatprep.subr.mxu0 0.0
    %1918 = vmatpush1.msra.mxu0 0.0
    %1919 = vmatprep.subr.mxu0 0.0
    %1920 = vmatpush1.msra.mxu0 0.0
    %1921 = vmatprep.subr.mxu0 0.0
    %1922 = vmatpush1.msra.mxu0 0.0
    %1923 = vmatprep.subr.mxu0 0.0
    %1924 = vmatpush1.msra.mxu0 0.0
    %1925 = vmatprep.subr.mxu0 0.0
    %1926 = vmatpush1.msra.mxu0 0.0
    %1927 = vmatprep.subr.mxu0 0.0
    %1928 = vmatpush1.msra.mxu0 0.0
    %1929 = vmatprep.subr.mxu0 0.0
    %1930 = vmatpush1.msra.mxu0 0.0
    %1931 = vmatprep.subr.mxu0 0.0
    %1932 = vmatpush1.msra.mxu0 0.0
    %1933 = vmatprep.subr.mxu0 0.0
    %1934 = vmatpush1.msra.mxu0 0.0
    %1935 = vmatprep.subr.mxu0 0.0
    %1936 = vmatpush1.msra.mxu0 0.0
    %1937 = vmatprep.subr.mxu0 0.0
    %1938 = vmatpush1.msra.mxu0 0.0
    %1939 = vmatprep.subr.mxu0 0.0
    %1940 = vmatpush1.msra.mxu0 0.0
    %1941 = vmatprep.subr.mxu0 0.0
    %1942 = vmatpush1.msra.mxu0 0.0
    %1943 = vmatprep.subr.mxu0 0.0
    %1944 = vmatpush1.msra.mxu0 0.0
    %1945 = vmatprep.subr.mxu0 0.0
    %1946 = vmatpush1.msra.mxu0 0.0
    %1947 = vmatprep.subr.mxu0 0.0
    %1948 = vmatpush1.msra.mxu0 0.0
    %1949 = vmatprep.subr.mxu0 0.0
    %1950 = vmatpush1.msra.mxu0 0.0
    %1951 = vmatprep.subr.mxu0 0.0
    %1952 = vmatpush1.msra.mxu0 0.0
    %1953 = vmatprep.subr.mxu0 0.0
    %1954 = vmatpush1.msra.mxu0 0.0
    %1955 = vmatprep.mubr.f32.mxu0 0.0
    %1956 = vmatmul.mubr.f32.gmra.mrb[0].mxu0 %v1889
    %v1957 = vpop.f32.mrb[0].mxu0
    %v1958 = vadd.f32 0.0, %v1957
    %v1959 = vpop.f32.mrb[0].mxu0
    %1960 = vdwg.mxu0
    %1961 = vrot.lane.b32.xlu0 %v1528, 96
    %v1962 = vpop.permute.xlu0 %1961
    %v1965 = vsel %vm732, %v1882, 0
    %1967 = vmatprep.subr.mxu0 0.0
    %1968 = vmatpush1.msra.mxu0 %v1962
    %1969 = vmatprep.subr.mxu0 0.0
    %1970 = vmatpush1.msra.mxu0 0.0
    %1971 = vmatprep.subr.mxu0 0.0
    %1972 = vmatpush1.msra.mxu0 0.0
    %1973 = vmatprep.subr.mxu0 0.0
    %1974 = vmatpush1.msra.mxu0 0.0
    %1975 = vmatprep.subr.mxu0 0.0
    %1976 = vmatpush1.msra.mxu0 0.0
    %1977 = vmatprep.subr.mxu0 0.0
    %1978 = vmatpush1.msra.mxu0 0.0
    %1979 = vmatprep.subr.mxu0 0.0
    %1980 = vmatpush1.msra.mxu0 0.0
    %1981 = vmatprep.subr.mxu0 0.0
    %1982 = vmatpush1.msra.mxu0 0.0
    %1983 = vmatprep.subr.mxu0 0.0
    %1984 = vmatpush1.msra.mxu0 0.0
    %1985 = vmatprep.subr.mxu0 0.0
    %1986 = vmatpush1.msra.mxu0 0.0
    %1987 = vmatprep.subr.mxu0 0.0
    %1988 = vmatpush1.msra.mxu0 0.0
    %1989 = vmatprep.subr.mxu0 0.0
    %1990 = vmatpush1.msra.mxu0 0.0
    %1991 = vmatprep.subr.mxu0 0.0
    %1992 = vmatpush1.msra.mxu0 0.0
    %1993 = vmatprep.subr.mxu0 0.0
    %1994 = vmatpush1.msra.mxu0 0.0
    %1995 = vmatprep.subr.mxu0 0.0
    %1996 = vmatpush1.msra.mxu0 0.0
    %1997 = vmatprep.subr.mxu0 0.0
    %1998 = vmatpush1.msra.mxu0 0.0
    %1999 = vmatprep.subr.mxu0 0.0
    %2000 = vmatpush1.msra.mxu0 0.0
    %2001 = vmatprep.subr.mxu0 0.0
    %2002 = vmatpush1.msra.mxu0 0.0
    %2003 = vmatprep.subr.mxu0 0.0
    %2004 = vmatpush1.msra.mxu0 0.0
    %2005 = vmatprep.subr.mxu0 0.0
    %2006 = vmatpush1.msra.mxu0 0.0
    %2007 = vmatprep.subr.mxu0 0.0
    %2008 = vmatpush1.msra.mxu0 0.0
    %2009 = vmatprep.subr.mxu0 0.0
    %2010 = vmatpush1.msra.mxu0 0.0
    %2011 = vmatprep.subr.mxu0 0.0
    %2012 = vmatpush1.msra.mxu0 0.0
    %2013 = vmatprep.subr.mxu0 0.0
    %2014 = vmatpush1.msra.mxu0 0.0
    %2015 = vmatprep.subr.mxu0 0.0
    %2016 = vmatpush1.msra.mxu0 0.0
    %2017 = vmatprep.subr.mxu0 0.0
    %2018 = vmatpush1.msra.mxu0 0.0
    %2019 = vmatprep.subr.mxu0 0.0
    %2020 = vmatpush1.msra.mxu0 0.0
    %2021 = vmatprep.subr.mxu0 0.0
    %2022 = vmatpush1.msra.mxu0 0.0
    %2023 = vmatprep.subr.mxu0 0.0
    %2024 = vmatpush1.msra.mxu0 0.0
    %2025 = vmatprep.subr.mxu0 0.0
    %2026 = vmatpush1.msra.mxu0 0.0
    %2027 = vmatprep.subr.mxu0 0.0
    %2028 = vmatpush1.msra.mxu0 0.0
    %2029 = vmatprep.subr.mxu0 0.0
    %2030 = vmatpush1.msra.mxu0 0.0
    %2031 = vmatprep.mubr.f32.mxu0 0.0
    %2032 = vmatmul.mubr.f32.gmra.mrb[0].mxu0 %v1965
    %v2033 = vpop.f32.mrb[0].mxu0
    %v2034 = vadd.f32 0.0, %v2033
    %v2035 = vpop.f32.mrb[0].mxu0
    %2036 = vdwg.mxu0
    %2037 = vrot.lane.b32.xlu0 %v1534, 96
    %v2038 = vpop.permute.xlu0 %2037
    %v2041 = vsel %vm732, %v1883, 0
    %2043 = vmatprep.subr.mxu0 0.0
    %2044 = vmatpush1.msra.mxu0 %v2038
    %2045 = vmatprep.subr.mxu0 0.0
    %2046 = vmatpush1.msra.mxu0 0.0
    %2047 = vmatprep.subr.mxu0 0.0
    %2048 = vmatpush1.msra.mxu0 0.0
    %2049 = vmatprep.subr.mxu0 0.0
    %2050 = vmatpush1.msra.mxu0 0.0
    %2051 = vmatprep.subr.mxu0 0.0
    %2052 = vmatpush1.msra.mxu0 0.0
    %2053 = vmatprep.subr.mxu0 0.0
    %2054 = vmatpush1.msra.mxu0 0.0
    %2055 = vmatprep.subr.mxu0 0.0
    %2056 = vmatpush1.msra.mxu0 0.0
    %2057 = vmatprep.subr.mxu0 0.0
    %2058 = vmatpush1.msra.mxu0 0.0
    %2059 = vmatprep.subr.mxu0 0.0
    %2060 = vmatpush1.msra.mxu0 0.0
    %2061 = vmatprep.subr.mxu0 0.0
    %2062 = vmatpush1.msra.mxu0 0.0
    %2063 = vmatprep.subr.mxu0 0.0
    %2064 = vmatpush1.msra.mxu0 0.0
    %2065 = vmatprep.subr.mxu0 0.0
    %2066 = vmatpush1.msra.mxu0 0.0
    %2067 = vmatprep.subr.mxu0 0.0
    %2068 = vmatpush1.msra.mxu0 0.0
    %2069 = vmatprep.subr.mxu0 0.0
    %2070 = vmatpush1.msra.mxu0 0.0
    %2071 = vmatprep.subr.mxu0 0.0
    %2072 = vmatpush1.msra.mxu0 0.0
    %2073 = vmatprep.subr.mxu0 0.0
    %2074 = vmatpush1.msra.mxu0 0.0
    %2075 = vmatprep.subr.mxu0 0.0
    %2076 = vmatpush1.msra.mxu0 0.0
    %2077 = vmatprep.subr.mxu0 0.0
    %2078 = vmatpush1.msra.mxu0 0.0
    %2079 = vmatprep.subr.mxu0 0.0
    %2080 = vmatpush1.msra.mxu0 0.0
    %2081 = vmatprep.subr.mxu0 0.0
    %2082 = vmatpush1.msra.mxu0 0.0
    %2083 = vmatprep.subr.mxu0 0.0
    %2084 = vmatpush1.msra.mxu0 0.0
    %2085 = vmatprep.subr.mxu0 0.0
    %2086 = vmatpush1.msra.mxu0 0.0
    %2087 = vmatprep.subr.mxu0 0.0
    %2088 = vmatpush1.msra.mxu0 0.0
    %2089 = vmatprep.subr.mxu0 0.0
    %2090 = vmatpush1.msra.mxu0 0.0
    %2091 = vmatprep.subr.mxu0 0.0
    %2092 = vmatpush1.msra.mxu0 0.0
    %2093 = vmatprep.subr.mxu0 0.0
    %2094 = vmatpush1.msra.mxu0 0.0
    %2095 = vmatprep.subr.mxu0 0.0
    %2096 = vmatpush1.msra.mxu0 0.0
    %2097 = vmatprep.subr.mxu0 0.0
    %2098 = vmatpush1.msra.mxu0 0.0
    %2099 = vmatprep.subr.mxu0 0.0
    %2100 = vmatpush1.msra.mxu0 0.0
    %2101 = vmatprep.subr.mxu0 0.0
    %2102 = vmatpush1.msra.mxu0 0.0
    %2103 = vmatprep.subr.mxu0 0.0
    %2104 = vmatpush1.msra.mxu0 0.0
    %2105 = vmatprep.subr.mxu0 0.0
    %2106 = vmatpush1.msra.mxu0 0.0
    %2107 = vmatprep.mubr.f32.mxu0 0.0
    %2108 = vmatmul.mubr.f32.gmra.mrb[0].mxu0 %v2041
    %v2109 = vpop.f32.mrb[0].mxu0
    %v2110 = vadd.f32 0.0, %v2109
    %v2111 = vpop.f32.mrb[0].mxu0
    %2112 = vdwg.mxu0
    %2113 = vrot.lane.b32.xlu0 %v1536, 96
    %v2114 = vpop.permute.xlu0 %2113
    %v2117 = vsel %vm732, %v1884, 0
    %2119 = vmatprep.subr.mxu0 0.0
    %2120 = vmatpush1.msra.mxu0 %v2114
    %2121 = vmatprep.subr.mxu0 0.0
    %2122 = vmatpush1.msra.mxu0 0.0
    %2123 = vmatprep.subr.mxu0 0.0
    %2124 = vmatpush1.msra.mxu0 0.0
    %2125 = vmatprep.subr.mxu0 0.0
    %2126 = vmatpush1.msra.mxu0 0.0
    %2127 = vmatprep.subr.mxu0 0.0
    %2128 = vmatpush1.msra.mxu0 0.0
    %2129 = vmatprep.subr.mxu0 0.0
    %2130 = vmatpush1.msra.mxu0 0.0
    %2131 = vmatprep.subr.mxu0 0.0
    %2132 = vmatpush1.msra.mxu0 0.0
    %2133 = vmatprep.subr.mxu0 0.0
    %2134 = vmatpush1.msra.mxu0 0.0
    %2135 = vmatprep.subr.mxu0 0.0
    %2136 = vmatpush1.msra.mxu0 0.0
    %2137 = vmatprep.subr.mxu0 0.0
    %2138 = vmatpush1.msra.mxu0 0.0
    %2139 = vmatprep.subr.mxu0 0.0
    %2140 = vmatpush1.msra.mxu0 0.0
    %2141 = vmatprep.subr.mxu0 0.0
    %2142 = vmatpush1.msra.mxu0 0.0
    %2143 = vmatprep.subr.mxu0 0.0
    %2144 = vmatpush1.msra.mxu0 0.0
    %2145 = vmatprep.subr.mxu0 0.0
    %2146 = vmatpush1.msra.mxu0 0.0
    %2147 = vmatprep.subr.mxu0 0.0
    %2148 = vmatpush1.msra.mxu0 0.0
    %2149 = vmatprep.subr.mxu0 0.0
    %2150 = vmatpush1.msra.mxu0 0.0
    %2151 = vmatprep.subr.mxu0 0.0
    %2152 = vmatpush1.msra.mxu0 0.0
    %2153 = vmatprep.subr.mxu0 0.0
    %2154 = vmatpush1.msra.mxu0 0.0
    %2155 = vmatprep.subr.mxu0 0.0
    %2156 = vmatpush1.msra.mxu0 0.0
    %2157 = vmatprep.subr.mxu0 0.0
    %2158 = vmatpush1.msra.mxu0 0.0
    %2159 = vmatprep.subr.mxu0 0.0
    %2160 = vmatpush1.msra.mxu0 0.0
    %2161 = vmatprep.subr.mxu0 0.0
    %2162 = vmatpush1.msra.mxu0 0.0
    %2163 = vmatprep.subr.mxu0 0.0
    %2164 = vmatpush1.msra.mxu0 0.0
    %2165 = vmatprep.subr.mxu0 0.0
    %2166 = vmatpush1.msra.mxu0 0.0
    %2167 = vmatprep.subr.mxu0 0.0
    %2168 = vmatpush1.msra.mxu0 0.0
    %2169 = vmatprep.subr.mxu0 0.0
    %2170 = vmatpush1.msra.mxu0 0.0
    %2171 = vmatprep.subr.mxu0 0.0
    %2172 = vmatpush1.msra.mxu0 0.0
    %2173 = vmatprep.subr.mxu0 0.0
    %2174 = vmatpush1.msra.mxu0 0.0
    %2175 = vmatprep.subr.mxu0 0.0
    %2176 = vmatpush1.msra.mxu0 0.0
    %2177 = vmatprep.subr.mxu0 0.0
    %2178 = vmatpush1.msra.mxu0 0.0
    %2179 = vmatprep.subr.mxu0 0.0
    %2180 = vmatpush1.msra.mxu0 0.0
    %2181 = vmatprep.subr.mxu0 0.0
    %2182 = vmatpush1.msra.mxu0 0.0
    %2183 = vmatprep.mubr.f32.mxu0 0.0
    %2184 = vmatmul.mubr.f32.gmra.mrb[0].mxu0 %v2117
    %v2185 = vpop.f32.mrb[0].mxu0
    %v2186 = vadd.f32 0.0, %v2185
    %v2187 = vpop.f32.mrb[0].mxu0
    %2188 = vdwg.mxu0
    %s2189 = scalar_lea.vmem %s10, 16
    %v2190 = vld [vmem:[%s2189] sm:$0xf]
    %v2191 = vld [vmem:[%s2189 + $0x4] sm:$0xf]
    %v2192 = vld [vmem:[%s2189 + $0x8] sm:$0xf]
    %v2193 = vld [vmem:[%s2189 + $0xc] sm:$0xf]
    %s2194 = scalar_lea.vmem %s11, 1
    %v2195 = vld [vmem:[%s2194] sm:$0x1]
    %v2196 = vpack.c.bf16 %v2034, %v1958
    %v2199 = vunpack.c.l.b16 %v2190
    %v2200 = vunpack.c.l.b16 %v2191
    %v2201 = vpack.c.b16 %v2200, %v2199
    %v2204 = vsel %vm129, %v2196, 0
    %2206 = vmatprep.subr.bf16.mxu0 0
    %2207 = vmatpush1.bf16.msra.mxu0 %v2201
    %2208 = vmatprep.subr.bf16.mxu0 0
    %2209 = vmatpush1.bf16.msra.mxu0 0
    %2210 = vmatprep.subr.bf16.mxu0 0
    %2211 = vmatpush1.bf16.msra.mxu0 0
    %2212 = vmatprep.subr.bf16.mxu0 0
    %2213 = vmatpush1.bf16.msra.mxu0 0
    %2214 = vmatprep.subr.bf16.mxu0 0
    %2215 = vmatpush1.bf16.msra.mxu0 0
    %2216 = vmatprep.subr.bf16.mxu0 0
    %2217 = vmatpush1.bf16.msra.mxu0 0
    %2218 = vmatprep.subr.bf16.mxu0 0
    %2219 = vmatpush1.bf16.msra.mxu0 0
    %2220 = vmatprep.subr.bf16.mxu0 0
    %2221 = vmatpush1.bf16.msra.mxu0 0
    %2222 = vmatprep.subr.bf16.mxu0 0
    %2223 = vmatpush1.bf16.msra.mxu0 0
    %2224 = vmatprep.subr.bf16.mxu0 0
    %2225 = vmatpush1.bf16.msra.mxu0 0
    %2226 = vmatprep.subr.bf16.mxu0 0
    %2227 = vmatpush1.bf16.msra.mxu0 0
    %2228 = vmatprep.subr.bf16.mxu0 0
    %2229 = vmatpush1.bf16.msra.mxu0 0
    %2230 = vmatprep.subr.bf16.mxu0 0
    %2231 = vmatpush1.bf16.msra.mxu0 0
    %2232 = vmatprep.subr.bf16.mxu0 0
    %2233 = vmatpush1.bf16.msra.mxu0 0
    %2234 = vmatprep.subr.bf16.mxu0 0
    %2235 = vmatpush1.bf16.msra.mxu0 0
    %2236 = vmatprep.subr.bf16.mxu0 0
    %2237 = vmatpush1.bf16.msra.mxu0 0
    %2238 = vmatprep.mubr.bf16.mxu0 0
    %2239 = vmatmul.mubr.bf16.gmra.mrb[0].mxu0 %v2204
    %v2240 = vpop.f32.mrb[0].mxu0
    %v2241 = vadd.f32 0.0, %v2240
    %v2242 = vpop.f32.mrb[0].mxu0
    %v2243 = vpop.f32.mrb[0].mxu0
    %v2244 = vadd.f32 0.0, %v2243
    %v2245 = vpop.f32.mrb[0].mxu0
    %2246 = vdwg.mxu0
    %v2248 = vlaneseq
    %v2249 = vshrl.u32 %v2248, 7
    %v2250 = vsub.s32 0, %v2249
    %v2251 = vrot.slane %v2195, %v2250
    %v2253 = vadd.f32 %v2251, %v2241
    %v2254 = vadd.f32 %v2251, %v2244
    %v2255 = vpack.c.bf16 %v2186, %v2110
    %v2258 = vunpack.c.l.b16 %v2192
    %v2259 = vunpack.c.l.b16 %v2193
    %v2260 = vpack.c.b16 %v2259, %v2258
    %v2263 = vsel %vm129, %v2255, 0
    %2265 = vmatprep.subr.bf16.mxu0 0
    %2266 = vmatpush1.bf16.msra.mxu0 %v2260
    %2267 = vmatprep.subr.bf16.mxu0 0
    %2268 = vmatpush1.bf16.msra.mxu0 0
    %2269 = vmatprep.subr.bf16.mxu0 0
    %2270 = vmatpush1.bf16.msra.mxu0 0
    %2271 = vmatprep.subr.bf16.mxu0 0
    %2272 = vmatpush1.bf16.msra.mxu0 0
    %2273 = vmatprep.subr.bf16.mxu0 0
    %2274 = vmatpush1.bf16.msra.mxu0 0
    %2275 = vmatprep.subr.bf16.mxu0 0
    %2276 = vmatpush1.bf16.msra.mxu0 0
    %2277 = vmatprep.subr.bf16.mxu0 0
    %2278 = vmatpush1.bf16.msra.mxu0 0
    %2279 = vmatprep.subr.bf16.mxu0 0
    %2280 = vmatpush1.bf16.msra.mxu0 0
    %2281 = vmatprep.subr.bf16.mxu0 0
    %2282 = vmatpush1.bf16.msra.mxu0 0
    %2283 = vmatprep.subr.bf16.mxu0 0
    %2284 = vmatpush1.bf16.msra.mxu0 0
    %2285 = vmatprep.subr.bf16.mxu0 0
    %2286 = vmatpush1.bf16.msra.mxu0 0
    %2287 = vmatprep.subr.bf16.mxu0 0
    %2288 = vmatpush1.bf16.msra.mxu0 0
    %2289 = vmatprep.subr.bf16.mxu0 0
    %2290 = vmatpush1.bf16.msra.mxu0 0
    %2291 = vmatprep.subr.bf16.mxu0 0
    %2292 = vmatpush1.bf16.msra.mxu0 0
    %2293 = vmatprep.subr.bf16.mxu0 0
    %2294 = vmatpush1.bf16.msra.mxu0 0
    %2295 = vmatprep.subr.bf16.mxu0 0
    %2296 = vmatpush1.bf16.msra.mxu0 0
    %2297 = vmatprep.mubr.bf16.mxu0 0
    %2298 = vmatmul.mubr.bf16.gmra.mrb[0].mxu0 %v2263
    %v2299 = vpop.f32.mrb[0].mxu0
    %v2300 = vadd.f32 0.0, %v2299
    %v2301 = vpop.f32.mrb[0].mxu0
    %v2302 = vpop.f32.mrb[0].mxu0
    %v2303 = vadd.f32 0.0, %v2302
    %v2304 = vpop.f32.mrb[0].mxu0
    %2305 = vdwg.mxu0
    %v2306 = vadd.f32 %v2253, %v2300
    %v2307 = vadd.f32 %v2254, %v2303
    %v2308 = vadd.f32 %v1459, %v2306
    %v2309 = vadd.f32 %v1460, %v2307
    %s2310 = scalar_lea.vmem %s12, 1
    %v2311 = vld [vmem:[%s2310] sm:$0x1]
    %s2312 = scalar_lea.vmem %s13, 1
    %v2313 = vld [vmem:[%s2312] sm:$0x1]
    %v2314 = vsel %vm274, %v2308, 0.0
    %2315 = vadd.xlane.f32.xlu0 %v2314
    %v2316 = vpop.xlane.xlu0 %2315
    %v2317 = vsel %vm274, %v2309, 0.0
    %2318 = vadd.xlane.f32.xlu0 %v2317
    %v2319 = vpop.xlane.xlu0 %2318
    %v2320 = vmul.f32 %v2316, %v281
    %v2321 = vmul.f32 %v2319, %v281
    %v2322 = vsub.f32 %v2308, %v2320
    %v2323 = vsub.f32 %v2309, %v2321
    %v2324 = vmul.f32 %v2322, %v2322
    %v2325 = vmul.f32 %v2323, %v2323
    %v2326 = vsel %vm274, %v2324, 0.0
    %2327 = vadd.xlane.f32.xlu0 %v2326
    %v2328 = vpop.xlane.xlu0 %2327
    %v2329 = vsel %vm274, %v2325, 0.0
    %2330 = vadd.xlane.f32.xlu0 %v2329
    %v2331 = vpop.xlane.xlu0 %2330
    %v2332 = vmul.f32 %v2328, %v281
    %v2333 = vmul.f32 %v2331, %v281
    %v2334 = vadd.f32 %v2332, 1e-05
    %v2335 = vadd.f32 %v2333, 1e-05
    %v2336 = vrsqrt.pop %v2334
    %v2337 = vrsqrt.pop %v2335
    %v2338 = vmul.f32 %v2322, %v2336
    %v2339 = vmul.f32 %v2323, %v2337
    %v2341 = vlaneseq
    %v2342 = vshrl.u32 %v2341, 7
    %v2343 = vsub.s32 0, %v2342
    %v2344 = vrot.slane %v2311, %v2343
    %v2346 = vmul.f32 %v2338, %v2344
    %v2347 = vmul.f32 %v2339, %v2344
    %v2349 = vlaneseq
    %v2350 = vshrl.u32 %v2349, 7
    %v2351 = vsub.s32 0, %v2350
    %v2352 = vrot.slane %v2313, %v2351
    %v2354 = vadd.f32 %v2346, %v2352
    %v2355 = vadd.f32 %v2347, %v2352
    %v2356 = vpack.c.bf16 %v2355, %v2354
    %s2357 = scalar_lea.vmem %s14, 16
    %v2358 = vld [vmem:[%s2357] sm:$0xf]
    %v2359 = vld [vmem:[%s2357 + $0x4] sm:$0xf]
    %v2360 = vld [vmem:[%s2357 + $0x8] sm:$0xf]
    %v2361 = vld [vmem:[%s2357 + $0xc] sm:$0xf]
    %s2362 = scalar_lea.vmem %s15, 1
    %v2363 = vld [vmem:[%s2362] sm:$0x1]
    %v2365 = vlaneseq
    %v2366 = vshrl.u32 %v2365, 7
    %v2367 = vsub.s32 0, %v2366
    %v2368 = vrot.slane %v2363, %v2367
    %v2374 = vunpack.c.l.b16 %v2358
    %v2375 = vunpack.c.l.b16 %v2359
    %v2376 = vunpack.c.l.b16 %v2360
    %v2377 = vunpack.c.l.b16 %v2361
    %v2378 = vpack.c.b16 %v2375, %v2374
    %v2379 = vpack.c.b16 %v2377, %v2376
    %v2383 = vsel %vm274, %v2356, 0
    %2385 = vmatprep.subr.bf16.mxu0 0
    %2386 = vmatpush1.bf16.msra.mxu0 %v2378
    %2387 = vmatprep.subr.bf16.mxu0 0
    %2388 = vmatpush1.bf16.msra.mxu0 %v2379
    %2389 = vmatprep.subr.bf16.mxu0 0
    %2390 = vmatpush1.bf16.msra.mxu0 0
    %2391 = vmatprep.subr.bf16.mxu0 0
    %2392 = vmatpush1.bf16.msra.mxu0 0
    %2393 = vmatprep.subr.bf16.mxu0 0
    %2394 = vmatpush1.bf16.msra.mxu0 0
    %2395 = vmatprep.subr.bf16.mxu0 0
    %2396 = vmatpush1.bf16.msra.mxu0 0
    %2397 = vmatprep.subr.bf16.mxu0 0
    %2398 = vmatpush1.bf16.msra.mxu0 0
    %2399 = vmatprep.subr.bf16.mxu0 0
    %2400 = vmatpush1.bf16.msra.mxu0 0
    %2401 = vmatprep.subr.bf16.mxu0 0
    %2402 = vmatpush1.bf16.msra.mxu0 0
    %2403 = vmatprep.subr.bf16.mxu0 0
    %2404 = vmatpush1.bf16.msra.mxu0 0
    %2405 = vmatprep.subr.bf16.mxu0 0
    %2406 = vmatpush1.bf16.msra.mxu0 0
    %2407 = vmatprep.subr.bf16.mxu0 0
    %2408 = vmatpush1.bf16.msra.mxu0 0
    %2409 = vmatprep.subr.bf16.mxu0 0
    %2410 = vmatpush1.bf16.msra.mxu0 0
    %2411 = vmatprep.subr.bf16.mxu0 0
    %2412 = vmatpush1.bf16.msra.mxu0 0
    %2413 = vmatprep.subr.bf16.mxu0 0
    %2414 = vmatpush1.bf16.msra.mxu0 0
    %2415 = vmatprep.subr.bf16.mxu0 0
    %2416 = vmatpush1.bf16.msra.mxu0 0
    %2417 = vmatprep.mubr.bf16.mxu0 0
    %2418 = vmatmul.mubr.bf16.gmra.mrb[0].mxu0 %v2383
    %v2419 = vpop.f32.mrb[0].mxu0
    %v2420 = vadd.f32 %v2368, %v2419
    %v2421 = vpop.f32.mrb[0].mxu0
    %v2422 = vpop.f32.mrb[0].mxu0
    %v2423 = vadd.f32 %v2368, %v2422
    %v2424 = vpop.f32.mrb[0].mxu0
    %2425 = vdwg.mxu0
    %v2426 = vmul.f32 %v2420, %v2420
    %v2427 = vmul.f32 %v2423, %v2423
    %v2428 = vmul.f32 %v2420, %v2426
    %v2429 = vmul.f32 %v2423, %v2427
    %v2430 = vmul.f32 %v2428, 0.044715
    %v2431 = vmul.f32 %v2429, 0.044715
    %v2432 = vadd.f32 %v2420, %v2430
    %v2433 = vadd.f32 %v2423, %v2431
    %v2434 = vmul.f32 %v2432, 0.7978846
    %v2435 = vmul.f32 %v2433, 0.7978846
    %v2436 = vtanh.pop %v2434
    %v2437 = vtanh.pop %v2435
    %v2438 = vadd.f32 %v2436, 1.0
    %v2439 = vadd.f32 %v2437, 1.0
    %v2440 = vmul.f32 %v2438, 0.5
    %v2441 = vmul.f32 %v2439, 0.5
    %v2442 = vmul.f32 %v2420, %v2440
    %v2443 = vmul.f32 %v2423, %v2441
    %v2444 = vpack.c.bf16 %v2443, %v2442
    %s2445 = scalar_lea.vmem %s16, 32
    %v2446 = vld [vmem:[%s2445] sm:$0xf]
    %v2447 = vld [vmem:[%s2445 + $0x4] sm:$0xf]
    %v2448 = vld [vmem:[%s2445 + $0x8] sm:$0xf]
    %v2449 = vld [vmem:[%s2445 + $0xc] sm:$0xf]
    %v2450 = vld [vmem:[%s2445 + $0x10] sm:$0xf]
    %v2451 = vld [vmem:[%s2445 + $0x14] sm:$0xf]
    %v2452 = vld [vmem:[%s2445 + $0x18] sm:$0xf]
    %v2453 = vld [vmem:[%s2445 + $0x1c] sm:$0xf]
    %s2454 = scalar_lea.vmem %s17, 1
    %v2455 = vld [vmem:[%s2454] sm:$0x1]
    %v2457 = vlaneseq
    %v2458 = vshrl.u32 %v2457, 7
    %v2459 = vsub.s32 0, %v2458
    %v2460 = vrot.slane %v2455, %v2459
    %v2470 = vunpack.c.l.b16 %v2446
    %v2471 = vunpack.c.l.b16 %v2447
    %v2472 = vunpack.c.l.b16 %v2448
    %v2473 = vunpack.c.l.b16 %v2449
    %v2474 = vunpack.c.l.b16 %v2450
    %v2475 = vunpack.c.l.b16 %v2451
    %v2476 = vunpack.c.l.b16 %v2452
    %v2477 = vunpack.c.l.b16 %v2453
    %v2478 = vpack.c.b16 %v2471, %v2470
    %v2479 = vpack.c.b16 %v2473, %v2472
    %v2480 = vpack.c.b16 %v2475, %v2474
    %v2481 = vpack.c.b16 %v2477, %v2476
    %v2487 = vsel %vm1370, %v2444, 0
    %2489 = vmatprep.subr.bf16.mxu0 0
    %2490 = vmatpush1.bf16.msra.mxu0 %v2478
    %2491 = vmatprep.subr.bf16.mxu0 0
    %2492 = vmatpush1.bf16.msra.mxu0 %v2479
    %2493 = vmatprep.subr.bf16.mxu0 0
    %2494 = vmatpush1.bf16.msra.mxu0 %v2480
    %2495 = vmatprep.subr.bf16.mxu0 0
    %2496 = vmatpush1.bf16.msra.mxu0 %v2481
    %2497 = vmatprep.subr.bf16.mxu0 0
    %2498 = vmatpush1.bf16.msra.mxu0 0
    %2499 = vmatprep.subr.bf16.mxu0 0
    %2500 = vmatpush1.bf16.msra.mxu0 0
    %2501 = vmatprep.subr.bf16.mxu0 0
    %2502 = vmatpush1.bf16.msra.mxu0 0
    %2503 = vmatprep.subr.bf16.mxu0 0
    %2504 = vmatpush1.bf16.msra.mxu0 0
    %2505 = vmatprep.subr.bf16.mxu0 0
    %2506 = vmatpush1.bf16.msra.mxu0 0
    %2507 = vmatprep.subr.bf16.mxu0 0
    %2508 = vmatpush1.bf16.msra.mxu0 0
    %2509 = vmatprep.subr.bf16.mxu0 0
    %2510 = vmatpush1.bf16.msra.mxu0 0
    %2511 = vmatprep.subr.bf16.mxu0 0
    %2512 = vmatpush1.bf16.msra.mxu0 0
    %2513 = vmatprep.subr.bf16.mxu0 0
    %2514 = vmatpush1.bf16.msra.mxu0 0
    %2515 = vmatprep.subr.bf16.mxu0 0
    %2516 = vmatpush1.bf16.msra.mxu0 0
    %2517 = vmatprep.subr.bf16.mxu0 0
    %2518 = vmatpush1.bf16.msra.mxu0 0
    %2519 = vmatprep.subr.bf16.mxu0 0
    %2520 = vmatpush1.bf16.msra.mxu0 0
    %2521 = vmatprep.mubr.bf16.mxu0 0
    %2522 = vmatmul.mubr.bf16.gmra.mrb[0].mxu0 %v2487
    %v2523 = vpop.f32.mrb[0].mxu0
    %v2524 = vadd.f32 %v2460, %v2523
    %v2525 = vpop.f32.mrb[0].mxu0
    %v2526 = vpop.f32.mrb[0].mxu0
    %v2527 = vadd.f32 %v2460, %v2526
    %v2528 = vpop.f32.mrb[0].mxu0
    %2529 = vdwg.mxu0
    %v2530 = vadd.f32 %v2354, %v2524
    %v2531 = vadd.f32 %v2355, %v2527
    %s2532 = scalar_lea.vmem %s18, 1
    %v2533 = vld [vmem:[%s2532] sm:$0x1]
    %s2534 = scalar_lea.vmem %s19, 1
    %v2535 = vld [vmem:[%s2534] sm:$0x1]
    %v2536 = vsel %vm274, %v2530, 0.0
    %2537 = vadd.xlane.f32.xlu0 %v2536
    %v2538 = vpop.xlane.xlu0 %2537
    %v2539 = vsel %vm274, %v2531, 0.0
    %2540 = vadd.xlane.f32.xlu0 %v2539
    %v2541 = vpop.xlane.xlu0 %2540
    %v2542 = vmul.f32 %v2538, %v281
    %v2543 = vmul.f32 %v2541, %v281
    %v2544 = vsub.f32 %v2530, %v2542
    %v2545 = vsub.f32 %v2531, %v2543
    %v2546 = vmul.f32 %v2544, %v2544
    %v2547 = vmul.f32 %v2545, %v2545
    %v2548 = vsel %vm274, %v2546, 0.0
    %2549 = vadd.xlane.f32.xlu0 %v2548
    %v2550 = vpop.xlane.xlu0 %2549
    %v2551 = vsel %vm274, %v2547, 0.0
    %2552 = vadd.xlane.f32.xlu0 %v2551
    %v2553 = vpop.xlane.xlu0 %2552
    %v2554 = vmul.f32 %v2550, %v281
    %v2555 = vmul.f32 %v2553, %v281
    %v2556 = vadd.f32 %v2554, 1e-05
    %v2557 = vadd.f32 %v2555, 1e-05
    %v2558 = vrsqrt.pop %v2556
    %v2559 = vrsqrt.pop %v2557
    %v2560 = vmul.f32 %v2544, %v2558
    %v2561 = vmul.f32 %v2545, %v2559
    %v2563 = vlaneseq
    %v2564 = vshrl.u32 %v2563, 7
    %v2565 = vsub.s32 0, %v2564
    %v2566 = vrot.slane %v2533, %v2565
    %v2568 = vmul.f32 %v2560, %v2566
    %v2569 = vmul.f32 %v2561, %v2566
    %v2571 = vlaneseq
    %v2572 = vshrl.u32 %v2571, 7
    %v2573 = vsub.s32 0, %v2572
    %v2574 = vrot.slane %v2535, %v2573
    %v2576 = vadd.f32 %v2568, %v2574
    %v2577 = vadd.f32 %v2569, %v2574
    %v2578 = vpack.c.bf16 %v2576, %v2576
    %v2579 = vpack.c.bf16 %v2577, %v2577
    %v2580 = vld [vmem:[%s20] sm:$0xf]
    %v2581 = vld [vmem:[%s20 + $0x4] sm:$0xf]
    %v2582 = vld [vmem:[%s20 + $0x8] sm:$0xf]
    %v2583 = vld [vmem:[%s20 + $0xc] sm:$0xf]
    %v2584 = vld [vmem:[%s21] sm:$0x1]
    %v2586 = vlaneseq
    %v2587 = vshrl.u32 %v2586, 7
    %v2588 = vsub.s32 0, %v2587
    %v2589 = vrot.slane %v2584, %v2588
    %v2593 = vunpack.c.l.b16 %v2578
    %v2594 = vunpack.c.l.b16 %v2579
    %v2595 = vrot.slane %v2594, 7
    %vm2596 = vcmask 1041409
    %v2597 = vsel %vm2596, %v2595, %v2593
    %v2598 = vpack.c.b16 %v2597, %v2597
    %v2603 = vunpack.c.l.b16 %v2580
    %v2604 = vunpack.c.l.b16 %v2581
    %v2605 = vunpack.c.l.b16 %v2582
    %v2606 = vunpack.c.l.b16 %v2583
    %v2607 = vpack.c.b16 %v2604, %v2603
    %v2608 = vpack.c.b16 %v2606, %v2605
    %v2612 = vsel %vm274, %v2598, 0
    %2614 = vmatprep.subr.bf16.mxu0 0
    %2615 = vmatpush1.bf16.msra.mxu0 %v2607
    %2616 = vmatprep.subr.bf16.mxu0 0
    %2617 = vmatpush1.bf16.msra.mxu0 %v2608
    %2618 = vmatprep.subr.bf16.mxu0 0
    %2619 = vmatpush1.bf16.msra.mxu0 0
    %2620 = vmatprep.subr.bf16.mxu0 0
    %2621 = vmatpush1.bf16.msra.mxu0 0
    %2622 = vmatprep.subr.bf16.mxu0 0
    %2623 = vmatpush1.bf16.msra.mxu0 0
    %2624 = vmatprep.subr.bf16.mxu0 0
    %2625 = vmatpush1.bf16.msra.mxu0 0
    %2626 = vmatprep.subr.bf16.mxu0 0
    %2627 = vmatpush1.bf16.msra.mxu0 0
    %2628 = vmatprep.subr.bf16.mxu0 0
    %2629 = vmatpush1.bf16.msra.mxu0 0
    %2630 = vmatprep.subr.bf16.mxu0 0
    %2631 = vmatpush1.bf16.msra.mxu0 0
    %2632 = vmatprep.subr.bf16.mxu0 0
    %2633 = vmatpush1.bf16.msra.mxu0 0
    %2634 = vmatprep.subr.bf16.mxu0 0
    %2635 = vmatpush1.bf16.msra.mxu0 0
    %2636 = vmatprep.subr.bf16.mxu0 0
    %2637 = vmatpush1.bf16.msra.mxu0 0
    %2638 = vmatprep.subr.bf16.mxu0 0
    %2639 = vmatpush1.bf16.msra.mxu0 0
    %2640 = vmatprep.subr.bf16.mxu0 0
    %2641 = vmatpush1.bf16.msra.mxu0 0
    %2642 = vmatprep.subr.bf16.mxu0 0
    %2643 = vmatpush1.bf16.msra.mxu0 0
    %2644 = vmatprep.subr.bf16.mxu0 0
    %2645 = vmatpush1.bf16.msra.mxu0 0
    %2646 = vmatprep.mubr.bf16.mxu0 0
    %2647 = vmatmul.mubr.bf16.gmra.mrb[0].mxu0 %v2612
    %v2648 = vpop.f32.mrb[0].mxu0
    %v2649 = vadd.f32 %v2589, %v2648
    %v2650 = vpop.f32.mrb[0].mxu0
    %v2651 = vpop.f32.mrb[0].mxu0
    %v2652 = vpop.f32.mrb[0].mxu0
    %2653 = vdwg.mxu0
    %2654 = vst [vmem:[#allocation2] sm:$0x3] %v2649
    // Predicated region
    $region90: #{rocq_statement_embedder.1} parent=1 // pred_check
      _
    $region91: #{rocq_statement_embedder.1} parent=1 // pred_check_branch
      %2656 = sbr.rel (0) target = $region93
    $region92: #{rocq_statement_embedder.1} parent=1 // pred_region
      %s2658 = ssub.s32 32, 32
      %2659 = vsyncadd [#allocation3], %s2658
      %s2661 = sshll.u32 [#allocation2], 4
      %s2662 = int_to_ptr.vmem [resolvable:$true] %s2661
      %2664 = dma.vmem_to_hbm [thread:$0]  %s2662, 32, %s22, [#allocation3]
    $region93: #{rocq_statement_embedder.1} parent=1 // pred_fallthru
      _
    // Predicated region
    $region94: #{rocq_statement_embedder.1} parent=1 // pred_check
      _
    $region95: #{rocq_statement_embedder.1} parent=1 // pred_check_branch
      %2666 = sbr.rel (0) target = $region97
    $region96: #{rocq_statement_embedder.1} parent=1 // pred_region
      %2667 = dma.done [#allocation3], 32
    $region97: #{rocq_statement_embedder.1} parent=1 // pred_fallthru
      _
    %2668 = vsyncpa [#allocation3], 1

</llo_original>
